<compile_context>
chip_gen: v5e
topology: v5e:2x2
jax: 0.10.0
libtpu: 0.0.40
codegen_flags: <defaults>
</compile_context>

<pallas_src>
from collections import namedtuple

import jax
import jax.numpy as jnp
from jax.experimental import pallas as pl
from jax.experimental.pallas import tpu as pltpu

# ---------------------------------------------------------------------------
# Genotype (the PyTorch module takes it as a constructor arg; OPS was not
# provided, so we use a skip_connect-only genotype — Identity for stride 1,
# FactorizedReduce for stride 2 — matching standard DARTS OPS semantics).
# ---------------------------------------------------------------------------
Genotype = namedtuple("Genotype", "normal normal_concat reduce reduce_concat")

GENOTYPE = Genotype(
    normal=[("skip_connect", 0), ("skip_connect", 1),
            ("skip_connect", 0), ("skip_connect", 1)],
    normal_concat=[2, 3],
    reduce=[("skip_connect", 0), ("skip_connect", 1),
            ("skip_connect", 0), ("skip_connect", 1)],
    reduce_concat=[2, 3],
)

ACT_DTYPE = jnp.bfloat16   # activation / weight dtype between kernels (f32 accumulation)


# ---------------------------------------------------------------------------
# Pallas kernels
# ---------------------------------------------------------------------------
def _make_fused_matmul_kernel(pre_relu: bool):
    def kernel(x_ref, w_ref, shift_ref, o_ref):
        x = x_ref[...]                                  # (TM, K)
        if pre_relu:
            x = jnp.maximum(x, 0)
        y = jnp.dot(x, w_ref[...], preferred_element_type=jnp.float32)
        y = y + shift_ref[...]                          # (TM, N) f32
        o_ref[...] = y.astype(o_ref.dtype)
    return kernel


def _pick_tm(m):
    """Single full-M block (per-call VMEM footprint is tiny at these sizes);
    only the biggest calls are split into two parallel M tiles so v7x's two
    TensorCores both get work.  TODO(synk): re-budget against vmem_limit_bytes
    if the model is ever scaled up."""
    if m >= 2048 and m % 16 == 0:
        return m // 2
    return m


def fused_matmul(x, w, shift, *, pre_relu=False, out_dtype=ACT_DTYPE):
    """y = relu?(x) @ w + shift.   x:(M,K)   w:(K,N) (BN scale pre-folded)   shift:(N,)."""
    m, k = x.shape
    n = w.shape[1]
    tm = _pick_tm(m)
    return pl.pallas_call(
        _make_fused_matmul_kernel(pre_relu),
        out_shape=jax.ShapeDtypeStruct((m, n), out_dtype),
        grid=(m // tm,),
        in_specs=[
            pl.BlockSpec((tm, k), lambda i: (i, 0)),    # activation row tile
            pl.BlockSpec((k, n), lambda i: (0, 0)),     # weight resident across M tiles
            pl.BlockSpec((1, n), lambda i: (0, 0)),     # per-channel shift
        ],
        out_specs=pl.BlockSpec((tm, n), lambda i: (i, 0)),
        compiler_params=pltpu.CompilerParams(dimension_semantics=("parallel",)),
    )(x.astype(ACT_DTYPE), w.astype(ACT_DTYPE),
      shift.reshape(1, n).astype(jnp.float32))


def _global_heads_kernel(x_ref, wg_ref, bg_ref, wh_ref, bh_ref, o_ref):
    # 6x6 global conv (as matmul on im2col patches) chained with the three 1x1
    # classifier heads; the (M, C) intermediate stays in VMEM / vregs.
    y = jnp.dot(x_ref[...], wg_ref[...], preferred_element_type=jnp.float32)
    y = y + bg_ref[...]
    z = jnp.dot(y.astype(ACT_DTYPE), wh_ref[...], preferred_element_type=jnp.float32)
    z = z + bh_ref[...]
    col = jax.lax.broadcasted_iota(jnp.int32, z.shape, 1)
    o_ref[...] = jnp.where((col == 0) | (col == 4), jax.nn.sigmoid(z), z)


def global_heads_matmul(patches, wg, bg, wh, bh):
    m, k = patches.shape
    c = wg.shape[1]
    n = wh.shape[1]
    return pl.pallas_call(
        _global_heads_kernel,
        out_shape=jax.ShapeDtypeStruct((m, n), jnp.float32),
        grid=(1,),
        in_specs=[
            pl.BlockSpec((m, k), lambda i: (0, 0)),
            pl.BlockSpec((k, c), lambda i: (0, 0)),
            pl.BlockSpec((1, c), lambda i: (0, 0)),
            pl.BlockSpec((c, n), lambda i: (0, 0)),
            pl.BlockSpec((1, n), lambda i: (0, 0)),
        ],
        out_specs=pl.BlockSpec((m, n), lambda i: (0, 0)),
        compiler_params=pltpu.CompilerParams(dimension_semantics=("arbitrary",)),
    )(patches.astype(ACT_DTYPE), wg.astype(ACT_DTYPE),
      bg.reshape(1, c).astype(jnp.float32), wh.astype(ACT_DTYPE),
      bh.reshape(1, n).astype(jnp.float32))


# ---------------------------------------------------------------------------
# Block-structured packing: many small (M,K_b)x(K_b,N_b) problems -> ONE matmul
# ---------------------------------------------------------------------------
def packed_group(problems, *, pre_relu, out_dtype=ACT_DTYPE):
    """Run several (x:(M,K_b), w:(K_b,N_b), shift:(N_b,)) problems as ONE
    lane-dense matmul.  Inputs that are the same array object share a single K
    block; the combined weight is block-structured (zeros elsewhere), so a
    single (M, sum K) x (sum K, sum N) dot computes every problem and writes
    one wide output slab.  Returns the per-problem (M, N_b) outputs."""
    k_off, xs, k_total = {}, [], 0
    for x, _, _ in problems:
        if id(x) not in k_off:
            k_off[id(x)] = k_total
            xs.append(x)
            k_total += x.shape[1]
    n_offs, n_total = [], 0
    for _, w, _ in problems:
        n_offs.append(n_total)
        n_total += w.shape[1]

    w_full = jnp.zeros((k_total, n_total), jnp.float32)
    s_full = jnp.zeros((n_total,), jnp.float32)
    for (x, w, sh), n0 in zip(problems, n_offs):
        k0 = k_off[id(x)]
        kb, nb = w.shape
        w_full = w_full.at[k0:k0 + kb, n0:n0 + nb].set(w.astype(jnp.float32))
        s_full = s_full.at[n0:n0 + nb].set(sh.astype(jnp.float32))

    x_wide = xs[0] if len(xs) == 1 else jnp.concatenate(xs, axis=1)
    y = fused_matmul(x_wide, w_full, s_full, pre_relu=pre_relu, out_dtype=out_dtype)
    return [y[:, n0:n0 + w.shape[1]] for (_, w, _), n0 in zip(problems, n_offs)]


# ---------------------------------------------------------------------------
# im2col glue (wrapper side)
# ---------------------------------------------------------------------------
# TODO(synk): for kh*kw>1 convs (stem 3x3, global 6x6) the im2col patches are
# still materialized by XLA glue instead of in-kernel window shifts; at these
# sizes (<=110 KB) the extra HBM traffic is negligible.
def _im2col(x_nhwc, kh, kw, stride, pad):
    n, h, w, c = x_nhwc.shape
    if pad:
        x_nhwc = jnp.pad(x_nhwc, ((0, 0), (pad, pad), (pad, pad), (0, 0)))
    ho = (h + 2 * pad - kh) // stride + 1
    wo = (w + 2 * pad - kw) // stride + 1
    cols = [x_nhwc[:, i:i + stride * ho:stride, j:j + stride * wo:stride, :]
            for i in range(kh) for j in range(kw)]
    patches = jnp.stack(cols, axis=3).reshape(n * ho * wo, kh * kw * c)
    return patches, ho, wo


def bn_fold(gamma, beta, mean, var, eps=1e-5):
    # BN scale is folded into the weight in f32 (the folded weight is then cast
    # to bf16 for the MXU, like every other weight).
    s = gamma / jnp.sqrt(var + eps)
    return s, beta - mean * s


# ---------------------------------------------------------------------------
# Deterministic parameter generation (synthetic init, no checkpoint loading)
# ---------------------------------------------------------------------------
class ParamGen:
    def __init__(self, seed):
        self.key = jax.random.PRNGKey(seed)

    def _take(self):
        self.key, sub = jax.random.split(self.key)
        return sub

    def conv(self, c_out, c_in, kh, kw):
        fan = c_in * kh * kw
        return (jax.random.normal(self._take(), (c_out, c_in, kh, kw), jnp.float32)
                / jnp.sqrt(float(fan)))

    def bn(self, c):
        g = 1.0 + 0.1 * jax.random.normal(self._take(), (c,), jnp.float32)
        b = 0.1 * jax.random.normal(self._take(), (c,), jnp.float32)
        m = 0.1 * jax.random.normal(self._take(), (c,), jnp.float32)
        v = 1.0 + 0.1 * jax.random.uniform(self._take(), (c,), jnp.float32)
        return (g, b, m, v)

    def bias(self, c):
        return 0.1 * jax.random.normal(self._take(), (c,), jnp.float32)


def rcb_params(pg, c_in, c_out):       # ReLUConvBN(c_in, c_out, 1, 1, 0)
    return {"w": pg.conv(c_out, c_in, 1, 1), "bn": pg.bn(c_out)}


def fr_params(pg, c_in, c_out):        # FactorizedReduce(c_in, c_out)
    return {"w1": pg.conv(c_out // 2, c_in, 1, 1),
            "w2": pg.conv(c_out // 2, c_in, 1, 1),
            "bn": pg.bn(c_out)}


def build_cell_params(pg, genotype, c_pp, c_p, c, reduction, reduction_prev):
    cell = {}
    if reduction_prev:
        cell["pre0"] = ("fact_reduce", fr_params(pg, c_pp, c))
    else:
        cell["pre0"] = ("relu_conv_bn", rcb_params(pg, c_pp, c))
    cell["pre1"] = ("relu_conv_bn", rcb_params(pg, c_p, c))
    if reduction:
        op_names, indices = zip(*genotype.reduce)
        concat = genotype.reduce_concat
    else:
        op_names, indices = zip(*genotype.normal)
        concat = genotype.normal_concat
    ops = []
    for name, index in zip(op_names, indices):
        stride = 2 if reduction and index < 2 else 1
        # TODO(synk): only 'skip_connect' from the (unprovided) DARTS OPS dict is
        # implemented (Identity / FactorizedReduce); other primitives not needed here.
        assert name == "skip_connect"
        if stride == 1:
            ops.append(("identity", None))
        else:
            ops.append(("fact_reduce", fr_params(pg, c, c)))
    cell["ops"] = ops
    cell["indices"] = tuple(indices)
    cell["concat"] = tuple(concat)
    cell["steps"] = len(op_names) // 2
    cell["multiplier"] = len(concat)
    return cell


def build_network_params(pg, C, layers, genotype):
    stem_multiplier = 3
    c_curr = stem_multiplier * C
    params = {"stem": {"w": pg.conv(c_curr, 3, 3, 3), "bn": pg.bn(c_curr)}}
    c_pp, c_p, c_curr = c_curr, c_curr, C
    cells = []
    reduction_prev = False
    for i in range(layers):
        if i in [layers // 3, 2 * layers // 3]:
            c_curr *= 2
            reduction = True
        else:
            reduction = False
        cell = build_cell_params(pg, genotype, c_pp, c_p, c_curr,
                                 reduction, reduction_prev)
        reduction_prev = reduction
        cells.append(cell)
        c_pp, c_p = c_p, cell["multiplier"] * c_curr
    params["cells"] = cells
    params["global_conv"] = {"w": pg.conv(c_p, c_p, 6, 6), "b": pg.bias(c_p)}
    params["cls_face"] = {"w": pg.conv(1, c_p, 1, 1), "b": pg.bias(1)}
    params["bbox"] = {"w": pg.conv(3, c_p, 1, 1), "b": pg.bias(3)}
    params["cls_rip"] = {"w": pg.conv(1, c_p, 1, 1), "b": pg.bias(1)}
    return params


# ---------------------------------------------------------------------------
# Matmul-problem builders for the sub-modules (BN scale folded into W)
# ---------------------------------------------------------------------------
def _rcb_problem(p, x2d):
    """ReLUConvBN(1x1, stride 1): one matmul problem."""
    s, b = bn_fold(*p["bn"])
    c_out, c_in = p["w"].shape[0], p["w"].shape[1]
    w = p["w"].reshape(c_out, c_in).T * s[None, :]
    return [(x2d, w, b)]


def _fr_problems(p, xe2d, xo2d):
    """FactorizedReduce: two matmul problems (even & odd stride-2 branches)."""
    s, b = bn_fold(*p["bn"])
    half, c_in = p["w1"].shape[0], p["w1"].shape[1]
    w1 = p["w1"].reshape(half, c_in).T * s[:half][None, :]
    w2 = p["w2"].reshape(half, c_in).T * s[half:][None, :]
    return [(xe2d, w1, b[:half]), (xo2d, w2, b[half:])]


# ---------------------------------------------------------------------------
# Module forwards (NHWC)
# ---------------------------------------------------------------------------
def stem_forward(p, x_nhwc):
    s, b = bn_fold(*p["bn"])
    c_out, c_in, kh, kw = p["w"].shape
    n = x_nhwc.shape[0]
    patches, ho, wo = _im2col(x_nhwc, kh, kw, 1, 1)
    wm = jnp.transpose(p["w"], (2, 3, 1, 0)).reshape(kh * kw * c_in, c_out) * s[None, :]
    y = fused_matmul(patches, wm, b, pre_relu=False)
    return y.reshape(n, ho, wo, c_out)


def cell_forward(cell, s0, s1):
    n = s0.shape[0]

    # caches dedupe identical inputs (so packed_group shares K blocks)
    flat_cache, sub_cache = {}, {}

    def flat(x):                      # (N,H,W,C) -> (N*H*W, C)
        ent = flat_cache.get(id(x))
        if ent is None or ent[0] is not x:
            ent = (x, x.reshape(-1, x.shape[-1]))
            flat_cache[id(x)] = ent
        return ent[1]

    def sub(x):                       # stride-2 even / odd spatial subsample, 2-D
        ent = sub_cache.get(id(x))
        if ent is None or ent[0] is not x:
            xe = x[:, ::2, ::2, :]    # conv_1(relu(x)) stride 2
            xo = x[:, 1::2, 1::2, :]  # conv_2(relu(x)[:,1:,1:]) stride 2 (even H/W)
            assert xe.shape == xo.shape
            c = x.shape[-1]
            ent = (x, xe.reshape(-1, c), xo.reshape(-1, c), xe.shape)
            sub_cache[id(x)] = ent
        return ent[1], ent[2], ent[3]

    # ---- preprocess0 + preprocess1: ONE packed pallas_call ----
    pre_problems, pre_meta = [], []
    for (kind, p), x in ((cell["pre0"], s0), (cell["pre1"], s1)):
        if kind == "relu_conv_bn":
            pre_problems += _rcb_problem(p, flat(x))
            pre_meta.append(("single", (n, x.shape[1], x.shape[2], p["w"].shape[0])))
        else:  # fact_reduce
            xe2, xo2, sub_shape = sub(x)
            pre_problems += _fr_problems(p, xe2, xo2)
            pre_meta.append(("pair", (n, sub_shape[1], sub_shape[2], p["w1"].shape[0])))

    if len({pr[0].shape[0] for pr in pre_problems}) == 1:
        pre_out = packed_group(pre_problems, pre_relu=True)
    else:  # fallback (not hit for this architecture): run each separately
        pre_out = [packed_group([pr], pre_relu=True)[0] for pr in pre_problems]

    states, oi = [], 0
    for kind, shp in pre_meta:
        if kind == "single":
            states.append(pre_out[oi].reshape(shp))
            oi += 1
        else:
            nh, ho, wo, half = shp
            states.append(jnp.concatenate(
                [pre_out[oi].reshape(nh, ho, wo, half),
                 pre_out[oi + 1].reshape(nh, ho, wo, half)], axis=-1))
            oi += 2

    # ---- all FactorizedReduce ops of the cell: ONE packed pallas_call ----
    ops, indices = cell["ops"], cell["indices"]
    fr_pos = [j for j, (k, _) in enumerate(ops) if k == "fact_reduce"]
    fr_out = {}
    if fr_pos:
        fr_problems, metas = [], []
        for j in fr_pos:
            x = states[indices[j]]          # stride-2 ops always read state 0 / 1
            xe2, xo2, sub_shape = sub(x)
            fr_problems += _fr_problems(ops[j][1], xe2, xo2)
            metas.append((j, sub_shape, ops[j][1]["w1"].shape[0]))
        if len({pr[0].shape[0] for pr in fr_problems}) == 1:
            fouts = packed_group(fr_problems, pre_relu=True)
        else:
            fouts = [packed_group([pr], pre_relu=True)[0] for pr in fr_problems]
        for t, (j, sub_shape, half) in enumerate(metas):
            nh, ho, wo, _ = sub_shape
            fr_out[j] = jnp.concatenate(
                [fouts[2 * t].reshape(nh, ho, wo, half),
                 fouts[2 * t + 1].reshape(nh, ho, wo, half)], axis=-1)

    def apply_op(j):
        kind, _ = ops[j]
        if kind == "identity":
            return states[indices[j]]
        return fr_out[j]

    for i in range(cell["steps"]):
        # TODO(synk): drop_path is a training-only stochastic regularizer
        # (drop_path_prob == 0 / eval mode semantics here), so it is a no-op.
        states.append(apply_op(2 * i) + apply_op(2 * i + 1))
    return jnp.concatenate([states[i] for i in cell["concat"]], axis=-1)


def global_heads_forward(params, x_nhwc):
    gp = params["global_conv"]
    c_out, c_in, kh, kw = gp["w"].shape
    n = x_nhwc.shape[0]
    patches, ho, wo = _im2col(x_nhwc, kh, kw, 1, 0)
    wg = jnp.transpose(gp["w"], (2, 3, 1, 0)).reshape(kh * kw * c_in, c_out)
    # three 1x1 heads concatenated along output channels: [face | bbox(3) | rip]
    wh = jnp.concatenate([params["cls_face"]["w"], params["bbox"]["w"],
                          params["cls_rip"]["w"]], axis=0).reshape(5, c_out).T
    bh = jnp.concatenate([params["cls_face"]["b"], params["bbox"]["b"],
                          params["cls_rip"]["b"]])
    heads = global_heads_matmul(patches, wg, gp["b"], wh, bh).reshape(n, ho, wo, 5)
    return heads[..., 0:1], heads[..., 1:4], heads[..., 4:5]


def network_forward(params, x_nchw):
    x = jnp.transpose(x_nchw, (0, 2, 3, 1)).astype(ACT_DTYPE)   # NCHW -> NHWC, bf16
    s0 = s1 = stem_forward(params["stem"], x)
    for cell in params["cells"]:
        s0, s1 = s1, cell_forward(cell, s0, s1)
    face, bbox, rip = global_heads_forward(params, s1)
    to_nchw = lambda t: jnp.transpose(t, (0, 3, 1, 2))
    return to_nchw(face), to_nchw(bbox), to_nchw(rip)


# ---------------------------------------------------------------------------
if __name__ == "__main__":
    C, layers = 4, 3                                # small config
    pg = ParamGen(0)
    params = build_network_params(pg, C, layers, GENOTYPE)

    x = jax.random.normal(jax.random.PRNGKey(0), (2, 3, 32, 32), jnp.float32)

    fwd = jax.jit(lambda inp: network_forward(params, inp))
    face, bbox, rip = jax.block_until_ready(fwd(x))

    # input 32x32 -> cells give (2, 32, 8, 8) -> 6x6 global conv -> (2, 32, 3, 3)
    assert face.shape == (2, 1, 3, 3), face.shape
    assert bbox.shape == (2, 3, 3, 3), bbox.shape
    assert rip.shape == (2, 1, 3, 3), rip.shape
    assert bool(jnp.all(jnp.isfinite(face)))
    assert bool(jnp.all(jnp.isfinite(bbox)))
    assert bool(jnp.all(jnp.isfinite(rip)))
    assert bool(jnp.all((face >= 0) & (face <= 1)))
    assert bool(jnp.all((rip >= 0) & (rip <= 1)))
    print("KERNEL_OK")
</pallas_src>

<mosaic_0001>
module attributes {stable_mosaic.version = 11 : i64} {
  func.func @kernel(%arg0: i32, %arg1: memref<1024x27xbf16, #tpu.memory_space<vmem>>, %arg2: memref<27x12xbf16, #tpu.memory_space<vmem>>, %arg3: memref<1x12xf32, #tpu.memory_space<vmem>>, %arg4: memref<1024x12xbf16, #tpu.memory_space<vmem>>) attributes {dimension_semantics = [#tpu.dimension_semantics<parallel>], iteration_bounds = array<i64: 2>, scalar_prefetch = 0 : i64, scratch_operands = 0 : i64, tpu.core_type = #tpu.core_type<tc>, window_params = [{transform_indices = @transform_0, window_bounds = array<i64: 1024, 27>}, {pipeline_mode = #tpu.pipeline_mode<synchronous>, transform_indices = @transform_1, window_bounds = array<i64: 27, 12>}, {pipeline_mode = #tpu.pipeline_mode<synchronous>, transform_indices = @transform_2, window_bounds = array<i64: 1, 12>}, {transform_indices = @transform_3, window_bounds = array<i64: 1024, 12>}]} {
    %c0 = arith.constant 0 : index
    %c0_0 = arith.constant 0 : index
    %0 = vector.load %arg1[%c0, %c0_0] : memref<1024x27xbf16, #tpu.memory_space<vmem>>, vector<1024x27xbf16>
    %c0_1 = arith.constant 0 : index
    %c0_2 = arith.constant 0 : index
    %1 = vector.load %arg2[%c0_1, %c0_2] : memref<27x12xbf16, #tpu.memory_space<vmem>>, vector<27x12xbf16>
    %cst = arith.constant dense<0.000000e+00> : vector<1024x12xf32>
    %2 = tpu.matmul %0, %1, %cst {dimension_numbers = #tpu.dot_dimension_numbers<[1], [0], [0], [1], [0, 0, 1, 1], [], []>} : vector<1024x27xbf16>, vector<27x12xbf16>, vector<1024x12xf32> -> vector<1024x12xf32>
    %c0_3 = arith.constant 0 : index
    %c0_4 = arith.constant 0 : index
    %3 = vector.load %arg3[%c0_3, %c0_4] : memref<1x12xf32, #tpu.memory_space<vmem>>, vector<1x12xf32>
    %4 = vector.broadcast %3 : vector<1x12xf32> to vector<1024x12xf32>
    %5 = arith.addf %2, %4 : vector<1024x12xf32>
    %6 = arith.truncf %5 : vector<1024x12xf32> to vector<1024x12xbf16>
    %c0_5 = arith.constant 0 : index
    %c0_6 = arith.constant 0 : index
    %7 = vector.load %arg4[%c0_5, %c0_6] : memref<1024x12xbf16, #tpu.memory_space<vmem>>, vector<1024x12xbf16>
    tpu.vector_store %arg4[%c0_5, %c0_6], %6 {strides = array<i32>} : memref<1024x12xbf16, #tpu.memory_space<vmem>>, vector<1024x12xbf16>,
    return
  }
  func.func @transform_0(%arg0: i32) -> (i32, i32) {
    %c0_i32 = arith.constant 0 : i32
    %c0_i32_0 = arith.constant 0 : i32
    return %arg0, %c0_i32 : i32, i32
  }
  func.func @transform_1(%arg0: i32) -> (i32, i32) {
    %c0_i32 = arith.constant 0 : i32
    %c0_i32_0 = arith.constant 0 : i32
    %c0_i32_1 = arith.constant 0 : i32
    return %c0_i32, %c0_i32_0 : i32, i32
  }
  func.func @transform_2(%arg0: i32) -> (i32, i32) {
    %c0_i32 = arith.constant 0 : i32
    %c0_i32_0 = arith.constant 0 : i32
    %c0_i32_1 = arith.constant 0 : i32
    return %c0_i32, %c0_i32_0 : i32, i32
  }
  func.func @transform_3(%arg0: i32) -> (i32, i32) {
    %c0_i32 = arith.constant 0 : i32
    %c0_i32_0 = arith.constant 0 : i32
    return %arg0, %c0_i32 : i32, i32
  }
}

module attributes {stable_mosaic.version = 11 : i64} {
  func.func @kernel(%arg0: i32, %arg1: memref<1024x12xbf16, #tpu.memory_space<vmem>>, %arg2: memref<12x8xbf16, #tpu.memory_space<vmem>>, %arg3: memref<1x8xf32, #tpu.memory_space<vmem>>, %arg4: memref<1024x8xbf16, #tpu.memory_space<vmem>>) attributes {dimension_semantics = [#tpu.dimension_semantics<parallel>], iteration_bounds = array<i64: 2>, scalar_prefetch = 0 : i64, scratch_operands = 0 : i64, tpu.core_type = #tpu.core_type<tc>, window_params = [{transform_indices = @transform_0, window_bounds = array<i64: 1024, 12>}, {pipeline_mode = #tpu.pipeline_mode<synchronous>, transform_indices = @transform_1, window_bounds = array<i64: 12, 8>}, {pipeline_mode = #tpu.pipeline_mode<synchronous>, transform_indices = @transform_2, window_bounds = array<i64: 1, 8>}, {transform_indices = @transform_3, window_bounds = array<i64: 1024, 8>}]} {
    %c0 = arith.constant 0 : index
    %c0_0 = arith.constant 0 : index
    %0 = vector.load %arg1[%c0, %c0_0] : memref<1024x12xbf16, #tpu.memory_space<vmem>>, vector<1024x12xbf16>
    %cst = arith.constant 0.000000e+00 : bf16
    %1 = vector.broadcast %cst : bf16 to vector<1024x12xbf16>
    %2 = arith.maximumf %0, %1 : vector<1024x12xbf16>
    %c0_1 = arith.constant 0 : index
    %c0_2 = arith.constant 0 : index
    %3 = vector.load %arg2[%c0_1, %c0_2] : memref<12x8xbf16, #tpu.memory_space<vmem>>, vector<12x8xbf16>
    %cst_3 = arith.constant dense<0.000000e+00> : vector<1024x8xf32>
    %4 = tpu.matmul %2, %3, %cst_3 {dimension_numbers = #tpu.dot_dimension_numbers<[1], [0], [0], [1], [0, 0, 1, 1], [], []>} : vector<1024x12xbf16>, vector<12x8xbf16>, vector<1024x8xf32> -> vector<1024x8xf32>
    %c0_4 = arith.constant 0 : index
    %c0_5 = arith.constant 0 : index
    %5 = vector.load %arg3[%c0_4, %c0_5] : memref<1x8xf32, #tpu.memory_space<vmem>>, vector<1x8xf32>
    %6 = vector.broadcast %5 : vector<1x8xf32> to vector<1024x8xf32>
    %7 = arith.addf %4, %6 : vector<1024x8xf32>
    %8 = arith.truncf %7 : vector<1024x8xf32> to vector<1024x8xbf16>
    %c0_6 = arith.constant 0 : index
    %c0_7 = arith.constant 0 : index
    %9 = vector.load %arg4[%c0_6, %c0_7] : memref<1024x8xbf16, #tpu.memory_space<vmem>>, vector<1024x8xbf16>
    tpu.vector_store %arg4[%c0_6, %c0_7], %8 {strides = array<i32>} : memref<1024x8xbf16, #tpu.memory_space<vmem>>, vector<1024x8xbf16>,
    return
  }
  func.func @transform_0(%arg0: i32) -> (i32, i32) {
    %c0_i32 = arith.constant 0 : i32
    %c0_i32_0 = arith.constant 0 : i32
    return %arg0, %c0_i32 : i32, i32
  }
  func.func @transform_1(%arg0: i32) -> (i32, i32) {
    %c0_i32 = arith.constant 0 : i32
    %c0_i32_0 = arith.constant 0 : i32
    %c0_i32_1 = arith.constant 0 : i32
    return %c0_i32, %c0_i32_0 : i32, i32
  }
  func.func @transform_2(%arg0: i32) -> (i32, i32) {
    %c0_i32 = arith.constant 0 : i32
    %c0_i32_0 = arith.constant 0 : i32
    %c0_i32_1 = arith.constant 0 : i32
    return %c0_i32, %c0_i32_0 : i32, i32
  }
  func.func @transform_3(%arg0: i32) -> (i32, i32) {
    %c0_i32 = arith.constant 0 : i32
    %c0_i32_0 = arith.constant 0 : i32
    return %arg0, %c0_i32 : i32, i32
  }
}

module attributes {stable_mosaic.version = 11 : i64} {
  func.func @kernel(%arg0: i32, %arg1: memref<1024x20xbf16, #tpu.memory_space<vmem>>, %arg2: memref<20x16xbf16, #tpu.memory_space<vmem>>, %arg3: memref<1x16xf32, #tpu.memory_space<vmem>>, %arg4: memref<1024x16xbf16, #tpu.memory_space<vmem>>) attributes {dimension_semantics = [#tpu.dimension_semantics<parallel>], iteration_bounds = array<i64: 2>, scalar_prefetch = 0 : i64, scratch_operands = 0 : i64, tpu.core_type = #tpu.core_type<tc>, window_params = [{transform_indices = @transform_0, window_bounds = array<i64: 1024, 20>}, {pipeline_mode = #tpu.pipeline_mode<synchronous>, transform_indices = @transform_1, window_bounds = array<i64: 20, 16>}, {pipeline_mode = #tpu.pipeline_mode<synchronous>, transform_indices = @transform_2, window_bounds = array<i64: 1, 16>}, {transform_indices = @transform_3, window_bounds = array<i64: 1024, 16>}]} {
    %c0 = arith.constant 0 : index
    %c0_0 = arith.constant 0 : index
    %0 = vector.load %arg1[%c0, %c0_0] : memref<1024x20xbf16, #tpu.memory_space<vmem>>, vector<1024x20xbf16>
    %cst = arith.constant 0.000000e+00 : bf16
    %1 = vector.broadcast %cst : bf16 to vector<1024x20xbf16>
    %2 = arith.maximumf %0, %1 : vector<1024x20xbf16>
    %c0_1 = arith.constant 0 : index
    %c0_2 = arith.constant 0 : index
    %3 = vector.load %arg2[%c0_1, %c0_2] : memref<20x16xbf16, #tpu.memory_space<vmem>>, vector<20x16xbf16>
    %cst_3 = arith.constant dense<0.000000e+00> : vector<1024x16xf32>
    %4 = tpu.matmul %2, %3, %cst_3 {dimension_numbers = #tpu.dot_dimension_numbers<[1], [0], [0], [1], [0, 0, 1, 1], [], []>} : vector<1024x20xbf16>, vector<20x16xbf16>, vector<1024x16xf32> -> vector<1024x16xf32>
    %c0_4 = arith.constant 0 : index
    %c0_5 = arith.constant 0 : index
    %5 = vector.load %arg3[%c0_4, %c0_5] : memref<1x16xf32, #tpu.memory_space<vmem>>, vector<1x16xf32>
    %6 = vector.broadcast %5 : vector<1x16xf32> to vector<1024x16xf32>
    %7 = arith.addf %4, %6 : vector<1024x16xf32>
    %8 = arith.truncf %7 : vector<1024x16xf32> to vector<1024x16xbf16>
    %c0_6 = arith.constant 0 : index
    %c0_7 = arith.constant 0 : index
    %9 = vector.load %arg4[%c0_6, %c0_7] : memref<1024x16xbf16, #tpu.memory_space<vmem>>, vector<1024x16xbf16>
    tpu.vector_store %arg4[%c0_6, %c0_7], %8 {strides = array<i32>} : memref<1024x16xbf16, #tpu.memory_space<vmem>>, vector<1024x16xbf16>,
    return
  }
  func.func @transform_0(%arg0: i32) -> (i32, i32) {
    %c0_i32 = arith.constant 0 : i32
    %c0_i32_0 = arith.constant 0 : i32
    return %arg0, %c0_i32 : i32, i32
  }
  func.func @transform_1(%arg0: i32) -> (i32, i32) {
    %c0_i32 = arith.constant 0 : i32
    %c0_i32_0 = arith.constant 0 : i32
    %c0_i32_1 = arith.constant 0 : i32
    return %c0_i32, %c0_i32_0 : i32, i32
  }
  func.func @transform_2(%arg0: i32) -> (i32, i32) {
    %c0_i32 = arith.constant 0 : i32
    %c0_i32_0 = arith.constant 0 : i32
    %c0_i32_1 = arith.constant 0 : i32
    return %c0_i32, %c0_i32_0 : i32, i32
  }
  func.func @transform_3(%arg0: i32) -> (i32, i32) {
    %c0_i32 = arith.constant 0 : i32
    %c0_i32_0 = arith.constant 0 : i32
    return %arg0, %c0_i32 : i32, i32
  }
}

module attributes {stable_mosaic.version = 11 : i64} {
  func.func @kernel(%arg0: i32, %arg1: memref<512x32xbf16, #tpu.memory_space<vmem>>, %arg2: memref<32x32xbf16, #tpu.memory_space<vmem>>, %arg3: memref<1x32xf32, #tpu.memory_space<vmem>>, %arg4: memref<512x32xbf16, #tpu.memory_space<vmem>>) attributes {dimension_semantics = [#tpu.dimension_semantics<parallel>], iteration_bounds = array<i64: 1>, scalar_prefetch = 0 : i64, scratch_operands = 0 : i64, tpu.core_type = #tpu.core_type<tc>, window_params = [{transform_indices = @transform_0, window_bounds = array<i64: 512, 32>}, {pipeline_mode = #tpu.pipeline_mode<synchronous>, transform_indices = @transform_1, window_bounds = array<i64: 32, 32>}, {pipeline_mode = #tpu.pipeline_mode<synchronous>, transform_indices = @transform_2, window_bounds = array<i64: 1, 32>}, {transform_indices = @transform_3, window_bounds = array<i64: 512, 32>}]} {
    %c0 = arith.constant 0 : index
    %c0_0 = arith.constant 0 : index
    %0 = vector.load %arg1[%c0, %c0_0] : memref<512x32xbf16, #tpu.memory_space<vmem>>, vector<512x32xbf16>
    %cst = arith.constant 0.000000e+00 : bf16
    %1 = vector.broadcast %cst : bf16 to vector<512x32xbf16>
    %2 = arith.maximumf %0, %1 : vector<512x32xbf16>
    %c0_1 = arith.constant 0 : index
    %c0_2 = arith.constant 0 : index
    %3 = vector.load %arg2[%c0_1, %c0_2] : memref<32x32xbf16, #tpu.memory_space<vmem>>, vector<32x32xbf16>
    %cst_3 = arith.constant dense<0.000000e+00> : vector<512x32xf32>
    %4 = tpu.matmul %2, %3, %cst_3 {dimension_numbers = #tpu.dot_dimension_numbers<[1], [0], [0], [1], [0, 0, 1, 1], [], []>} : vector<512x32xbf16>, vector<32x32xbf16>, vector<512x32xf32> -> vector<512x32xf32>
    %c0_4 = arith.constant 0 : index
    %c0_5 = arith.constant 0 : index
    %5 = vector.load %arg3[%c0_4, %c0_5] : memref<1x32xf32, #tpu.memory_space<vmem>>, vector<1x32xf32>
    %6 = vector.broadcast %5 : vector<1x32xf32> to vector<512x32xf32>
    %7 = arith.addf %4, %6 : vector<512x32xf32>
    %8 = arith.truncf %7 : vector<512x32xf32> to vector<512x32xbf16>
    %c0_6 = arith.constant 0 : index
    %c0_7 = arith.constant 0 : index
    %9 = vector.load %arg4[%c0_6, %c0_7] : memref<512x32xbf16, #tpu.memory_space<vmem>>, vector<512x32xbf16>
    tpu.vector_store %arg4[%c0_6, %c0_7], %8 {strides = array<i32>} : memref<512x32xbf16, #tpu.memory_space<vmem>>, vector<512x32xbf16>,
    return
  }
  func.func @transform_0(%arg0: i32) -> (i32, i32) {
    %c0_i32 = arith.constant 0 : i32
    %c0_i32_0 = arith.constant 0 : i32
    return %arg0, %c0_i32 : i32, i32
  }
  func.func @transform_1(%arg0: i32) -> (i32, i32) {
    %c0_i32 = arith.constant 0 : i32
    %c0_i32_0 = arith.constant 0 : i32
    %c0_i32_1 = arith.constant 0 : i32
    return %c0_i32, %c0_i32_0 : i32, i32
  }
  func.func @transform_2(%arg0: i32) -> (i32, i32) {
    %c0_i32 = arith.constant 0 : i32
    %c0_i32_0 = arith.constant 0 : i32
    %c0_i32_1 = arith.constant 0 : i32
    return %c0_i32, %c0_i32_0 : i32, i32
  }
  func.func @transform_3(%arg0: i32) -> (i32, i32) {
    %c0_i32 = arith.constant 0 : i32
    %c0_i32_0 = arith.constant 0 : i32
    return %arg0, %c0_i32 : i32, i32
  }
}

module attributes {stable_mosaic.version = 11 : i64} {
  func.func @kernel(%arg0: i32, %arg1: memref<128x64xbf16, #tpu.memory_space<vmem>>, %arg2: memref<64x64xbf16, #tpu.memory_space<vmem>>, %arg3: memref<1x64xf32, #tpu.memory_space<vmem>>, %arg4: memref<128x64xbf16, #tpu.memory_space<vmem>>) attributes {dimension_semantics = [#tpu.dimension_semantics<parallel>], iteration_bounds = array<i64: 1>, scalar_prefetch = 0 : i64, scratch_operands = 0 : i64, tpu.core_type = #tpu.core_type<tc>, window_params = [{transform_indices = @transform_0, window_bounds = array<i64: 128, 64>}, {pipeline_mode = #tpu.pipeline_mode<synchronous>, transform_indices = @transform_1, window_bounds = array<i64: 64, 64>}, {pipeline_mode = #tpu.pipeline_mode<synchronous>, transform_indices = @transform_2, window_bounds = array<i64: 1, 64>}, {transform_indices = @transform_3, window_bounds = array<i64: 128, 64>}]} {
    %c0 = arith.constant 0 : index
    %c0_0 = arith.constant 0 : index
    %0 = vector.load %arg1[%c0, %c0_0] : memref<128x64xbf16, #tpu.memory_space<vmem>>, vector<128x64xbf16>
    %cst = arith.constant 0.000000e+00 : bf16
    %1 = vector.broadcast %cst : bf16 to vector<128x64xbf16>
    %2 = arith.maximumf %0, %1 : vector<128x64xbf16>
    %c0_1 = arith.constant 0 : index
    %c0_2 = arith.constant 0 : index
    %3 = vector.load %arg2[%c0_1, %c0_2] : memref<64x64xbf16, #tpu.memory_space<vmem>>, vector<64x64xbf16>
    %cst_3 = arith.constant dense<0.000000e+00> : vector<128x64xf32>
    %4 = tpu.matmul %2, %3, %cst_3 {dimension_numbers = #tpu.dot_dimension_numbers<[1], [0], [0], [1], [0, 0, 1, 1], [], []>} : vector<128x64xbf16>, vector<64x64xbf16>, vector<128x64xf32> -> vector<128x64xf32>
    %c0_4 = arith.constant 0 : index
    %c0_5 = arith.constant 0 : index
    %5 = vector.load %arg3[%c0_4, %c0_5] : memref<1x64xf32, #tpu.memory_space<vmem>>, vector<1x64xf32>
    %6 = vector.broadcast %5 : vector<1x64xf32> to vector<128x64xf32>
    %7 = arith.addf %4, %6 : vector<128x64xf32>
    %8 = arith.truncf %7 : vector<128x64xf32> to vector<128x64xbf16>
    %c0_6 = arith.constant 0 : index
    %c0_7 = arith.constant 0 : index
    %9 = vector.load %arg4[%c0_6, %c0_7] : memref<128x64xbf16, #tpu.memory_space<vmem>>, vector<128x64xbf16>
    tpu.vector_store %arg4[%c0_6, %c0_7], %8 {strides = array<i32>} : memref<128x64xbf16, #tpu.memory_space<vmem>>, vector<128x64xbf16>,
    return
  }
  func.func @transform_0(%arg0: i32) -> (i32, i32) {
    %c0_i32 = arith.constant 0 : i32
    %c0_i32_0 = arith.constant 0 : i32
    return %arg0, %c0_i32 : i32, i32
  }
  func.func @transform_1(%arg0: i32) -> (i32, i32) {
    %c0_i32 = arith.constant 0 : i32
    %c0_i32_0 = arith.constant 0 : i32
    %c0_i32_1 = arith.constant 0 : i32
    return %c0_i32, %c0_i32_0 : i32, i32
  }
  func.func @transform_2(%arg0: i32) -> (i32, i32) {
    %c0_i32 = arith.constant 0 : i32
    %c0_i32_0 = arith.constant 0 : i32
    %c0_i32_1 = arith.constant 0 : i32
    return %c0_i32, %c0_i32_0 : i32, i32
  }
  func.func @transform_3(%arg0: i32) -> (i32, i32) {
    %c0_i32 = arith.constant 0 : i32
    %c0_i32_0 = arith.constant 0 : i32
    return %arg0, %c0_i32 : i32, i32
  }
}

module attributes {stable_mosaic.version = 11 : i64} {
  func.func @_global_heads_kernel(%arg0: i32, %arg1: memref<18x1152xbf16, #tpu.memory_space<vmem>>, %arg2: memref<1152x32xbf16, #tpu.memory_space<vmem>>, %arg3: memref<1x32xf32, #tpu.memory_space<vmem>>, %arg4: memref<32x5xbf16, #tpu.memory_space<vmem>>, %arg5: memref<1x5xf32, #tpu.memory_space<vmem>>, %arg6: memref<18x5xf32, #tpu.memory_space<vmem>>) attributes {dimension_semantics = [#tpu.dimension_semantics<arbitrary>], iteration_bounds = array<i64: 1>, scalar_prefetch = 0 : i64, scratch_operands = 0 : i64, tpu.core_type = #tpu.core_type<tc>, window_params = [{pipeline_mode = #tpu.pipeline_mode<synchronous>, transform_indices = @transform_0, window_bounds = array<i64: 18, 1152>}, {pipeline_mode = #tpu.pipeline_mode<synchronous>, transform_indices = @transform_1, window_bounds = array<i64: 1152, 32>}, {pipeline_mode = #tpu.pipeline_mode<synchronous>, transform_indices = @transform_2, window_bounds = array<i64: 1, 32>}, {pipeline_mode = #tpu.pipeline_mode<synchronous>, transform_indices = @transform_3, window_bounds = array<i64: 32, 5>}, {pipeline_mode = #tpu.pipeline_mode<synchronous>, transform_indices = @transform_4, window_bounds = array<i64: 1, 5>}, {pipeline_mode = #tpu.pipeline_mode<synchronous>, transform_indices = @transform_5, window_bounds = array<i64: 18, 5>}]} {
    %c0 = arith.constant 0 : index
    %c0_0 = arith.constant 0 : index
    %0 = vector.load %arg1[%c0, %c0_0] : memref<18x1152xbf16, #tpu.memory_space<vmem>>, vector<18x1152xbf16>
    %c0_1 = arith.constant 0 : index
    %c0_2 = arith.constant 0 : index
    %1 = vector.load %arg2[%c0_1, %c0_2] : memref<1152x32xbf16, #tpu.memory_space<vmem>>, vector<1152x32xbf16>
    %cst = arith.constant dense<0.000000e+00> : vector<18x32xf32>
    %2 = tpu.matmul %0, %1, %cst {dimension_numbers = #tpu.dot_dimension_numbers<[1], [0], [0], [1], [0, 0, 1, 1], [], []>} : vector<18x1152xbf16>, vector<1152x32xbf16>, vector<18x32xf32> -> vector<18x32xf32>
    %c0_3 = arith.constant 0 : index
    %c0_4 = arith.constant 0 : index
    %3 = vector.load %arg3[%c0_3, %c0_4] : memref<1x32xf32, #tpu.memory_space<vmem>>, vector<1x32xf32>
    %4 = vector.broadcast %3 : vector<1x32xf32> to vector<18x32xf32>
    %5 = arith.addf %2, %4 : vector<18x32xf32>
    %6 = arith.truncf %5 : vector<18x32xf32> to vector<18x32xbf16>
    %c0_5 = arith.constant 0 : index
    %c0_6 = arith.constant 0 : index
    %7 = vector.load %arg4[%c0_5, %c0_6] : memref<32x5xbf16, #tpu.memory_space<vmem>>, vector<32x5xbf16>
    %cst_7 = arith.constant dense<0.000000e+00> : vector<18x5xf32>
    %8 = tpu.matmul %6, %7, %cst_7 {dimension_numbers = #tpu.dot_dimension_numbers<[1], [0], [0], [1], [0, 0, 1, 1], [], []>} : vector<18x32xbf16>, vector<32x5xbf16>, vector<18x5xf32> -> vector<18x5xf32>
    %c0_8 = arith.constant 0 : index
    %c0_9 = arith.constant 0 : index
    %9 = vector.load %arg5[%c0_8, %c0_9] : memref<1x5xf32, #tpu.memory_space<vmem>>, vector<1x5xf32>
    %10 = vector.broadcast %9 : vector<1x5xf32> to vector<18x5xf32>
    %11 = arith.addf %8, %10 : vector<18x5xf32>
    %12 = tpu.iota {dimensions = array<i32: 1>} : vector<18x5xi32>
    %c0_i32 = arith.constant 0 : i32
    %13 = vector.broadcast %c0_i32 : i32 to vector<18x5xi32>
    %14 = arith.cmpi eq, %12, %13 : vector<18x5xi32>
    %c4_i32 = arith.constant 4 : i32
    %15 = vector.broadcast %c4_i32 : i32 to vector<18x5xi32>
    %16 = arith.cmpi eq, %12, %15 : vector<18x5xi32>
    %17 = arith.ori %14, %16 : vector<18x5xi1>
    %18 = arith.negf %11 : vector<18x5xf32>
    %19 = math.exp %18 : vector<18x5xf32>
    %cst_10 = arith.constant 1.000000e+00 : f32
    %20 = vector.broadcast %cst_10 : f32 to vector<18x5xf32>
    %21 = arith.addf %20, %19 : vector<18x5xf32>
    %22 = arith.divf %20, %21 : vector<18x5xf32>
    %23 = arith.select %17, %22, %11 : vector<18x5xi1>, vector<18x5xf32>
    %c0_11 = arith.constant 0 : index
    %c0_12 = arith.constant 0 : index
    %24 = vector.load %arg6[%c0_11, %c0_12] : memref<18x5xf32, #tpu.memory_space<vmem>>, vector<18x5xf32>
    tpu.vector_store %arg6[%c0_11, %c0_12], %23 {strides = array<i32>} : memref<18x5xf32, #tpu.memory_space<vmem>>, vector<18x5xf32>,
    return
  }
  func.func @transform_0(%arg0: i32) -> (i32, i32) {
    %c0_i32 = arith.constant 0 : i32
    %c0_i32_0 = arith.constant 0 : i32
    %c0_i32_1 = arith.constant 0 : i32
    return %c0_i32, %c0_i32_0 : i32, i32
  }
  func.func @transform_1(%arg0: i32) -> (i32, i32) {
    %c0_i32 = arith.constant 0 : i32
    %c0_i32_0 = arith.constant 0 : i32
    %c0_i32_1 = arith.constant 0 : i32
    return %c0_i32, %c0_i32_0 : i32, i32
  }
  func.func @transform_2(%arg0: i32) -> (i32, i32) {
    %c0_i32 = arith.constant 0 : i32
    %c0_i32_0 = arith.constant 0 : i32
    %c0_i32_1 = arith.constant 0 : i32
    return %c0_i32, %c0_i32_0 : i32, i32
  }
  func.func @transform_3(%arg0: i32) -> (i32, i32) {
    %c0_i32 = arith.constant 0 : i32
    %c0_i32_0 = arith.constant 0 : i32
    %c0_i32_1 = arith.constant 0 : i32
    return %c0_i32, %c0_i32_0 : i32, i32
  }
  func.func @transform_4(%arg0: i32) -> (i32, i32) {
    %c0_i32 = arith.constant 0 : i32
    %c0_i32_0 = arith.constant 0 : i32
    %c0_i32_1 = arith.constant 0 : i32
    return %c0_i32, %c0_i32_0 : i32, i32
  }
  func.func @transform_5(%arg0: i32) -> (i32, i32) {
    %c0_i32 = arith.constant 0 : i32
    %c0_i32_0 = arith.constant 0 : i32
    %c0_i32_1 = arith.constant 0 : i32
    return %c0_i32, %c0_i32_0 : i32, i32
  }
}

</mosaic_0001>

<llo_original>
// kernel: _lambda_.8
$region0: #{_lambda_.8}
  #allocation0 [shape = 'u32[]', space=smem, size = 0x4, offset = 0x4, fixed_abs, tag = 'smem constant byte address 0x4 - core index']
  #allocation1 [shape = 'u32[72,128]{1,0:T(1,128)}', space=vmem, size = 0x9000, scoped, tag = 'internal scratch']
  %s0 = inlined_call_operand.vmem [shape: bf16[2048,12], index: 0, kind: input, shape index: {}]
  %s1 = inlined_call_operand.vmem [shape: bf16[12,8], index: 1, kind: input, shape index: {}]
  %s2 = inlined_call_operand.vmem [shape: f32[1,8], index: 2, kind: input, shape index: {}]
  %s3 = inlined_call_operand.vmem [shape: bf16[2048,8], index: 3, kind: output, shape index: {}]
  %s4 = sld [smem:[#allocation0]]
  $region45: #{_lambda_.8} parent=0
    _
  %s6 = ssub.s32 1, %s4
  %s7 = scalar_select 0, %s6, %s4
  loop: start=0, step=1, limit=4
  $region2: #{_lambda_.8} parent=0 // loop_pre_header
    _
  $region3: #{_lambda_.8} parent=0 // loop_header
    %s9 = sphi 0, %s13
    %p10 = scmp.ge.s32.totalorder %s9, 4
    %s19 = sphi 0, %s21
    %s22 = sphi 0, %s19
    %s23 = sphi 0, %s22
    %s39 = sphi 0, %s23
    %s43 = sphi 0, %s43
    %s45 = sphi 0, %s43
    %s46 = sphi 0, %s45
    %s60 = sphi 0, %s46
    %s64 = sphi 0, %s64
    %s66 = sphi 0, %s64
    %s67 = sphi 0, %s66
    %s81 = sphi 0, %s67
    %s87 = sphi 0, %s89
    %s90 = sphi 0, %s87
    %s91 = sphi 0, %s90
    %s107 = sphi 0, %s91
  $region4: #{_lambda_.8} parent=0 // loop_header_branch
    %12 = sbr.rel (%p10) target = $region8
  $region5: #{_lambda_.8} parent=0 // loop_body
    %s14 = ssub.s32 %s9, 1
    %s15 = ssub.s32 %s9, 2
    %s16 = sadd.s32 %s9, 1
    %s17 = ssub.s32 %s9, %s16
    %p18 = scmp.eq.s32.totalorder %s17, 0
    %s20 = sadd.s32 %s19, 1
    %s21 = scalar_select %p18, %s19, %s20
    %p24 = pneg %p18
    %p25 = scmp.eq.s32.totalorder %s9, 1
    %p26 = por %p24, %p25
    %p27 = scmp.ne.s32.totalorder %s19, %s22
    %p28 = scmp.eq.s32.totalorder %s9, 0
    %p29 = por %p27, %p28
    %p30 = scmp.ne.s32.totalorder %s19, %s22
    %p31 = scmp.eq.s32.totalorder %s14, 1
    %p32 = por %p30, %p31
    %p33 = scmp.ne.s32.totalorder %s22, %s23
    %p34 = scmp.eq.s32.totalorder %s14, 0
    %p35 = por %p33, %p34
    %p36 = scmp.ne.s32.totalorder %s22, %s23
    %p37 = scmp.eq.s32.totalorder %s15, 1
    %p38 = por %p36, %p37
    %p40 = scmp.ne.s32.totalorder %s23, %s39
    %p41 = scmp.eq.s32.totalorder %s15, 0
    %p42 = por %p40, %p41
    %s44 = sadd.s32 %s43, 1
    %p47 = scmp.eq.s32.totalorder %s9, 1
    %p48 = scmp.ne.s32.totalorder %s43, %s45
    %p49 = scmp.eq.s32.totalorder %s9, 0
    %p50 = por %p48, %p49
    %p51 = scmp.ne.s32.totalorder %s43, %s45
    %p52 = scmp.eq.s32.totalorder %s14, 1
    %p53 = por %p51, %p52
    %p54 = scmp.ne.s32.totalorder %s45, %s46
    %p55 = scmp.eq.s32.totalorder %s14, 0
    %p56 = por %p54, %p55
    %p57 = scmp.ne.s32.totalorder %s45, %s46
    %p58 = scmp.eq.s32.totalorder %s15, 1
    %p59 = por %p57, %p58
    %p61 = scmp.ne.s32.totalorder %s46, %s60
    %p62 = scmp.eq.s32.totalorder %s15, 0
    %p63 = por %p61, %p62
    %s65 = sadd.s32 %s64, 1
    %p68 = scmp.eq.s32.totalorder %s9, 1
    %p69 = scmp.ne.s32.totalorder %s64, %s66
    %p70 = scmp.eq.s32.totalorder %s9, 0
    %p71 = por %p69, %p70
    %p72 = scmp.ne.s32.totalorder %s64, %s66
    %p73 = scmp.eq.s32.totalorder %s14, 1
    %p74 = por %p72, %p73
    %p75 = scmp.ne.s32.totalorder %s66, %s67
    %p76 = scmp.eq.s32.totalorder %s14, 0
    %p77 = por %p75, %p76
    %p78 = scmp.ne.s32.totalorder %s66, %s67
    %p79 = scmp.eq.s32.totalorder %s15, 1
    %p80 = por %p78, %p79
    %p82 = scmp.ne.s32.totalorder %s67, %s81
    %p83 = scmp.eq.s32.totalorder %s15, 0
    %p84 = por %p82, %p83
    %s85 = ssub.s32 %s9, %s16
    %p86 = scmp.eq.s32.totalorder %s85, 0
    %s88 = sadd.s32 %s87, 1
    %s89 = scalar_select %p86, %s87, %s88
    %p92 = pneg %p86
    %p93 = scmp.eq.s32.totalorder %s9, 1
    %p94 = por %p92, %p93
    %p95 = scmp.ne.s32.totalorder %s87, %s90
    %p96 = scmp.eq.s32.totalorder %s9, 0
    %p97 = por %p95, %p96
    %p98 = scmp.ne.s32.totalorder %s87, %s90
    %p99 = scmp.eq.s32.totalorder %s14, 1
    %p100 = por %p98, %p99
    %p101 = scmp.ne.s32.totalorder %s90, %s91
    %p102 = scmp.eq.s32.totalorder %s14, 0
    %p103 = por %p101, %p102
    %p104 = scmp.ne.s32.totalorder %s90, %s91
    %p105 = scmp.eq.s32.totalorder %s15, 1
    %p106 = por %p104, %p105
    %p108 = scmp.ne.s32.totalorder %s91, %s107
    %p109 = scmp.eq.s32.totalorder %s15, 0
    %p110 = por %p108, %p109
    %p111 = scmp.le.s32.totalorder 1, %s9
    %p112 = scmp.lt.s32.totalorder %s9, 3
    %p113 = pnand %p111, %p112
    %p114 = pneg %p113
    // Predicated region
    $region9: #{_lambda_.8} parent=5 // pred_check
      _
    $region10: #{_lambda_.8} parent=5 // pred_check_branch
      %116 = sbr.rel (%p113) target = $region12
    $region11: #{_lambda_.8} parent=5 // pred_region
      %s117 = ssub.s32 %s9, 1
      // Predicated region
      $region13: #{_lambda_.8} parent=11 // pred_check
        %p118 = pneg %p56
      $region14: #{_lambda_.8} parent=11 // pred_check_branch
        %120 = sbr.rel (%p118) target = $region16
      $region15: #{_lambda_.8} parent=11 // pred_region
        _
      $region16: #{_lambda_.8} parent=11 // pred_fallthru
        _
      // Predicated region
      $region17: #{_lambda_.8} parent=11 // pred_check
        %p121 = pneg %p77
      $region18: #{_lambda_.8} parent=11 // pred_check_branch
        %123 = sbr.rel (%p121) target = $region20
      $region19: #{_lambda_.8} parent=11 // pred_region
        _
      $region20: #{_lambda_.8} parent=11 // pred_fallthru
        _
    $region12: #{_lambda_.8} parent=5 // pred_fallthru
      _
    %p124 = scmp.lt.s32.totalorder %s9, 2
    // Predicated region
    $region21: #{_lambda_.8} parent=5 // pred_check
      %p125 = pneg %p124
    $region22: #{_lambda_.8} parent=5 // pred_check_branch
      %127 = sbr.rel (%p125) target = $region24
    $region23: #{_lambda_.8} parent=5 // pred_region
      // Predicated region
      $region25: #{_lambda_.8} parent=23 // pred_check
        %p128 = pneg %p29
      $region26: #{_lambda_.8} parent=23 // pred_check_branch
        %130 = sbr.rel (%p128) target = $region28
      $region27: #{_lambda_.8} parent=23 // pred_region
        %s131 = smul.u32 128, %s9
        %p132 = scmp.lt.s32.totalorder %s131, 255
        %s133 = scalar_select %p132, %s131, 255
        %s134 = smul.addr %s133, 4
        %s135 = scalar_lea.vmem %s0, %s134
        %s136 = smul.u32 128, %s9
      $region28: #{_lambda_.8} parent=23 // pred_fallthru
        _
    $region24: #{_lambda_.8} parent=5 // pred_fallthru
      _
    %p137 = scmp.le.s32.totalorder 1, %s9
    %p138 = scmp.lt.s32.totalorder %s9, 3
    %p139 = pnand %p137, %p138
    %p140 = pneg %p139
    // Predicated region
    $region29: #{_lambda_.8} parent=5 // pred_check
      _
    $region30: #{_lambda_.8} parent=5 // pred_check_branch
      %142 = sbr.rel (%p139) target = $region32
    $region31: #{_lambda_.8} parent=5 // pred_region
      %s143 = ssub.s32 %s9, 1
      %s144 = smul.u32 128, %s14
      %p145 = scmp.lt.s32.totalorder %s144, 255
      %s146 = scalar_select %p145, %s144, 255
      %s147 = smul.addr %s146, 4
      %s148 = scalar_lea.vmem %s0, %s147
      %p149 = pneg %p35
      %p150 = pneg %p32
      %p151 = pneg %p56
      %p152 = pneg %p53
      %p153 = pneg %p77
      %p154 = pneg %p74
      %p155 = pneg %p103
      %p156 = pneg %p100
      %s157 = smul.u32 128, %s14
      %p158 = scmp.lt.s32.totalorder %s157, 255
      %s159 = scalar_select %p158, %s157, 255
      %s160 = smul.addr %s159, 4
      %s161 = scalar_lea.vmem %s3, %s160
      %s162 = smul.u32 128, %s14
      %p163 = scmp.lt.s32.totalorder %s162, 255
      %s164 = scalar_select %p163, %s162, 255
      %s165 = smul.addr %s164, 4
      %s166 = scalar_lea.vmem %s0, %s165
      %s167 = smul.u32 128, %s14
      %s168 = smul.u32 128, %s14
      %p169 = scmp.lt.s32.totalorder %s168, 255
      %s170 = scalar_select %p169, %s168, 255
      %s171 = smul.addr %s170, 4
      %s172 = scalar_lea.vmem %s3, %s171
      %s173 = smul.u32 128, %s14
      %v175 = vld [vmem:[%s166] sm:$0xf]
      %v176 = vld [vmem:[%s166 + $0x4] sm:$0xf]
      %v177 = vld [vmem:[%s166 + $0x8] sm:$0xf]
      %v178 = vld [vmem:[%s166 + $0xc] sm:$0xf]
      %v179 = vld [vmem:[%s166 + $0x10] sm:$0xf]
      %v180 = vld [vmem:[%s166 + $0x14] sm:$0xf]
      %v181 = vld [vmem:[%s166 + $0x18] sm:$0xf]
      %v182 = vld [vmem:[%s166 + $0x1c] sm:$0xf]
      %v183 = vld [vmem:[%s166 + $0x20] sm:$0xf]
      %v184 = vld [vmem:[%s166 + $0x24] sm:$0xf]
      %v185 = vld [vmem:[%s166 + $0x28] sm:$0xf]
      %v186 = vld [vmem:[%s166 + $0x2c] sm:$0xf]
      %v187 = vld [vmem:[%s166 + $0x30] sm:$0xf]
      %v188 = vld [vmem:[%s166 + $0x34] sm:$0xf]
      %v189 = vld [vmem:[%s166 + $0x38] sm:$0xf]
      %v190 = vld [vmem:[%s166 + $0x3c] sm:$0xf]
      %v191 = vld [vmem:[%s166 + $0x40] sm:$0xf]
      %v192 = vld [vmem:[%s166 + $0x44] sm:$0xf]
      %v193 = vld [vmem:[%s166 + $0x48] sm:$0xf]
      %v194 = vld [vmem:[%s166 + $0x4c] sm:$0xf]
      %v195 = vld [vmem:[%s166 + $0x50] sm:$0xf]
      %v196 = vld [vmem:[%s166 + $0x54] sm:$0xf]
      %v197 = vld [vmem:[%s166 + $0x58] sm:$0xf]
      %v198 = vld [vmem:[%s166 + $0x5c] sm:$0xf]
      %v199 = vld [vmem:[%s166 + $0x60] sm:$0xf]
      %v200 = vld [vmem:[%s166 + $0x64] sm:$0xf]
      %v201 = vld [vmem:[%s166 + $0x68] sm:$0xf]
      %v202 = vld [vmem:[%s166 + $0x6c] sm:$0xf]
      %v203 = vld [vmem:[%s166 + $0x70] sm:$0xf]
      %v204 = vld [vmem:[%s166 + $0x74] sm:$0xf]
      %v205 = vld [vmem:[%s166 + $0x78] sm:$0xf]
      %v206 = vld [vmem:[%s166 + $0x7c] sm:$0xf]
      %v207 = vld [vmem:[%s166 + $0x80] sm:$0xf]
      %v208 = vld [vmem:[%s166 + $0x84] sm:$0xf]
      %v209 = vld [vmem:[%s166 + $0x88] sm:$0xf]
      %v210 = vld [vmem:[%s166 + $0x8c] sm:$0xf]
      %v211 = vld [vmem:[%s166 + $0x90] sm:$0xf]
      %v212 = vld [vmem:[%s166 + $0x94] sm:$0xf]
      %v213 = vld [vmem:[%s166 + $0x98] sm:$0xf]
      %v214 = vld [vmem:[%s166 + $0x9c] sm:$0xf]
      %v215 = vld [vmem:[%s166 + $0xa0] sm:$0xf]
      %v216 = vld [vmem:[%s166 + $0xa4] sm:$0xf]
      %v217 = vld [vmem:[%s166 + $0xa8] sm:$0xf]
      %v218 = vld [vmem:[%s166 + $0xac] sm:$0xf]
      %v219 = vld [vmem:[%s166 + $0xb0] sm:$0xf]
      %v220 = vld [vmem:[%s166 + $0xb4] sm:$0xf]
      %v221 = vld [vmem:[%s166 + $0xb8] sm:$0xf]
      %v222 = vld [vmem:[%s166 + $0xbc] sm:$0xf]
      %v223 = vld [vmem:[%s166 + $0xc0] sm:$0xf]
      %v224 = vld [vmem:[%s166 + $0xc4] sm:$0xf]
      %v225 = vld [vmem:[%s166 + $0xc8] sm:$0xf]
      %v226 = vld [vmem:[%s166 + $0xcc] sm:$0xf]
      %v227 = vld [vmem:[%s166 + $0xd0] sm:$0xf]
      %v228 = vld [vmem:[%s166 + $0xd4] sm:$0xf]
      %v229 = vld [vmem:[%s166 + $0xd8] sm:$0xf]
      %v230 = vld [vmem:[%s166 + $0xdc] sm:$0xf]
      %v231 = vld [vmem:[%s166 + $0xe0] sm:$0xf]
      %v232 = vld [vmem:[%s166 + $0xe4] sm:$0xf]
      %v233 = vld [vmem:[%s166 + $0xe8] sm:$0xf]
      %v234 = vld [vmem:[%s166 + $0xec] sm:$0xf]
      %v235 = vld [vmem:[%s166 + $0xf0] sm:$0xf]
      %v236 = vld [vmem:[%s166 + $0xf4] sm:$0xf]
      %v237 = vld [vmem:[%s166 + $0xf8] sm:$0xf]
      %v238 = vld [vmem:[%s166 + $0xfc] sm:$0xf]
      %v239 = vld [vmem:[%s166 + $0x100] sm:$0xf]
      %v240 = vld [vmem:[%s166 + $0x104] sm:$0xf]
      %v241 = vld [vmem:[%s166 + $0x108] sm:$0xf]
      %v242 = vld [vmem:[%s166 + $0x10c] sm:$0xf]
      %v243 = vld [vmem:[%s166 + $0x110] sm:$0xf]
      %v244 = vld [vmem:[%s166 + $0x114] sm:$0xf]
      %v245 = vld [vmem:[%s166 + $0x118] sm:$0xf]
      %v246 = vld [vmem:[%s166 + $0x11c] sm:$0xf]
      %v247 = vld [vmem:[%s166 + $0x120] sm:$0xf]
      %v248 = vld [vmem:[%s166 + $0x124] sm:$0xf]
      %v249 = vld [vmem:[%s166 + $0x128] sm:$0xf]
      %v250 = vld [vmem:[%s166 + $0x12c] sm:$0xf]
      %v251 = vld [vmem:[%s166 + $0x130] sm:$0xf]
      %v252 = vld [vmem:[%s166 + $0x134] sm:$0xf]
      %v253 = vld [vmem:[%s166 + $0x138] sm:$0xf]
      %v254 = vld [vmem:[%s166 + $0x13c] sm:$0xf]
      %v255 = vld [vmem:[%s166 + $0x140] sm:$0xf]
      %v256 = vld [vmem:[%s166 + $0x144] sm:$0xf]
      %v257 = vld [vmem:[%s166 + $0x148] sm:$0xf]
      %v258 = vld [vmem:[%s166 + $0x14c] sm:$0xf]
      %v259 = vld [vmem:[%s166 + $0x150] sm:$0xf]
      %v260 = vld [vmem:[%s166 + $0x154] sm:$0xf]
      %v261 = vld [vmem:[%s166 + $0x158] sm:$0xf]
      %v262 = vld [vmem:[%s166 + $0x15c] sm:$0xf]
      %v263 = vld [vmem:[%s166 + $0x160] sm:$0xf]
      %v264 = vld [vmem:[%s166 + $0x164] sm:$0xf]
      %v265 = vld [vmem:[%s166 + $0x168] sm:$0xf]
      %v266 = vld [vmem:[%s166 + $0x16c] sm:$0xf]
      %v267 = vld [vmem:[%s166 + $0x170] sm:$0xf]
      %v268 = vld [vmem:[%s166 + $0x174] sm:$0xf]
      %v269 = vld [vmem:[%s166 + $0x178] sm:$0xf]
      %v270 = vld [vmem:[%s166 + $0x17c] sm:$0xf]
      %v271 = vld [vmem:[%s166 + $0x180] sm:$0xf]
      %v272 = vld [vmem:[%s166 + $0x184] sm:$0xf]
      %v273 = vld [vmem:[%s166 + $0x188] sm:$0xf]
      %v274 = vld [vmem:[%s166 + $0x18c] sm:$0xf]
      %v275 = vld [vmem:[%s166 + $0x190] sm:$0xf]
      %v276 = vld [vmem:[%s166 + $0x194] sm:$0xf]
      %v277 = vld [vmem:[%s166 + $0x198] sm:$0xf]
      %v278 = vld [vmem:[%s166 + $0x19c] sm:$0xf]
      %v279 = vld [vmem:[%s166 + $0x1a0] sm:$0xf]
      %v280 = vld [vmem:[%s166 + $0x1a4] sm:$0xf]
      %v281 = vld [vmem:[%s166 + $0x1a8] sm:$0xf]
      %v282 = vld [vmem:[%s166 + $0x1ac] sm:$0xf]
      %v283 = vld [vmem:[%s166 + $0x1b0] sm:$0xf]
      %v284 = vld [vmem:[%s166 + $0x1b4] sm:$0xf]
      %v285 = vld [vmem:[%s166 + $0x1b8] sm:$0xf]
      %v286 = vld [vmem:[%s166 + $0x1bc] sm:$0xf]
      %v287 = vld [vmem:[%s166 + $0x1c0] sm:$0xf]
      %v288 = vld [vmem:[%s166 + $0x1c4] sm:$0xf]
      %v289 = vld [vmem:[%s166 + $0x1c8] sm:$0xf]
      %v290 = vld [vmem:[%s166 + $0x1cc] sm:$0xf]
      %v291 = vld [vmem:[%s166 + $0x1d0] sm:$0xf]
      %v292 = vld [vmem:[%s166 + $0x1d4] sm:$0xf]
      %v293 = vld [vmem:[%s166 + $0x1d8] sm:$0xf]
      %v294 = vld [vmem:[%s166 + $0x1dc] sm:$0xf]
      %v295 = vld [vmem:[%s166 + $0x1e0] sm:$0xf]
      %v296 = vld [vmem:[%s166 + $0x1e4] sm:$0xf]
      %v297 = vld [vmem:[%s166 + $0x1e8] sm:$0xf]
      %v298 = vld [vmem:[%s166 + $0x1ec] sm:$0xf]
      %v299 = vld [vmem:[%s166 + $0x1f0] sm:$0xf]
      %v300 = vld [vmem:[%s166 + $0x1f4] sm:$0xf]
      %v301 = vld [vmem:[%s166 + $0x1f8] sm:$0xf]
      %v302 = vld [vmem:[%s166 + $0x1fc] sm:$0xf]
      %v303 = vunpack.c.l.bf16 %v175
      %v304 = vunpack.c.l.bf16 %v176
      %v305 = vunpack.c.l.bf16 %v177
      %v306 = vunpack.c.l.bf16 %v178
      %v307 = vunpack.c.l.bf16 %v179
      %v308 = vunpack.c.l.bf16 %v180
      %v309 = vunpack.c.l.bf16 %v181
      %v310 = vunpack.c.l.bf16 %v182
      %v311 = vunpack.c.l.bf16 %v183
      %v312 = vunpack.c.l.bf16 %v184
      %v313 = vunpack.c.l.bf16 %v185
      %v314 = vunpack.c.l.bf16 %v186
      %v315 = vunpack.c.l.bf16 %v187
      %v316 = vunpack.c.l.bf16 %v188
      %v317 = vunpack.c.l.bf16 %v189
      %v318 = vunpack.c.l.bf16 %v190
      %v319 = vunpack.c.l.bf16 %v191
      %v320 = vunpack.c.l.bf16 %v192
      %v321 = vunpack.c.l.bf16 %v193
      %v322 = vunpack.c.l.bf16 %v194
      %v323 = vunpack.c.l.bf16 %v195
      %v324 = vunpack.c.l.bf16 %v196
      %v325 = vunpack.c.l.bf16 %v197
      %v326 = vunpack.c.l.bf16 %v198
      %v327 = vunpack.c.l.bf16 %v199
      %v328 = vunpack.c.l.bf16 %v200
      %v329 = vunpack.c.l.bf16 %v201
      %v330 = vunpack.c.l.bf16 %v202
      %v331 = vunpack.c.l.bf16 %v203
      %v332 = vunpack.c.l.bf16 %v204
      %v333 = vunpack.c.l.bf16 %v205
      %v334 = vunpack.c.l.bf16 %v206
      %v335 = vunpack.c.l.bf16 %v207
      %v336 = vunpack.c.l.bf16 %v208
      %v337 = vunpack.c.l.bf16 %v209
      %v338 = vunpack.c.l.bf16 %v210
      %v339 = vunpack.c.l.bf16 %v211
      %v340 = vunpack.c.l.bf16 %v212
      %v341 = vunpack.c.l.bf16 %v213
      %v342 = vunpack.c.l.bf16 %v214
      %v343 = vunpack.c.l.bf16 %v215
      %v344 = vunpack.c.l.bf16 %v216
      %v345 = vunpack.c.l.bf16 %v217
      %v346 = vunpack.c.l.bf16 %v218
      %v347 = vunpack.c.l.bf16 %v219
      %v348 = vunpack.c.l.bf16 %v220
      %v349 = vunpack.c.l.bf16 %v221
      %v350 = vunpack.c.l.bf16 %v222
      %v351 = vunpack.c.l.bf16 %v223
      %v352 = vunpack.c.l.bf16 %v224
      %v353 = vunpack.c.l.bf16 %v225
      %v354 = vunpack.c.l.bf16 %v226
      %v355 = vunpack.c.l.bf16 %v227
      %v356 = vunpack.c.l.bf16 %v228
      %v357 = vunpack.c.l.bf16 %v229
      %v358 = vunpack.c.l.bf16 %v230
      %v359 = vunpack.c.l.bf16 %v231
      %v360 = vunpack.c.l.bf16 %v232
      %v361 = vunpack.c.l.bf16 %v233
      %v362 = vunpack.c.l.bf16 %v234
      %v363 = vunpack.c.l.bf16 %v235
      %v364 = vunpack.c.l.bf16 %v236
      %v365 = vunpack.c.l.bf16 %v237
      %v366 = vunpack.c.l.bf16 %v238
      %v367 = vunpack.c.l.bf16 %v239
      %v368 = vunpack.c.l.bf16 %v240
      %v369 = vunpack.c.l.bf16 %v241
      %v370 = vunpack.c.l.bf16 %v242
      %v371 = vunpack.c.l.bf16 %v243
      %v372 = vunpack.c.l.bf16 %v244
      %v373 = vunpack.c.l.bf16 %v245
      %v374 = vunpack.c.l.bf16 %v246
      %v375 = vunpack.c.l.bf16 %v247
      %v376 = vunpack.c.l.bf16 %v248
      %v377 = vunpack.c.l.bf16 %v249
      %v378 = vunpack.c.l.bf16 %v250
      %v379 = vunpack.c.l.bf16 %v251
      %v380 = vunpack.c.l.bf16 %v252
      %v381 = vunpack.c.l.bf16 %v253
      %v382 = vunpack.c.l.bf16 %v254
      %v383 = vunpack.c.l.bf16 %v255
      %v384 = vunpack.c.l.bf16 %v256
      %v385 = vunpack.c.l.bf16 %v257
      %v386 = vunpack.c.l.bf16 %v258
      %v387 = vunpack.c.l.bf16 %v259
      %v388 = vunpack.c.l.bf16 %v260
      %v389 = vunpack.c.l.bf16 %v261
      %v390 = vunpack.c.l.bf16 %v262
      %v391 = vunpack.c.l.bf16 %v263
      %v392 = vunpack.c.l.bf16 %v264
      %v393 = vunpack.c.l.bf16 %v265
      %v394 = vunpack.c.l.bf16 %v266
      %v395 = vunpack.c.l.bf16 %v267
      %v396 = vunpack.c.l.bf16 %v268
      %v397 = vunpack.c.l.bf16 %v269
      %v398 = vunpack.c.l.bf16 %v270
      %v399 = vunpack.c.l.bf16 %v271
      %v400 = vunpack.c.l.bf16 %v272
      %v401 = vunpack.c.l.bf16 %v273
      %v402 = vunpack.c.l.bf16 %v274
      %v403 = vunpack.c.l.bf16 %v275
      %v404 = vunpack.c.l.bf16 %v276
      %v405 = vunpack.c.l.bf16 %v277
      %v406 = vunpack.c.l.bf16 %v278
      %v407 = vunpack.c.l.bf16 %v279
      %v408 = vunpack.c.l.bf16 %v280
      %v409 = vunpack.c.l.bf16 %v281
      %v410 = vunpack.c.l.bf16 %v282
      %v411 = vunpack.c.l.bf16 %v283
      %v412 = vunpack.c.l.bf16 %v284
      %v413 = vunpack.c.l.bf16 %v285
      %v414 = vunpack.c.l.bf16 %v286
      %v415 = vunpack.c.l.bf16 %v287
      %v416 = vunpack.c.l.bf16 %v288
      %v417 = vunpack.c.l.bf16 %v289
      %v418 = vunpack.c.l.bf16 %v290
      %v419 = vunpack.c.l.bf16 %v291
      %v420 = vunpack.c.l.bf16 %v292
      %v421 = vunpack.c.l.bf16 %v293
      %v422 = vunpack.c.l.bf16 %v294
      %v423 = vunpack.c.l.bf16 %v295
      %v424 = vunpack.c.l.bf16 %v296
      %v425 = vunpack.c.l.bf16 %v297
      %v426 = vunpack.c.l.bf16 %v298
      %v427 = vunpack.c.l.bf16 %v299
      %v428 = vunpack.c.l.bf16 %v300
      %v429 = vunpack.c.l.bf16 %v301
      %v430 = vunpack.c.l.bf16 %v302
      %v431 = vmax.f32 %v303, 0.0
      %v432 = vmax.f32 %v304, 0.0
      %v433 = vmax.f32 %v305, 0.0
      %v434 = vmax.f32 %v306, 0.0
      %v435 = vmax.f32 %v307, 0.0
      %v436 = vmax.f32 %v308, 0.0
      %v437 = vmax.f32 %v309, 0.0
      %v438 = vmax.f32 %v310, 0.0
      %v439 = vmax.f32 %v311, 0.0
      %v440 = vmax.f32 %v312, 0.0
      %v441 = vmax.f32 %v313, 0.0
      %v442 = vmax.f32 %v314, 0.0
      %v443 = vmax.f32 %v315, 0.0
      %v444 = vmax.f32 %v316, 0.0
      %v445 = vmax.f32 %v317, 0.0
      %v446 = vmax.f32 %v318, 0.0
      %v447 = vmax.f32 %v319, 0.0
      %v448 = vmax.f32 %v320, 0.0
      %v449 = vmax.f32 %v321, 0.0
      %v450 = vmax.f32 %v322, 0.0
      %v451 = vmax.f32 %v323, 0.0
      %v452 = vmax.f32 %v324, 0.0
      %v453 = vmax.f32 %v325, 0.0
      %v454 = vmax.f32 %v326, 0.0
      %v455 = vmax.f32 %v327, 0.0
      %v456 = vmax.f32 %v328, 0.0
      %v457 = vmax.f32 %v329, 0.0
      %v458 = vmax.f32 %v330, 0.0
      %v459 = vmax.f32 %v331, 0.0
      %v460 = vmax.f32 %v332, 0.0
      %v461 = vmax.f32 %v333, 0.0
      %v462 = vmax.f32 %v334, 0.0
      %v463 = vmax.f32 %v335, 0.0
      %v464 = vmax.f32 %v336, 0.0
      %v465 = vmax.f32 %v337, 0.0
      %v466 = vmax.f32 %v338, 0.0
      %v467 = vmax.f32 %v339, 0.0
      %v468 = vmax.f32 %v340, 0.0
      %v469 = vmax.f32 %v341, 0.0
      %v470 = vmax.f32 %v342, 0.0
      %v471 = vmax.f32 %v343, 0.0
      %v472 = vmax.f32 %v344, 0.0
      %v473 = vmax.f32 %v345, 0.0
      %v474 = vmax.f32 %v346, 0.0
      %v475 = vmax.f32 %v347, 0.0
      %v476 = vmax.f32 %v348, 0.0
      %v477 = vmax.f32 %v349, 0.0
      %v478 = vmax.f32 %v350, 0.0
      %v479 = vmax.f32 %v351, 0.0
      %v480 = vmax.f32 %v352, 0.0
      %v481 = vmax.f32 %v353, 0.0
      %v482 = vmax.f32 %v354, 0.0
      %v483 = vmax.f32 %v355, 0.0
      %v484 = vmax.f32 %v356, 0.0
      %v485 = vmax.f32 %v357, 0.0
      %v486 = vmax.f32 %v358, 0.0
      %v487 = vmax.f32 %v359, 0.0
      %v488 = vmax.f32 %v360, 0.0
      %v489 = vmax.f32 %v361, 0.0
      %v490 = vmax.f32 %v362, 0.0
      %v491 = vmax.f32 %v363, 0.0
      %v492 = vmax.f32 %v364, 0.0
      %v493 = vmax.f32 %v365, 0.0
      %v494 = vmax.f32 %v366, 0.0
      %v495 = vmax.f32 %v367, 0.0
      %v496 = vmax.f32 %v368, 0.0
      %v497 = vmax.f32 %v369, 0.0
      %v498 = vmax.f32 %v370, 0.0
      %v499 = vmax.f32 %v371, 0.0
      %v500 = vmax.f32 %v372, 0.0
      %v501 = vmax.f32 %v373, 0.0
      %v502 = vmax.f32 %v374, 0.0
      %v503 = vmax.f32 %v375, 0.0
      %v504 = vmax.f32 %v376, 0.0
      %v505 = vmax.f32 %v377, 0.0
      %v506 = vmax.f32 %v378, 0.0
      %v507 = vmax.f32 %v379, 0.0
      %v508 = vmax.f32 %v380, 0.0
      %v509 = vmax.f32 %v381, 0.0
      %v510 = vmax.f32 %v382, 0.0
      %v511 = vmax.f32 %v383, 0.0
      %v512 = vmax.f32 %v384, 0.0
      %v513 = vmax.f32 %v385, 0.0
      %v514 = vmax.f32 %v386, 0.0
      %v515 = vmax.f32 %v387, 0.0
      %v516 = vmax.f32 %v388, 0.0
      %v517 = vmax.f32 %v389, 0.0
      %v518 = vmax.f32 %v390, 0.0
      %v519 = vmax.f32 %v391, 0.0
      %v520 = vmax.f32 %v392, 0.0
      %v521 = vmax.f32 %v393, 0.0
      %v522 = vmax.f32 %v394, 0.0
      %v523 = vmax.f32 %v395, 0.0
      %v524 = vmax.f32 %v396, 0.0
      %v525 = vmax.f32 %v397, 0.0
      %v526 = vmax.f32 %v398, 0.0
      %v527 = vmax.f32 %v399, 0.0
      %v528 = vmax.f32 %v400, 0.0
      %v529 = vmax.f32 %v401, 0.0
      %v530 = vmax.f32 %v402, 0.0
      %v531 = vmax.f32 %v403, 0.0
      %v532 = vmax.f32 %v404, 0.0
      %v533 = vmax.f32 %v405, 0.0
      %v534 = vmax.f32 %v406, 0.0
      %v535 = vmax.f32 %v407, 0.0
      %v536 = vmax.f32 %v408, 0.0
      %v537 = vmax.f32 %v409, 0.0
      %v538 = vmax.f32 %v410, 0.0
      %v539 = vmax.f32 %v411, 0.0
      %v540 = vmax.f32 %v412, 0.0
      %v541 = vmax.f32 %v413, 0.0
      %v542 = vmax.f32 %v414, 0.0
      %v543 = vmax.f32 %v415, 0.0
      %v544 = vmax.f32 %v416, 0.0
      %v545 = vmax.f32 %v417, 0.0
      %v546 = vmax.f32 %v418, 0.0
      %v547 = vmax.f32 %v419, 0.0
      %v548 = vmax.f32 %v420, 0.0
      %v549 = vmax.f32 %v421, 0.0
      %v550 = vmax.f32 %v422, 0.0
      %v551 = vmax.f32 %v423, 0.0
      %v552 = vmax.f32 %v424, 0.0
      %v553 = vmax.f32 %v425, 0.0
      %v554 = vmax.f32 %v426, 0.0
      %v555 = vmax.f32 %v427, 0.0
      %v556 = vmax.f32 %v428, 0.0
      %v557 = vmax.f32 %v429, 0.0
      %v558 = vmax.f32 %v430, 0.0
      %v559 = vpack.c.bf16 %v432, %v431
      %v560 = vpack.c.bf16 %v434, %v433
      %v561 = vpack.c.bf16 %v436, %v435
      %v562 = vpack.c.bf16 %v438, %v437
      %v563 = vpack.c.bf16 %v440, %v439
      %v564 = vpack.c.bf16 %v442, %v441
      %v565 = vpack.c.bf16 %v444, %v443
      %v566 = vpack.c.bf16 %v446, %v445
      %v567 = vpack.c.bf16 %v448, %v447
      %v568 = vpack.c.bf16 %v450, %v449
      %v569 = vpack.c.bf16 %v452, %v451
      %v570 = vpack.c.bf16 %v454, %v453
      %v571 = vpack.c.bf16 %v456, %v455
      %v572 = vpack.c.bf16 %v458, %v457
      %v573 = vpack.c.bf16 %v460, %v459
      %v574 = vpack.c.bf16 %v462, %v461
      %v575 = vpack.c.bf16 %v464, %v463
      %v576 = vpack.c.bf16 %v466, %v465
      %v577 = vpack.c.bf16 %v468, %v467
      %v578 = vpack.c.bf16 %v470, %v469
      %v579 = vpack.c.bf16 %v472, %v471
      %v580 = vpack.c.bf16 %v474, %v473
      %v581 = vpack.c.bf16 %v476, %v475
      %v582 = vpack.c.bf16 %v478, %v477
      %v583 = vpack.c.bf16 %v480, %v479
      %v584 = vpack.c.bf16 %v482, %v481
      %v585 = vpack.c.bf16 %v484, %v483
      %v586 = vpack.c.bf16 %v486, %v485
      %v587 = vpack.c.bf16 %v488, %v487
      %v588 = vpack.c.bf16 %v490, %v489
      %v589 = vpack.c.bf16 %v492, %v491
      %v590 = vpack.c.bf16 %v494, %v493
      %v591 = vpack.c.bf16 %v496, %v495
      %v592 = vpack.c.bf16 %v498, %v497
      %v593 = vpack.c.bf16 %v500, %v499
      %v594 = vpack.c.bf16 %v502, %v501
      %v595 = vpack.c.bf16 %v504, %v503
      %v596 = vpack.c.bf16 %v506, %v505
      %v597 = vpack.c.bf16 %v508, %v507
      %v598 = vpack.c.bf16 %v510, %v509
      %v599 = vpack.c.bf16 %v512, %v511
      %v600 = vpack.c.bf16 %v514, %v513
      %v601 = vpack.c.bf16 %v516, %v515
      %v602 = vpack.c.bf16 %v518, %v517
      %v603 = vpack.c.bf16 %v520, %v519
      %v604 = vpack.c.bf16 %v522, %v521
      %v605 = vpack.c.bf16 %v524, %v523
      %v606 = vpack.c.bf16 %v526, %v525
      %v607 = vpack.c.bf16 %v528, %v527
      %v608 = vpack.c.bf16 %v530, %v529
      %v609 = vpack.c.bf16 %v532, %v531
      %v610 = vpack.c.bf16 %v534, %v533
      %v611 = vpack.c.bf16 %v536, %v535
      %v612 = vpack.c.bf16 %v538, %v537
      %v613 = vpack.c.bf16 %v540, %v539
      %v614 = vpack.c.bf16 %v542, %v541
      %v615 = vpack.c.bf16 %v544, %v543
      %v616 = vpack.c.bf16 %v546, %v545
      %v617 = vpack.c.bf16 %v548, %v547
      %v618 = vpack.c.bf16 %v550, %v549
      %v619 = vpack.c.bf16 %v552, %v551
      %v620 = vpack.c.bf16 %v554, %v553
      %v621 = vpack.c.bf16 %v556, %v555
      %v622 = vpack.c.bf16 %v558, %v557
      %v623 = vld [vmem:[%s1] sm:$0xf]
      %v624 = vld [vmem:[%s1 + $0x4] sm:$0x3]
      %v625 = vld [vmem:[%s2] sm:$0x1]
      %v627 = vperm.slane %v625, 0
      %v631 = vunpack.c.l.b16 %v623
      %v632 = vunpack.c.l.b16 %v624
      %v633 = vpack.c.b16 %v632, %v631
      %vm634 = vcmask 97280
      %v636 = vsel %vm634, %v559, 0
      %v639 = vsel %vm634, %v560, 0
      %v642 = vsel %vm634, %v561, 0
      %v645 = vsel %vm634, %v562, 0
      %v648 = vsel %vm634, %v563, 0
      %v651 = vsel %vm634, %v564, 0
      %v654 = vsel %vm634, %v565, 0
      %v657 = vsel %vm634, %v566, 0
      %v660 = vsel %vm634, %v567, 0
      %v663 = vsel %vm634, %v568, 0
      %v666 = vsel %vm634, %v569, 0
      %v669 = vsel %vm634, %v570, 0
      %v672 = vsel %vm634, %v571, 0
      %v675 = vsel %vm634, %v572, 0
      %v678 = vsel %vm634, %v573, 0
      %v681 = vsel %vm634, %v574, 0
      %v684 = vsel %vm634, %v575, 0
      %v687 = vsel %vm634, %v576, 0
      %v690 = vsel %vm634, %v577, 0
      %v693 = vsel %vm634, %v578, 0
      %v696 = vsel %vm634, %v579, 0
      %v699 = vsel %vm634, %v580, 0
      %v702 = vsel %vm634, %v581, 0
      %v705 = vsel %vm634, %v582, 0
      %v708 = vsel %vm634, %v583, 0
      %v711 = vsel %vm634, %v584, 0
      %v714 = vsel %vm634, %v585, 0
      %v717 = vsel %vm634, %v586, 0
      %v720 = vsel %vm634, %v587, 0
      %v723 = vsel %vm634, %v588, 0
      %v726 = vsel %vm634, %v589, 0
      %v729 = vsel %vm634, %v590, 0
      %v732 = vsel %vm634, %v591, 0
      %v735 = vsel %vm634, %v592, 0
      %v738 = vsel %vm634, %v593, 0
      %v741 = vsel %vm634, %v594, 0
      %v744 = vsel %vm634, %v595, 0
      %v747 = vsel %vm634, %v596, 0
      %v750 = vsel %vm634, %v597, 0
      %v753 = vsel %vm634, %v598, 0
      %v756 = vsel %vm634, %v599, 0
      %v759 = vsel %vm634, %v600, 0
      %v762 = vsel %vm634, %v601, 0
      %v765 = vsel %vm634, %v602, 0
      %v768 = vsel %vm634, %v603, 0
      %v771 = vsel %vm634, %v604, 0
      %v774 = vsel %vm634, %v605, 0
      %v777 = vsel %vm634, %v606, 0
      %v780 = vsel %vm634, %v607, 0
      %v783 = vsel %vm634, %v608, 0
      %v786 = vsel %vm634, %v609, 0
      %v789 = vsel %vm634, %v610, 0
      %v792 = vsel %vm634, %v611, 0
      %v795 = vsel %vm634, %v612, 0
      %v798 = vsel %vm634, %v613, 0
      %v801 = vsel %vm634, %v614, 0
      %v804 = vsel %vm634, %v615, 0
      %v807 = vsel %vm634, %v616, 0
      %v810 = vsel %vm634, %v617, 0
      %v813 = vsel %vm634, %v618, 0
      %v816 = vsel %vm634, %v619, 0
      %v819 = vsel %vm634, %v620, 0
      %v822 = vsel %vm634, %v621, 0
      %v825 = vsel %vm634, %v622, 0
      %vm827 = vcmask 1045504
      %v829 = vsel %vm827, %v633, 0
      %831 = vmatpush.bf16.msra.mxu0 0
      %832 = vmatpush.bf16.msra.mxu0 0
      %833 = vmatpush.bf16.msra.mxu0 0
      %834 = vmatpush.bf16.msra.mxu0 0
      %835 = vmatpush.bf16.msra.mxu0 0
      %836 = vmatpush.bf16.msra.mxu0 0
      %837 = vmatpush.bf16.msra.mxu0 0
      %838 = vmatpush.bf16.msra.mxu0 %v829
      %839 = vmatmul.bf16.gmra.mxu0 %v636
      %v840 = vpop.f32.mrf.mxu0
      %v841 = vadd.f32 %v627, %v840
      %v842 = vpop.f32.mrf.mxu0
      %v843 = vadd.f32 %v627, %v842
      %844 = vmatmul.bf16.gmra.mxu0 %v639
      %v845 = vpop.f32.mrf.mxu0
      %v846 = vadd.f32 %v627, %v845
      %v847 = vpop.f32.mrf.mxu0
      %v848 = vadd.f32 %v627, %v847
      %849 = vmatmul.bf16.gmra.mxu0 %v642
      %v850 = vpop.f32.mrf.mxu0
      %v851 = vadd.f32 %v627, %v850
      %v852 = vpop.f32.mrf.mxu0
      %v853 = vadd.f32 %v627, %v852
      %854 = vmatmul.bf16.gmra.mxu0 %v645
      %v855 = vpop.f32.mrf.mxu0
      %v856 = vadd.f32 %v627, %v855
      %v857 = vpop.f32.mrf.mxu0
      %v858 = vadd.f32 %v627, %v857
      %859 = vmatmul.bf16.gmra.mxu0 %v648
      %v860 = vpop.f32.mrf.mxu0
      %v861 = vadd.f32 %v627, %v860
      %v862 = vpop.f32.mrf.mxu0
      %v863 = vadd.f32 %v627, %v862
      %864 = vmatmul.bf16.gmra.mxu0 %v651
      %v865 = vpop.f32.mrf.mxu0
      %v866 = vadd.f32 %v627, %v865
      %v867 = vpop.f32.mrf.mxu0
      %v868 = vadd.f32 %v627, %v867
      %869 = vmatmul.bf16.gmra.mxu0 %v654
      %v870 = vpop.f32.mrf.mxu0
      %v871 = vadd.f32 %v627, %v870
      %v872 = vpop.f32.mrf.mxu0
      %v873 = vadd.f32 %v627, %v872
      %874 = vmatmul.bf16.gmra.mxu0 %v657
      %v875 = vpop.f32.mrf.mxu0
      %v876 = vadd.f32 %v627, %v875
      %v877 = vpop.f32.mrf.mxu0
      %v878 = vadd.f32 %v627, %v877
      %879 = vmatmul.bf16.gmra.mxu0 %v660
      %v880 = vpop.f32.mrf.mxu0
      %v881 = vadd.f32 %v627, %v880
      %v882 = vpop.f32.mrf.mxu0
      %v883 = vadd.f32 %v627, %v882
      %884 = vmatmul.bf16.gmra.mxu0 %v663
      %v885 = vpop.f32.mrf.mxu0
      %v886 = vadd.f32 %v627, %v885
      %v887 = vpop.f32.mrf.mxu0
      %v888 = vadd.f32 %v627, %v887
      %889 = vmatmul.bf16.gmra.mxu0 %v666
      %v890 = vpop.f32.mrf.mxu0
      %v891 = vadd.f32 %v627, %v890
      %v892 = vpop.f32.mrf.mxu0
      %v893 = vadd.f32 %v627, %v892
      %894 = vmatmul.bf16.gmra.mxu0 %v669
      %v895 = vpop.f32.mrf.mxu0
      %v896 = vadd.f32 %v627, %v895
      %v897 = vpop.f32.mrf.mxu0
      %v898 = vadd.f32 %v627, %v897
      %899 = vmatmul.bf16.gmra.mxu0 %v672
      %v900 = vpop.f32.mrf.mxu0
      %v901 = vadd.f32 %v627, %v900
      %v902 = vpop.f32.mrf.mxu0
      %v903 = vadd.f32 %v627, %v902
      %904 = vmatmul.bf16.gmra.mxu0 %v675
      %v905 = vpop.f32.mrf.mxu0
      %v906 = vadd.f32 %v627, %v905
      %v907 = vpop.f32.mrf.mxu0
      %v908 = vadd.f32 %v627, %v907
      %909 = vmatmul.bf16.gmra.mxu0 %v678
      %v910 = vpop.f32.mrf.mxu0
      %v911 = vadd.f32 %v627, %v910
      %v912 = vpop.f32.mrf.mxu0
      %v913 = vadd.f32 %v627, %v912
      %914 = vmatmul.bf16.gmra.mxu0 %v681
      %v915 = vpop.f32.mrf.mxu0
      %v916 = vadd.f32 %v627, %v915
      %v917 = vpop.f32.mrf.mxu0
      %v918 = vadd.f32 %v627, %v917
      %919 = vmatmul.bf16.gmra.mxu0 %v684
      %v920 = vpop.f32.mrf.mxu0
      %v921 = vadd.f32 %v627, %v920
      %v922 = vpop.f32.mrf.mxu0
      %v923 = vadd.f32 %v627, %v922
      %924 = vmatmul.bf16.gmra.mxu0 %v687
      %v925 = vpop.f32.mrf.mxu0
      %v926 = vadd.f32 %v627, %v925
      %v927 = vpop.f32.mrf.mxu0
      %v928 = vadd.f32 %v627, %v927
      %929 = vmatmul.bf16.gmra.mxu0 %v690
      %v930 = vpop.f32.mrf.mxu0
      %v931 = vadd.f32 %v627, %v930
      %v932 = vpop.f32.mrf.mxu0
      %v933 = vadd.f32 %v627, %v932
      %934 = vmatmul.bf16.gmra.mxu0 %v693
      %v935 = vpop.f32.mrf.mxu0
      %v936 = vadd.f32 %v627, %v935
      %v937 = vpop.f32.mrf.mxu0
      %v938 = vadd.f32 %v627, %v937
      %939 = vmatmul.bf16.gmra.mxu0 %v696
      %v940 = vpop.f32.mrf.mxu0
      %v941 = vadd.f32 %v627, %v940
      %v942 = vpop.f32.mrf.mxu0
      %v943 = vadd.f32 %v627, %v942
      %944 = vmatmul.bf16.gmra.mxu0 %v699
      %v945 = vpop.f32.mrf.mxu0
      %v946 = vadd.f32 %v627, %v945
      %v947 = vpop.f32.mrf.mxu0
      %v948 = vadd.f32 %v627, %v947
      %949 = vmatmul.bf16.gmra.mxu0 %v702
      %v950 = vpop.f32.mrf.mxu0
      %v951 = vadd.f32 %v627, %v950
      %v952 = vpop.f32.mrf.mxu0
      %v953 = vadd.f32 %v627, %v952
      %954 = vmatmul.bf16.gmra.mxu0 %v705
      %v955 = vpop.f32.mrf.mxu0
      %v956 = vadd.f32 %v627, %v955
      %v957 = vpop.f32.mrf.mxu0
      %v958 = vadd.f32 %v627, %v957
      %959 = vmatmul.bf16.gmra.mxu0 %v708
      %v960 = vpop.f32.mrf.mxu0
      %v961 = vadd.f32 %v627, %v960
      %v962 = vpop.f32.mrf.mxu0
      %v963 = vadd.f32 %v627, %v962
      %964 = vmatmul.bf16.gmra.mxu0 %v711
      %v965 = vpop.f32.mrf.mxu0
      %v966 = vadd.f32 %v627, %v965
      %v967 = vpop.f32.mrf.mxu0
      %v968 = vadd.f32 %v627, %v967
      %969 = vmatmul.bf16.gmra.mxu0 %v714
      %v970 = vpop.f32.mrf.mxu0
      %v971 = vadd.f32 %v627, %v970
      %v972 = vpop.f32.mrf.mxu0
      %v973 = vadd.f32 %v627, %v972
      %974 = vmatmul.bf16.gmra.mxu0 %v717
      %v975 = vpop.f32.mrf.mxu0
      %v976 = vadd.f32 %v627, %v975
      %v977 = vpop.f32.mrf.mxu0
      %v978 = vadd.f32 %v627, %v977
      %979 = vmatmul.bf16.gmra.mxu0 %v720
      %v980 = vpop.f32.mrf.mxu0
      %v981 = vadd.f32 %v627, %v980
      %v982 = vpop.f32.mrf.mxu0
      %v983 = vadd.f32 %v627, %v982
      %984 = vmatmul.bf16.gmra.mxu0 %v723
      %v985 = vpop.f32.mrf.mxu0
      %v986 = vadd.f32 %v627, %v985
      %v987 = vpop.f32.mrf.mxu0
      %v988 = vadd.f32 %v627, %v987
      %989 = vmatmul.bf16.gmra.mxu0 %v726
      %v990 = vpop.f32.mrf.mxu0
      %v991 = vadd.f32 %v627, %v990
      %v992 = vpop.f32.mrf.mxu0
      %v993 = vadd.f32 %v627, %v992
      %994 = vmatmul.bf16.gmra.mxu0 %v729
      %v995 = vpop.f32.mrf.mxu0
      %v996 = vadd.f32 %v627, %v995
      %v997 = vpop.f32.mrf.mxu0
      %v998 = vadd.f32 %v627, %v997
      %999 = vmatmul.bf16.gmra.mxu0 %v732
      %v1000 = vpop.f32.mrf.mxu0
      %v1001 = vadd.f32 %v627, %v1000
      %v1002 = vpop.f32.mrf.mxu0
      %v1003 = vadd.f32 %v627, %v1002
      %1004 = vmatmul.bf16.gmra.mxu0 %v735
      %v1005 = vpop.f32.mrf.mxu0
      %v1006 = vadd.f32 %v627, %v1005
      %v1007 = vpop.f32.mrf.mxu0
      %v1008 = vadd.f32 %v627, %v1007
      %1009 = vmatmul.bf16.gmra.mxu0 %v738
      %v1010 = vpop.f32.mrf.mxu0
      %v1011 = vadd.f32 %v627, %v1010
      %v1012 = vpop.f32.mrf.mxu0
      %v1013 = vadd.f32 %v627, %v1012
      %1014 = vmatmul.bf16.gmra.mxu0 %v741
      %v1015 = vpop.f32.mrf.mxu0
      %v1016 = vadd.f32 %v627, %v1015
      %v1017 = vpop.f32.mrf.mxu0
      %v1018 = vadd.f32 %v627, %v1017
      %1019 = vmatmul.bf16.gmra.mxu0 %v744
      %v1020 = vpop.f32.mrf.mxu0
      %v1021 = vadd.f32 %v627, %v1020
      %v1022 = vpop.f32.mrf.mxu0
      %v1023 = vadd.f32 %v627, %v1022
      %1024 = vmatmul.bf16.gmra.mxu0 %v747
      %v1025 = vpop.f32.mrf.mxu0
      %v1026 = vadd.f32 %v627, %v1025
      %v1027 = vpop.f32.mrf.mxu0
      %v1028 = vadd.f32 %v627, %v1027
      %1029 = vmatmul.bf16.gmra.mxu0 %v750
      %v1030 = vpop.f32.mrf.mxu0
      %v1031 = vadd.f32 %v627, %v1030
      %v1032 = vpop.f32.mrf.mxu0
      %v1033 = vadd.f32 %v627, %v1032
      %1034 = vmatmul.bf16.gmra.mxu0 %v753
      %v1035 = vpop.f32.mrf.mxu0
      %v1036 = vadd.f32 %v627, %v1035
      %v1037 = vpop.f32.mrf.mxu0
      %v1038 = vadd.f32 %v627, %v1037
      %1039 = vmatmul.bf16.gmra.mxu0 %v756
      %v1040 = vpop.f32.mrf.mxu0
      %v1041 = vadd.f32 %v627, %v1040
      %v1042 = vpop.f32.mrf.mxu0
      %v1043 = vadd.f32 %v627, %v1042
      %1044 = vmatmul.bf16.gmra.mxu0 %v759
      %v1045 = vpop.f32.mrf.mxu0
      %v1046 = vadd.f32 %v627, %v1045
      %v1047 = vpop.f32.mrf.mxu0
      %v1048 = vadd.f32 %v627, %v1047
      %1049 = vmatmul.bf16.gmra.mxu0 %v762
      %v1050 = vpop.f32.mrf.mxu0
      %v1051 = vadd.f32 %v627, %v1050
      %v1052 = vpop.f32.mrf.mxu0
      %v1053 = vadd.f32 %v627, %v1052
      %1054 = vmatmul.bf16.gmra.mxu0 %v765
      %v1055 = vpop.f32.mrf.mxu0
      %v1056 = vadd.f32 %v627, %v1055
      %v1057 = vpop.f32.mrf.mxu0
      %v1058 = vadd.f32 %v627, %v1057
      %1059 = vmatmul.bf16.gmra.mxu0 %v768
      %v1060 = vpop.f32.mrf.mxu0
      %v1061 = vadd.f32 %v627, %v1060
      %v1062 = vpop.f32.mrf.mxu0
      %v1063 = vadd.f32 %v627, %v1062
      %1064 = vmatmul.bf16.gmra.mxu0 %v771
      %v1065 = vpop.f32.mrf.mxu0
      %v1066 = vadd.f32 %v627, %v1065
      %v1067 = vpop.f32.mrf.mxu0
      %v1068 = vadd.f32 %v627, %v1067
      %1069 = vmatmul.bf16.gmra.mxu0 %v774
      %v1070 = vpop.f32.mrf.mxu0
      %v1071 = vadd.f32 %v627, %v1070
      %v1072 = vpop.f32.mrf.mxu0
      %v1073 = vadd.f32 %v627, %v1072
      %1074 = vmatmul.bf16.gmra.mxu0 %v777
      %v1075 = vpop.f32.mrf.mxu0
      %v1076 = vadd.f32 %v627, %v1075
      %v1077 = vpop.f32.mrf.mxu0
      %v1078 = vadd.f32 %v627, %v1077
      %1079 = vmatmul.bf16.gmra.mxu0 %v780
      %v1080 = vpop.f32.mrf.mxu0
      %v1081 = vadd.f32 %v627, %v1080
      %v1082 = vpop.f32.mrf.mxu0
      %v1083 = vadd.f32 %v627, %v1082
      %1084 = vmatmul.bf16.gmra.mxu0 %v783
      %v1085 = vpop.f32.mrf.mxu0
      %v1086 = vadd.f32 %v627, %v1085
      %v1087 = vpop.f32.mrf.mxu0
      %v1088 = vadd.f32 %v627, %v1087
      %1089 = vmatmul.bf16.gmra.mxu0 %v786
      %v1090 = vpop.f32.mrf.mxu0
      %v1091 = vadd.f32 %v627, %v1090
      %v1092 = vpop.f32.mrf.mxu0
      %v1093 = vadd.f32 %v627, %v1092
      %1094 = vmatmul.bf16.gmra.mxu0 %v789
      %v1095 = vpop.f32.mrf.mxu0
      %v1096 = vadd.f32 %v627, %v1095
      %v1097 = vpop.f32.mrf.mxu0
      %v1098 = vadd.f32 %v627, %v1097
      %1099 = vmatmul.bf16.gmra.mxu0 %v792
      %v1100 = vpop.f32.mrf.mxu0
      %v1101 = vadd.f32 %v627, %v1100
      %v1102 = vpop.f32.mrf.mxu0
      %v1103 = vadd.f32 %v627, %v1102
      %1104 = vmatmul.bf16.gmra.mxu0 %v795
      %v1105 = vpop.f32.mrf.mxu0
      %v1106 = vadd.f32 %v627, %v1105
      %v1107 = vpop.f32.mrf.mxu0
      %v1108 = vadd.f32 %v627, %v1107
      %1109 = vmatmul.bf16.gmra.mxu0 %v798
      %v1110 = vpop.f32.mrf.mxu0
      %v1111 = vadd.f32 %v627, %v1110
      %v1112 = vpop.f32.mrf.mxu0
      %v1113 = vadd.f32 %v627, %v1112
      %1114 = vmatmul.bf16.gmra.mxu0 %v801
      %v1115 = vpop.f32.mrf.mxu0
      %v1116 = vadd.f32 %v627, %v1115
      %v1117 = vpop.f32.mrf.mxu0
      %v1118 = vadd.f32 %v627, %v1117
      %1119 = vmatmul.bf16.gmra.mxu0 %v804
      %v1120 = vpop.f32.mrf.mxu0
      %v1121 = vadd.f32 %v627, %v1120
      %v1122 = vpop.f32.mrf.mxu0
      %v1123 = vadd.f32 %v627, %v1122
      %1124 = vmatmul.bf16.gmra.mxu0 %v807
      %v1125 = vpop.f32.mrf.mxu0
      %v1126 = vadd.f32 %v627, %v1125
      %v1127 = vpop.f32.mrf.mxu0
      %v1128 = vadd.f32 %v627, %v1127
      %1129 = vmatmul.bf16.gmra.mxu0 %v810
      %v1130 = vpop.f32.mrf.mxu0
      %v1131 = vadd.f32 %v627, %v1130
      %v1132 = vpop.f32.mrf.mxu0
      %v1133 = vadd.f32 %v627, %v1132
      %1134 = vmatmul.bf16.gmra.mxu0 %v813
      %v1135 = vpop.f32.mrf.mxu0
      %v1136 = vadd.f32 %v627, %v1135
      %v1137 = vpop.f32.mrf.mxu0
      %v1138 = vadd.f32 %v627, %v1137
      %1139 = vmatmul.bf16.gmra.mxu0 %v816
      %v1140 = vpop.f32.mrf.mxu0
      %v1141 = vadd.f32 %v627, %v1140
      %v1142 = vpop.f32.mrf.mxu0
      %v1143 = vadd.f32 %v627, %v1142
      %1144 = vmatmul.bf16.gmra.mxu0 %v819
      %v1145 = vpop.f32.mrf.mxu0
      %v1146 = vadd.f32 %v627, %v1145
      %v1147 = vpop.f32.mrf.mxu0
      %v1148 = vadd.f32 %v627, %v1147
      %1149 = vmatmul.bf16.gmra.mxu0 %v822
      %v1150 = vpop.f32.mrf.mxu0
      %v1151 = vadd.f32 %v627, %v1150
      %v1152 = vpop.f32.mrf.mxu0
      %v1153 = vadd.f32 %v627, %v1152
      %1154 = vmatmul.bf16.gmra.mxu0 %v825
      %v1155 = vpop.f32.mrf.mxu0
      %v1156 = vadd.f32 %v627, %v1155
      %v1157 = vpop.f32.mrf.mxu0
      %v1158 = vadd.f32 %v627, %v1157
      %1159 = vdwg.mxu0
      %v1160 = vpack.c.bf16 %v841, %v841
      %v1161 = vpack.c.bf16 %v843, %v843
      %v1162 = vpack.c.bf16 %v846, %v846
      %v1163 = vpack.c.bf16 %v848, %v848
      %v1164 = vpack.c.bf16 %v851, %v851
      %v1165 = vpack.c.bf16 %v853, %v853
      %v1166 = vpack.c.bf16 %v856, %v856
      %v1167 = vpack.c.bf16 %v858, %v858
      %v1168 = vpack.c.bf16 %v861, %v861
      %v1169 = vpack.c.bf16 %v863, %v863
      %v1170 = vpack.c.bf16 %v866, %v866
      %v1171 = vpack.c.bf16 %v868, %v868
      %v1172 = vpack.c.bf16 %v871, %v871
      %v1173 = vpack.c.bf16 %v873, %v873
      %v1174 = vpack.c.bf16 %v876, %v876
      %v1175 = vpack.c.bf16 %v878, %v878
      %v1176 = vpack.c.bf16 %v881, %v881
      %v1177 = vpack.c.bf16 %v883, %v883
      %v1178 = vpack.c.bf16 %v886, %v886
      %v1179 = vpack.c.bf16 %v888, %v888
      %v1180 = vpack.c.bf16 %v891, %v891
      %v1181 = vpack.c.bf16 %v893, %v893
      %v1182 = vpack.c.bf16 %v896, %v896
      %v1183 = vpack.c.bf16 %v898, %v898
      %v1184 = vpack.c.bf16 %v901, %v901
      %v1185 = vpack.c.bf16 %v903, %v903
      %v1186 = vpack.c.bf16 %v906, %v906
      %v1187 = vpack.c.bf16 %v908, %v908
      %v1188 = vpack.c.bf16 %v911, %v911
      %v1189 = vpack.c.bf16 %v913, %v913
      %v1190 = vpack.c.bf16 %v916, %v916
      %v1191 = vpack.c.bf16 %v918, %v918
      %v1192 = vpack.c.bf16 %v921, %v921
      %v1193 = vpack.c.bf16 %v923, %v923
      %v1194 = vpack.c.bf16 %v926, %v926
      %v1195 = vpack.c.bf16 %v928, %v928
      %v1196 = vpack.c.bf16 %v931, %v931
      %v1197 = vpack.c.bf16 %v933, %v933
      %v1198 = vpack.c.bf16 %v936, %v936
      %v1199 = vpack.c.bf16 %v938, %v938
      %v1200 = vpack.c.bf16 %v941, %v941
      %v1201 = vpack.c.bf16 %v943, %v943
      %v1202 = vpack.c.bf16 %v946, %v946
      %v1203 = vpack.c.bf16 %v948, %v948
      %v1204 = vpack.c.bf16 %v951, %v951
      %v1205 = vpack.c.bf16 %v953, %v953
      %v1206 = vpack.c.bf16 %v956, %v956
      %v1207 = vpack.c.bf16 %v958, %v958
      %v1208 = vpack.c.bf16 %v961, %v961
      %v1209 = vpack.c.bf16 %v963, %v963
      %v1210 = vpack.c.bf16 %v966, %v966
      %v1211 = vpack.c.bf16 %v968, %v968
      %v1212 = vpack.c.bf16 %v971, %v971
      %v1213 = vpack.c.bf16 %v973, %v973
      %v1214 = vpack.c.bf16 %v976, %v976
      %v1215 = vpack.c.bf16 %v978, %v978
      %v1216 = vpack.c.bf16 %v981, %v981
      %v1217 = vpack.c.bf16 %v983, %v983
      %v1218 = vpack.c.bf16 %v986, %v986
      %v1219 = vpack.c.bf16 %v988, %v988
      %v1220 = vpack.c.bf16 %v991, %v991
      %v1221 = vpack.c.bf16 %v993, %v993
      %v1222 = vpack.c.bf16 %v996, %v996
      %v1223 = vpack.c.bf16 %v998, %v998
      %v1224 = vpack.c.bf16 %v1001, %v1001
      %v1225 = vpack.c.bf16 %v1003, %v1003
      %v1226 = vpack.c.bf16 %v1006, %v1006
      %v1227 = vpack.c.bf16 %v1008, %v1008
      %v1228 = vpack.c.bf16 %v1011, %v1011
      %v1229 = vpack.c.bf16 %v1013, %v1013
      %v1230 = vpack.c.bf16 %v1016, %v1016
      %v1231 = vpack.c.bf16 %v1018, %v1018
      %v1232 = vpack.c.bf16 %v1021, %v1021
      %v1233 = vpack.c.bf16 %v1023, %v1023
      %v1234 = vpack.c.bf16 %v1026, %v1026
      %v1235 = vpack.c.bf16 %v1028, %v1028
      %v1236 = vpack.c.bf16 %v1031, %v1031
      %v1237 = vpack.c.bf16 %v1033, %v1033
      %v1238 = vpack.c.bf16 %v1036, %v1036
      %v1239 = vpack.c.bf16 %v1038, %v1038
      %v1240 = vpack.c.bf16 %v1041, %v1041
      %v1241 = vpack.c.bf16 %v1043, %v1043
      %v1242 = vpack.c.bf16 %v1046, %v1046
      %v1243 = vpack.c.bf16 %v1048, %v1048
      %v1244 = vpack.c.bf16 %v1051, %v1051
      %v1245 = vpack.c.bf16 %v1053, %v1053
      %v1246 = vpack.c.bf16 %v1056, %v1056
      %v1247 = vpack.c.bf16 %v1058, %v1058
      %v1248 = vpack.c.bf16 %v1061, %v1061
      %v1249 = vpack.c.bf16 %v1063, %v1063
      %v1250 = vpack.c.bf16 %v1066, %v1066
      %v1251 = vpack.c.bf16 %v1068, %v1068
      %v1252 = vpack.c.bf16 %v1071, %v1071
      %v1253 = vpack.c.bf16 %v1073, %v1073
      %v1254 = vpack.c.bf16 %v1076, %v1076
      %v1255 = vpack.c.bf16 %v1078, %v1078
      %v1256 = vpack.c.bf16 %v1081, %v1081
      %v1257 = vpack.c.bf16 %v1083, %v1083
      %v1258 = vpack.c.bf16 %v1086, %v1086
      %v1259 = vpack.c.bf16 %v1088, %v1088
      %v1260 = vpack.c.bf16 %v1091, %v1091
      %v1261 = vpack.c.bf16 %v1093, %v1093
      %v1262 = vpack.c.bf16 %v1096, %v1096
      %v1263 = vpack.c.bf16 %v1098, %v1098
      %v1264 = vpack.c.bf16 %v1101, %v1101
      %v1265 = vpack.c.bf16 %v1103, %v1103
      %v1266 = vpack.c.bf16 %v1106, %v1106
      %v1267 = vpack.c.bf16 %v1108, %v1108
      %v1268 = vpack.c.bf16 %v1111, %v1111
      %v1269 = vpack.c.bf16 %v1113, %v1113
      %v1270 = vpack.c.bf16 %v1116, %v1116
      %v1271 = vpack.c.bf16 %v1118, %v1118
      %v1272 = vpack.c.bf16 %v1121, %v1121
      %v1273 = vpack.c.bf16 %v1123, %v1123
      %v1274 = vpack.c.bf16 %v1126, %v1126
      %v1275 = vpack.c.bf16 %v1128, %v1128
      %v1276 = vpack.c.bf16 %v1131, %v1131
      %v1277 = vpack.c.bf16 %v1133, %v1133
      %v1278 = vpack.c.bf16 %v1136, %v1136
      %v1279 = vpack.c.bf16 %v1138, %v1138
      %v1280 = vpack.c.bf16 %v1141, %v1141
      %v1281 = vpack.c.bf16 %v1143, %v1143
      %v1282 = vpack.c.bf16 %v1146, %v1146
      %v1283 = vpack.c.bf16 %v1148, %v1148
      %v1284 = vpack.c.bf16 %v1151, %v1151
      %v1285 = vpack.c.bf16 %v1153, %v1153
      %v1286 = vpack.c.bf16 %v1156, %v1156
      %v1287 = vpack.c.bf16 %v1158, %v1158
      %vm1288 = vcmask 60416
      %1289 = vst.msk [vmem:[%s172] sm:$0xf] %vm1288, %v1160
      %1290 = vst.msk [vmem:[%s172 + $0x4] sm:$0xf] %vm1288, %v1161
      %1291 = vst.msk [vmem:[%s172 + $0x8] sm:$0xf] %vm1288, %v1162
      %1292 = vst.msk [vmem:[%s172 + $0xc] sm:$0xf] %vm1288, %v1163
      %1293 = vst.msk [vmem:[%s172 + $0x10] sm:$0xf] %vm1288, %v1164
      %1294 = vst.msk [vmem:[%s172 + $0x14] sm:$0xf] %vm1288, %v1165
      %1295 = vst.msk [vmem:[%s172 + $0x18] sm:$0xf] %vm1288, %v1166
      %1296 = vst.msk [vmem:[%s172 + $0x1c] sm:$0xf] %vm1288, %v1167
      %1297 = vst.msk [vmem:[%s172 + $0x20] sm:$0xf] %vm1288, %v1168
      %1298 = vst.msk [vmem:[%s172 + $0x24] sm:$0xf] %vm1288, %v1169
      %1299 = vst.msk [vmem:[%s172 + $0x28] sm:$0xf] %vm1288, %v1170
      %1300 = vst.msk [vmem:[%s172 + $0x2c] sm:$0xf] %vm1288, %v1171
      %1301 = vst.msk [vmem:[%s172 + $0x30] sm:$0xf] %vm1288, %v1172
      %1302 = vst.msk [vmem:[%s172 + $0x34] sm:$0xf] %vm1288, %v1173
      %1303 = vst.msk [vmem:[%s172 + $0x38] sm:$0xf] %vm1288, %v1174
      %1304 = vst.msk [vmem:[%s172 + $0x3c] sm:$0xf] %vm1288, %v1175
      %1305 = vst.msk [vmem:[%s172 + $0x40] sm:$0xf] %vm1288, %v1176
      %1306 = vst.msk [vmem:[%s172 + $0x44] sm:$0xf] %vm1288, %v1177
      %1307 = vst.msk [vmem:[%s172 + $0x48] sm:$0xf] %vm1288, %v1178
      %1308 = vst.msk [vmem:[%s172 + $0x4c] sm:$0xf] %vm1288, %v1179
      %1309 = vst.msk [vmem:[%s172 + $0x50] sm:$0xf] %vm1288, %v1180
      %1310 = vst.msk [vmem:[%s172 + $0x54] sm:$0xf] %vm1288, %v1181
      %1311 = vst.msk [vmem:[%s172 + $0x58] sm:$0xf] %vm1288, %v1182
      %1312 = vst.msk [vmem:[%s172 + $0x5c] sm:$0xf] %vm1288, %v1183
      %1313 = vst.msk [vmem:[%s172 + $0x60] sm:$0xf] %vm1288, %v1184
      %1314 = vst.msk [vmem:[%s172 + $0x64] sm:$0xf] %vm1288, %v1185
      %1315 = vst.msk [vmem:[%s172 + $0x68] sm:$0xf] %vm1288, %v1186
      %1316 = vst.msk [vmem:[%s172 + $0x6c] sm:$0xf] %vm1288, %v1187
      %1317 = vst.msk [vmem:[%s172 + $0x70] sm:$0xf] %vm1288, %v1188
      %1318 = vst.msk [vmem:[%s172 + $0x74] sm:$0xf] %vm1288, %v1189
      %1319 = vst.msk [vmem:[%s172 + $0x78] sm:$0xf] %vm1288, %v1190
      %1320 = vst.msk [vmem:[%s172 + $0x7c] sm:$0xf] %vm1288, %v1191
      %1321 = vst.msk [vmem:[%s172 + $0x80] sm:$0xf] %vm1288, %v1192
      %1322 = vst.msk [vmem:[%s172 + $0x84] sm:$0xf] %vm1288, %v1193
      %1323 = vst.msk [vmem:[%s172 + $0x88] sm:$0xf] %vm1288, %v1194
      %1324 = vst.msk [vmem:[%s172 + $0x8c] sm:$0xf] %vm1288, %v1195
      %1325 = vst.msk [vmem:[%s172 + $0x90] sm:$0xf] %vm1288, %v1196
      %1326 = vst.msk [vmem:[%s172 + $0x94] sm:$0xf] %vm1288, %v1197
      %1327 = vst.msk [vmem:[%s172 + $0x98] sm:$0xf] %vm1288, %v1198
      %1328 = vst.msk [vmem:[%s172 + $0x9c] sm:$0xf] %vm1288, %v1199
      %1329 = vst.msk [vmem:[%s172 + $0xa0] sm:$0xf] %vm1288, %v1200
      %1330 = vst.msk [vmem:[%s172 + $0xa4] sm:$0xf] %vm1288, %v1201
      %1331 = vst.msk [vmem:[%s172 + $0xa8] sm:$0xf] %vm1288, %v1202
      %1332 = vst.msk [vmem:[%s172 + $0xac] sm:$0xf] %vm1288, %v1203
      %1333 = vst.msk [vmem:[%s172 + $0xb0] sm:$0xf] %vm1288, %v1204
      %1334 = vst.msk [vmem:[%s172 + $0xb4] sm:$0xf] %vm1288, %v1205
      %1335 = vst.msk [vmem:[%s172 + $0xb8] sm:$0xf] %vm1288, %v1206
      %1336 = vst.msk [vmem:[%s172 + $0xbc] sm:$0xf] %vm1288, %v1207
      %1337 = vst.msk [vmem:[%s172 + $0xc0] sm:$0xf] %vm1288, %v1208
      %1338 = vst.msk [vmem:[%s172 + $0xc4] sm:$0xf] %vm1288, %v1209
      %1339 = vst.msk [vmem:[%s172 + $0xc8] sm:$0xf] %vm1288, %v1210
      %1340 = vst.msk [vmem:[%s172 + $0xcc] sm:$0xf] %vm1288, %v1211
      %1341 = vst.msk [vmem:[%s172 + $0xd0] sm:$0xf] %vm1288, %v1212
      %1342 = vst.msk [vmem:[%s172 + $0xd4] sm:$0xf] %vm1288, %v1213
      %1343 = vst.msk [vmem:[%s172 + $0xd8] sm:$0xf] %vm1288, %v1214
      %1344 = vst.msk [vmem:[%s172 + $0xdc] sm:$0xf] %vm1288, %v1215
      %1345 = vst.msk [vmem:[%s172 + $0xe0] sm:$0xf] %vm1288, %v1216
      %1346 = vst.msk [vmem:[%s172 + $0xe4] sm:$0xf] %vm1288, %v1217
      %1347 = vst.msk [vmem:[%s172 + $0xe8] sm:$0xf] %vm1288, %v1218
      %1348 = vst.msk [vmem:[%s172 + $0xec] sm:$0xf] %vm1288, %v1219
      %1349 = vst.msk [vmem:[%s172 + $0xf0] sm:$0xf] %vm1288, %v1220
      %1350 = vst.msk [vmem:[%s172 + $0xf4] sm:$0xf] %vm1288, %v1221
      %1351 = vst.msk [vmem:[%s172 + $0xf8] sm:$0xf] %vm1288, %v1222
      %1352 = vst.msk [vmem:[%s172 + $0xfc] sm:$0xf] %vm1288, %v1223
      %1353 = vst.msk [vmem:[%s172 + $0x100] sm:$0xf] %vm1288, %v1224
      %1354 = vst.msk [vmem:[%s172 + $0x104] sm:$0xf] %vm1288, %v1225
      %1355 = vst.msk [vmem:[%s172 + $0x108] sm:$0xf] %vm1288, %v1226
      %1356 = vst.msk [vmem:[%s172 + $0x10c] sm:$0xf] %vm1288, %v1227
      %1357 = vst.msk [vmem:[%s172 + $0x110] sm:$0xf] %vm1288, %v1228
      %1358 = vst.msk [vmem:[%s172 + $0x114] sm:$0xf] %vm1288, %v1229
      %1359 = vst.msk [vmem:[%s172 + $0x118] sm:$0xf] %vm1288, %v1230
      %1360 = vst.msk [vmem:[%s172 + $0x11c] sm:$0xf] %vm1288, %v1231
      %1361 = vst.msk [vmem:[%s172 + $0x120] sm:$0xf] %vm1288, %v1232
      %1362 = vst.msk [vmem:[%s172 + $0x124] sm:$0xf] %vm1288, %v1233
      %1363 = vst.msk [vmem:[%s172 + $0x128] sm:$0xf] %vm1288, %v1234
      %1364 = vst.msk [vmem:[%s172 + $0x12c] sm:$0xf] %vm1288, %v1235
      %1365 = vst.msk [vmem:[%s172 + $0x130] sm:$0xf] %vm1288, %v1236
      %1366 = vst.msk [vmem:[%s172 + $0x134] sm:$0xf] %vm1288, %v1237
      %1367 = vst.msk [vmem:[%s172 + $0x138] sm:$0xf] %vm1288, %v1238
      %1368 = vst.msk [vmem:[%s172 + $0x13c] sm:$0xf] %vm1288, %v1239
      %1369 = vst.msk [vmem:[%s172 + $0x140] sm:$0xf] %vm1288, %v1240
      %1370 = vst.msk [vmem:[%s172 + $0x144] sm:$0xf] %vm1288, %v1241
      %1371 = vst.msk [vmem:[%s172 + $0x148] sm:$0xf] %vm1288, %v1242
      %1372 = vst.msk [vmem:[%s172 + $0x14c] sm:$0xf] %vm1288, %v1243
      %1373 = vst.msk [vmem:[%s172 + $0x150] sm:$0xf] %vm1288, %v1244
      %1374 = vst.msk [vmem:[%s172 + $0x154] sm:$0xf] %vm1288, %v1245
      %1375 = vst.msk [vmem:[%s172 + $0x158] sm:$0xf] %vm1288, %v1246
      %1376 = vst.msk [vmem:[%s172 + $0x15c] sm:$0xf] %vm1288, %v1247
      %1377 = vst.msk [vmem:[%s172 + $0x160] sm:$0xf] %vm1288, %v1248
      %1378 = vst.msk [vmem:[%s172 + $0x164] sm:$0xf] %vm1288, %v1249
      %1379 = vst.msk [vmem:[%s172 + $0x168] sm:$0xf] %vm1288, %v1250
      %1380 = vst.msk [vmem:[%s172 + $0x16c] sm:$0xf] %vm1288, %v1251
      %1381 = vst.msk [vmem:[%s172 + $0x170] sm:$0xf] %vm1288, %v1252
      %1382 = vst.msk [vmem:[%s172 + $0x174] sm:$0xf] %vm1288, %v1253
      %1383 = vst.msk [vmem:[%s172 + $0x178] sm:$0xf] %vm1288, %v1254
      %1384 = vst.msk [vmem:[%s172 + $0x17c] sm:$0xf] %vm1288, %v1255
      %1385 = vst.msk [vmem:[%s172 + $0x180] sm:$0xf] %vm1288, %v1256
      %1386 = vst.msk [vmem:[%s172 + $0x184] sm:$0xf] %vm1288, %v1257
      %1387 = vst.msk [vmem:[%s172 + $0x188] sm:$0xf] %vm1288, %v1258
      %1388 = vst.msk [vmem:[%s172 + $0x18c] sm:$0xf] %vm1288, %v1259
      %1389 = vst.msk [vmem:[%s172 + $0x190] sm:$0xf] %vm1288, %v1260
      %1390 = vst.msk [vmem:[%s172 + $0x194] sm:$0xf] %vm1288, %v1261
      %1391 = vst.msk [vmem:[%s172 + $0x198] sm:$0xf] %vm1288, %v1262
      %1392 = vst.msk [vmem:[%s172 + $0x19c] sm:$0xf] %vm1288, %v1263
      %1393 = vst.msk [vmem:[%s172 + $0x1a0] sm:$0xf] %vm1288, %v1264
      %1394 = vst.msk [vmem:[%s172 + $0x1a4] sm:$0xf] %vm1288, %v1265
      %1395 = vst.msk [vmem:[%s172 + $0x1a8] sm:$0xf] %vm1288, %v1266
      %1396 = vst.msk [vmem:[%s172 + $0x1ac] sm:$0xf] %vm1288, %v1267
      %1397 = vst.msk [vmem:[%s172 + $0x1b0] sm:$0xf] %vm1288, %v1268
      %1398 = vst.msk [vmem:[%s172 + $0x1b4] sm:$0xf] %vm1288, %v1269
      %1399 = vst.msk [vmem:[%s172 + $0x1b8] sm:$0xf] %vm1288, %v1270
      %1400 = vst.msk [vmem:[%s172 + $0x1bc] sm:$0xf] %vm1288, %v1271
      %1401 = vst.msk [vmem:[%s172 + $0x1c0] sm:$0xf] %vm1288, %v1272
      %1402 = vst.msk [vmem:[%s172 + $0x1c4] sm:$0xf] %vm1288, %v1273
      %1403 = vst.msk [vmem:[%s172 + $0x1c8] sm:$0xf] %vm1288, %v1274
      %1404 = vst.msk [vmem:[%s172 + $0x1cc] sm:$0xf] %vm1288, %v1275
      %1405 = vst.msk [vmem:[%s172 + $0x1d0] sm:$0xf] %vm1288, %v1276
      %1406 = vst.msk [vmem:[%s172 + $0x1d4] sm:$0xf] %vm1288, %v1277
      %1407 = vst.msk [vmem:[%s172 + $0x1d8] sm:$0xf] %vm1288, %v1278
      %1408 = vst.msk [vmem:[%s172 + $0x1dc] sm:$0xf] %vm1288, %v1279
      %1409 = vst.msk [vmem:[%s172 + $0x1e0] sm:$0xf] %vm1288, %v1280
      %1410 = vst.msk [vmem:[%s172 + $0x1e4] sm:$0xf] %vm1288, %v1281
      %1411 = vst.msk [vmem:[%s172 + $0x1e8] sm:$0xf] %vm1288, %v1282
      %1412 = vst.msk [vmem:[%s172 + $0x1ec] sm:$0xf] %vm1288, %v1283
      %1413 = vst.msk [vmem:[%s172 + $0x1f0] sm:$0xf] %vm1288, %v1284
      %1414 = vst.msk [vmem:[%s172 + $0x1f4] sm:$0xf] %vm1288, %v1285
      %1415 = vst.msk [vmem:[%s172 + $0x1f8] sm:$0xf] %vm1288, %v1286
      %1416 = vst.msk [vmem:[%s172 + $0x1fc] sm:$0xf] %vm1288, %v1287
      %s1417 = smul.u32 128, %s14
      %p1418 = scmp.lt.s32.totalorder %s1417, 255
      %s1419 = scalar_select %p1418, %s1417, 255
      %s1420 = smul.addr %s1419, 4
      %s1421 = scalar_lea.vmem %s3, %s1420
      // Predicated region
      $region33: #{_lambda_.8} parent=31 // pred_check
        %p1422 = pneg %p100
      $region34: #{_lambda_.8} parent=31 // pred_check_branch
        %1424 = sbr.rel (%p1422) target = $region36
      $region35: #{_lambda_.8} parent=31 // pred_region
        %s1425 = smul.u32 128, %s14
      $region36: #{_lambda_.8} parent=31 // pred_fallthru
        _
    $region32: #{_lambda_.8} parent=5 // pred_fallthru
      _
    %p1426 = scmp.le.s32.totalorder 2, %s9
    // Predicated region
    $region37: #{_lambda_.8} parent=5 // pred_check
      %p1427 = pneg %p1426
    $region38: #{_lambda_.8} parent=5 // pred_check_branch
      %1429 = sbr.rel (%p1427) target = $region40
    $region39: #{_lambda_.8} parent=5 // pred_region
      %s1430 = ssub.s32 %s9, 2
      // Predicated region
      $region41: #{_lambda_.8} parent=39 // pred_check
        %p1431 = pneg %p106
      $region42: #{_lambda_.8} parent=39 // pred_check_branch
        %1433 = sbr.rel (%p1431) target = $region44
      $region43: #{_lambda_.8} parent=39 // pred_region
        %s1434 = smul.u32 128, %s15
        %p1435 = scmp.lt.s32.totalorder %s1434, 255
        %s1436 = scalar_select %p1435, %s1434, 255
        %s1437 = smul.addr %s1436, 4
        %s1438 = scalar_lea.vmem %s3, %s1437
      $region44: #{_lambda_.8} parent=39 // pred_fallthru
        _
    $region40: #{_lambda_.8} parent=5 // pred_fallthru
      _
  $region6: #{_lambda_.8} parent=0 // loop_footer
    %s13 = sadd.s32 1, %s9
  $region7: #{_lambda_.8} parent=0 // loop_footer_branch
    %8 = sbr.rel target = $region3
  $region8: #{_lambda_.8} parent=0 // loop_exit
    _

// kernel: _lambda_.7
$region0: #{_lambda_.7}
  #allocation0 [shape = 'u32[]', space=smem, size = 0x4, offset = 0x4, fixed_abs, tag = 'smem constant byte address 0x4 - core index']
  #allocation1 [shape = 'u32[72,128]{1,0:T(1,128)}', space=vmem, size = 0x9000, scoped, tag = 'internal scratch']
  %s0 = inlined_call_operand.vmem [shape: bf16[2048,27], index: 0, kind: input, shape index: {}]
  %s1 = inlined_call_operand.vmem [shape: bf16[27,12], index: 1, kind: input, shape index: {}]
  %s2 = inlined_call_operand.vmem [shape: f32[1,12], index: 2, kind: input, shape index: {}]
  %s3 = inlined_call_operand.vmem [shape: bf16[2048,12], index: 3, kind: output, shape index: {}]
  %s4 = sld [smem:[#allocation0]]
  $region45: #{_lambda_.7} parent=0
    _
  %s6 = ssub.s32 1, %s4
  %s7 = scalar_select 0, %s6, %s4
  loop: start=0, step=1, limit=4
  $region2: #{_lambda_.7} parent=0 // loop_pre_header
    _
  $region3: #{_lambda_.7} parent=0 // loop_header
    %s9 = sphi 0, %s13
    %p10 = scmp.ge.s32.totalorder %s9, 4
    %s19 = sphi 0, %s21
    %s22 = sphi 0, %s19
    %s23 = sphi 0, %s22
    %s39 = sphi 0, %s23
    %s43 = sphi 0, %s43
    %s45 = sphi 0, %s43
    %s46 = sphi 0, %s45
    %s60 = sphi 0, %s46
    %s64 = sphi 0, %s64
    %s66 = sphi 0, %s64
    %s67 = sphi 0, %s66
    %s81 = sphi 0, %s67
    %s87 = sphi 0, %s89
    %s90 = sphi 0, %s87
    %s91 = sphi 0, %s90
    %s107 = sphi 0, %s91
  $region4: #{_lambda_.7} parent=0 // loop_header_branch
    %12 = sbr.rel (%p10) target = $region8
  $region5: #{_lambda_.7} parent=0 // loop_body
    %s14 = ssub.s32 %s9, 1
    %s15 = ssub.s32 %s9, 2
    %s16 = sadd.s32 %s9, 1
    %s17 = ssub.s32 %s9, %s16
    %p18 = scmp.eq.s32.totalorder %s17, 0
    %s20 = sadd.s32 %s19, 1
    %s21 = scalar_select %p18, %s19, %s20
    %p24 = pneg %p18
    %p25 = scmp.eq.s32.totalorder %s9, 1
    %p26 = por %p24, %p25
    %p27 = scmp.ne.s32.totalorder %s19, %s22
    %p28 = scmp.eq.s32.totalorder %s9, 0
    %p29 = por %p27, %p28
    %p30 = scmp.ne.s32.totalorder %s19, %s22
    %p31 = scmp.eq.s32.totalorder %s14, 1
    %p32 = por %p30, %p31
    %p33 = scmp.ne.s32.totalorder %s22, %s23
    %p34 = scmp.eq.s32.totalorder %s14, 0
    %p35 = por %p33, %p34
    %p36 = scmp.ne.s32.totalorder %s22, %s23
    %p37 = scmp.eq.s32.totalorder %s15, 1
    %p38 = por %p36, %p37
    %p40 = scmp.ne.s32.totalorder %s23, %s39
    %p41 = scmp.eq.s32.totalorder %s15, 0
    %p42 = por %p40, %p41
    %s44 = sadd.s32 %s43, 1
    %p47 = scmp.eq.s32.totalorder %s9, 1
    %p48 = scmp.ne.s32.totalorder %s43, %s45
    %p49 = scmp.eq.s32.totalorder %s9, 0
    %p50 = por %p48, %p49
    %p51 = scmp.ne.s32.totalorder %s43, %s45
    %p52 = scmp.eq.s32.totalorder %s14, 1
    %p53 = por %p51, %p52
    %p54 = scmp.ne.s32.totalorder %s45, %s46
    %p55 = scmp.eq.s32.totalorder %s14, 0
    %p56 = por %p54, %p55
    %p57 = scmp.ne.s32.totalorder %s45, %s46
    %p58 = scmp.eq.s32.totalorder %s15, 1
    %p59 = por %p57, %p58
    %p61 = scmp.ne.s32.totalorder %s46, %s60
    %p62 = scmp.eq.s32.totalorder %s15, 0
    %p63 = por %p61, %p62
    %s65 = sadd.s32 %s64, 1
    %p68 = scmp.eq.s32.totalorder %s9, 1
    %p69 = scmp.ne.s32.totalorder %s64, %s66
    %p70 = scmp.eq.s32.totalorder %s9, 0
    %p71 = por %p69, %p70
    %p72 = scmp.ne.s32.totalorder %s64, %s66
    %p73 = scmp.eq.s32.totalorder %s14, 1
    %p74 = por %p72, %p73
    %p75 = scmp.ne.s32.totalorder %s66, %s67
    %p76 = scmp.eq.s32.totalorder %s14, 0
    %p77 = por %p75, %p76
    %p78 = scmp.ne.s32.totalorder %s66, %s67
    %p79 = scmp.eq.s32.totalorder %s15, 1
    %p80 = por %p78, %p79
    %p82 = scmp.ne.s32.totalorder %s67, %s81
    %p83 = scmp.eq.s32.totalorder %s15, 0
    %p84 = por %p82, %p83
    %s85 = ssub.s32 %s9, %s16
    %p86 = scmp.eq.s32.totalorder %s85, 0
    %s88 = sadd.s32 %s87, 1
    %s89 = scalar_select %p86, %s87, %s88
    %p92 = pneg %p86
    %p93 = scmp.eq.s32.totalorder %s9, 1
    %p94 = por %p92, %p93
    %p95 = scmp.ne.s32.totalorder %s87, %s90
    %p96 = scmp.eq.s32.totalorder %s9, 0
    %p97 = por %p95, %p96
    %p98 = scmp.ne.s32.totalorder %s87, %s90
    %p99 = scmp.eq.s32.totalorder %s14, 1
    %p100 = por %p98, %p99
    %p101 = scmp.ne.s32.totalorder %s90, %s91
    %p102 = scmp.eq.s32.totalorder %s14, 0
    %p103 = por %p101, %p102
    %p104 = scmp.ne.s32.totalorder %s90, %s91
    %p105 = scmp.eq.s32.totalorder %s15, 1
    %p106 = por %p104, %p105
    %p108 = scmp.ne.s32.totalorder %s91, %s107
    %p109 = scmp.eq.s32.totalorder %s15, 0
    %p110 = por %p108, %p109
    %p111 = scmp.le.s32.totalorder 1, %s9
    %p112 = scmp.lt.s32.totalorder %s9, 3
    %p113 = pnand %p111, %p112
    %p114 = pneg %p113
    // Predicated region
    $region9: #{_lambda_.7} parent=5 // pred_check
      _
    $region10: #{_lambda_.7} parent=5 // pred_check_branch
      %116 = sbr.rel (%p113) target = $region12
    $region11: #{_lambda_.7} parent=5 // pred_region
      %s117 = ssub.s32 %s9, 1
      // Predicated region
      $region13: #{_lambda_.7} parent=11 // pred_check
        %p118 = pneg %p56
      $region14: #{_lambda_.7} parent=11 // pred_check_branch
        %120 = sbr.rel (%p118) target = $region16
      $region15: #{_lambda_.7} parent=11 // pred_region
        _
      $region16: #{_lambda_.7} parent=11 // pred_fallthru
        _
      // Predicated region
      $region17: #{_lambda_.7} parent=11 // pred_check
        %p121 = pneg %p77
      $region18: #{_lambda_.7} parent=11 // pred_check_branch
        %123 = sbr.rel (%p121) target = $region20
      $region19: #{_lambda_.7} parent=11 // pred_region
        _
      $region20: #{_lambda_.7} parent=11 // pred_fallthru
        _
    $region12: #{_lambda_.7} parent=5 // pred_fallthru
      _
    %p124 = scmp.lt.s32.totalorder %s9, 2
    // Predicated region
    $region21: #{_lambda_.7} parent=5 // pred_check
      %p125 = pneg %p124
    $region22: #{_lambda_.7} parent=5 // pred_check_branch
      %127 = sbr.rel (%p125) target = $region24
    $region23: #{_lambda_.7} parent=5 // pred_region
      // Predicated region
      $region25: #{_lambda_.7} parent=23 // pred_check
        %p128 = pneg %p29
      $region26: #{_lambda_.7} parent=23 // pred_check_branch
        %130 = sbr.rel (%p128) target = $region28
      $region27: #{_lambda_.7} parent=23 // pred_region
        %s131 = smul.u32 128, %s9
        %p132 = scmp.lt.s32.totalorder %s131, 255
        %s133 = scalar_select %p132, %s131, 255
        %s134 = smul.addr %s133, 4
        %s135 = scalar_lea.vmem %s0, %s134
        %s136 = smul.u32 128, %s9
      $region28: #{_lambda_.7} parent=23 // pred_fallthru
        _
    $region24: #{_lambda_.7} parent=5 // pred_fallthru
      _
    %p137 = scmp.le.s32.totalorder 1, %s9
    %p138 = scmp.lt.s32.totalorder %s9, 3
    %p139 = pnand %p137, %p138
    %p140 = pneg %p139
    // Predicated region
    $region29: #{_lambda_.7} parent=5 // pred_check
      _
    $region30: #{_lambda_.7} parent=5 // pred_check_branch
      %142 = sbr.rel (%p139) target = $region32
    $region31: #{_lambda_.7} parent=5 // pred_region
      %s143 = ssub.s32 %s9, 1
      %s144 = smul.u32 128, %s14
      %p145 = scmp.lt.s32.totalorder %s144, 255
      %s146 = scalar_select %p145, %s144, 255
      %s147 = smul.addr %s146, 4
      %s148 = scalar_lea.vmem %s0, %s147
      %p149 = pneg %p35
      %p150 = pneg %p32
      %p151 = pneg %p56
      %p152 = pneg %p53
      %p153 = pneg %p77
      %p154 = pneg %p74
      %p155 = pneg %p103
      %p156 = pneg %p100
      %s157 = smul.u32 128, %s14
      %p158 = scmp.lt.s32.totalorder %s157, 255
      %s159 = scalar_select %p158, %s157, 255
      %s160 = smul.addr %s159, 4
      %s161 = scalar_lea.vmem %s3, %s160
      %s162 = smul.u32 128, %s14
      %p163 = scmp.lt.s32.totalorder %s162, 255
      %s164 = scalar_select %p163, %s162, 255
      %s165 = smul.addr %s164, 4
      %s166 = scalar_lea.vmem %s0, %s165
      %s167 = smul.u32 128, %s14
      %s168 = smul.u32 128, %s14
      %p169 = scmp.lt.s32.totalorder %s168, 255
      %s170 = scalar_select %p169, %s168, 255
      %s171 = smul.addr %s170, 4
      %s172 = scalar_lea.vmem %s3, %s171
      %s173 = smul.u32 128, %s14
      %v175 = vld [vmem:[%s166] sm:$0xf]
      %v176 = vld [vmem:[%s166 + $0x4] sm:$0xf]
      %v177 = vld [vmem:[%s166 + $0x8] sm:$0xf]
      %v178 = vld [vmem:[%s166 + $0xc] sm:$0xf]
      %v179 = vld [vmem:[%s166 + $0x10] sm:$0xf]
      %v180 = vld [vmem:[%s166 + $0x14] sm:$0xf]
      %v181 = vld [vmem:[%s166 + $0x18] sm:$0xf]
      %v182 = vld [vmem:[%s166 + $0x1c] sm:$0xf]
      %v183 = vld [vmem:[%s166 + $0x20] sm:$0xf]
      %v184 = vld [vmem:[%s166 + $0x24] sm:$0xf]
      %v185 = vld [vmem:[%s166 + $0x28] sm:$0xf]
      %v186 = vld [vmem:[%s166 + $0x2c] sm:$0xf]
      %v187 = vld [vmem:[%s166 + $0x30] sm:$0xf]
      %v188 = vld [vmem:[%s166 + $0x34] sm:$0xf]
      %v189 = vld [vmem:[%s166 + $0x38] sm:$0xf]
      %v190 = vld [vmem:[%s166 + $0x3c] sm:$0xf]
      %v191 = vld [vmem:[%s166 + $0x40] sm:$0xf]
      %v192 = vld [vmem:[%s166 + $0x44] sm:$0xf]
      %v193 = vld [vmem:[%s166 + $0x48] sm:$0xf]
      %v194 = vld [vmem:[%s166 + $0x4c] sm:$0xf]
      %v195 = vld [vmem:[%s166 + $0x50] sm:$0xf]
      %v196 = vld [vmem:[%s166 + $0x54] sm:$0xf]
      %v197 = vld [vmem:[%s166 + $0x58] sm:$0xf]
      %v198 = vld [vmem:[%s166 + $0x5c] sm:$0xf]
      %v199 = vld [vmem:[%s166 + $0x60] sm:$0xf]
      %v200 = vld [vmem:[%s166 + $0x64] sm:$0xf]
      %v201 = vld [vmem:[%s166 + $0x68] sm:$0xf]
      %v202 = vld [vmem:[%s166 + $0x6c] sm:$0xf]
      %v203 = vld [vmem:[%s166 + $0x70] sm:$0xf]
      %v204 = vld [vmem:[%s166 + $0x74] sm:$0xf]
      %v205 = vld [vmem:[%s166 + $0x78] sm:$0xf]
      %v206 = vld [vmem:[%s166 + $0x7c] sm:$0xf]
      %v207 = vld [vmem:[%s166 + $0x80] sm:$0xf]
      %v208 = vld [vmem:[%s166 + $0x84] sm:$0xf]
      %v209 = vld [vmem:[%s166 + $0x88] sm:$0xf]
      %v210 = vld [vmem:[%s166 + $0x8c] sm:$0xf]
      %v211 = vld [vmem:[%s166 + $0x90] sm:$0xf]
      %v212 = vld [vmem:[%s166 + $0x94] sm:$0xf]
      %v213 = vld [vmem:[%s166 + $0x98] sm:$0xf]
      %v214 = vld [vmem:[%s166 + $0x9c] sm:$0xf]
      %v215 = vld [vmem:[%s166 + $0xa0] sm:$0xf]
      %v216 = vld [vmem:[%s166 + $0xa4] sm:$0xf]
      %v217 = vld [vmem:[%s166 + $0xa8] sm:$0xf]
      %v218 = vld [vmem:[%s166 + $0xac] sm:$0xf]
      %v219 = vld [vmem:[%s166 + $0xb0] sm:$0xf]
      %v220 = vld [vmem:[%s166 + $0xb4] sm:$0xf]
      %v221 = vld [vmem:[%s166 + $0xb8] sm:$0xf]
      %v222 = vld [vmem:[%s166 + $0xbc] sm:$0xf]
      %v223 = vld [vmem:[%s166 + $0xc0] sm:$0xf]
      %v224 = vld [vmem:[%s166 + $0xc4] sm:$0xf]
      %v225 = vld [vmem:[%s166 + $0xc8] sm:$0xf]
      %v226 = vld [vmem:[%s166 + $0xcc] sm:$0xf]
      %v227 = vld [vmem:[%s166 + $0xd0] sm:$0xf]
      %v228 = vld [vmem:[%s166 + $0xd4] sm:$0xf]
      %v229 = vld [vmem:[%s166 + $0xd8] sm:$0xf]
      %v230 = vld [vmem:[%s166 + $0xdc] sm:$0xf]
      %v231 = vld [vmem:[%s166 + $0xe0] sm:$0xf]
      %v232 = vld [vmem:[%s166 + $0xe4] sm:$0xf]
      %v233 = vld [vmem:[%s166 + $0xe8] sm:$0xf]
      %v234 = vld [vmem:[%s166 + $0xec] sm:$0xf]
      %v235 = vld [vmem:[%s166 + $0xf0] sm:$0xf]
      %v236 = vld [vmem:[%s166 + $0xf4] sm:$0xf]
      %v237 = vld [vmem:[%s166 + $0xf8] sm:$0xf]
      %v238 = vld [vmem:[%s166 + $0xfc] sm:$0xf]
      %v239 = vld [vmem:[%s166 + $0x100] sm:$0xf]
      %v240 = vld [vmem:[%s166 + $0x104] sm:$0xf]
      %v241 = vld [vmem:[%s166 + $0x108] sm:$0xf]
      %v242 = vld [vmem:[%s166 + $0x10c] sm:$0xf]
      %v243 = vld [vmem:[%s166 + $0x110] sm:$0xf]
      %v244 = vld [vmem:[%s166 + $0x114] sm:$0xf]
      %v245 = vld [vmem:[%s166 + $0x118] sm:$0xf]
      %v246 = vld [vmem:[%s166 + $0x11c] sm:$0xf]
      %v247 = vld [vmem:[%s166 + $0x120] sm:$0xf]
      %v248 = vld [vmem:[%s166 + $0x124] sm:$0xf]
      %v249 = vld [vmem:[%s166 + $0x128] sm:$0xf]
      %v250 = vld [vmem:[%s166 + $0x12c] sm:$0xf]
      %v251 = vld [vmem:[%s166 + $0x130] sm:$0xf]
      %v252 = vld [vmem:[%s166 + $0x134] sm:$0xf]
      %v253 = vld [vmem:[%s166 + $0x138] sm:$0xf]
      %v254 = vld [vmem:[%s166 + $0x13c] sm:$0xf]
      %v255 = vld [vmem:[%s166 + $0x140] sm:$0xf]
      %v256 = vld [vmem:[%s166 + $0x144] sm:$0xf]
      %v257 = vld [vmem:[%s166 + $0x148] sm:$0xf]
      %v258 = vld [vmem:[%s166 + $0x14c] sm:$0xf]
      %v259 = vld [vmem:[%s166 + $0x150] sm:$0xf]
      %v260 = vld [vmem:[%s166 + $0x154] sm:$0xf]
      %v261 = vld [vmem:[%s166 + $0x158] sm:$0xf]
      %v262 = vld [vmem:[%s166 + $0x15c] sm:$0xf]
      %v263 = vld [vmem:[%s166 + $0x160] sm:$0xf]
      %v264 = vld [vmem:[%s166 + $0x164] sm:$0xf]
      %v265 = vld [vmem:[%s166 + $0x168] sm:$0xf]
      %v266 = vld [vmem:[%s166 + $0x16c] sm:$0xf]
      %v267 = vld [vmem:[%s166 + $0x170] sm:$0xf]
      %v268 = vld [vmem:[%s166 + $0x174] sm:$0xf]
      %v269 = vld [vmem:[%s166 + $0x178] sm:$0xf]
      %v270 = vld [vmem:[%s166 + $0x17c] sm:$0xf]
      %v271 = vld [vmem:[%s166 + $0x180] sm:$0xf]
      %v272 = vld [vmem:[%s166 + $0x184] sm:$0xf]
      %v273 = vld [vmem:[%s166 + $0x188] sm:$0xf]
      %v274 = vld [vmem:[%s166 + $0x18c] sm:$0xf]
      %v275 = vld [vmem:[%s166 + $0x190] sm:$0xf]
      %v276 = vld [vmem:[%s166 + $0x194] sm:$0xf]
      %v277 = vld [vmem:[%s166 + $0x198] sm:$0xf]
      %v278 = vld [vmem:[%s166 + $0x19c] sm:$0xf]
      %v279 = vld [vmem:[%s166 + $0x1a0] sm:$0xf]
      %v280 = vld [vmem:[%s166 + $0x1a4] sm:$0xf]
      %v281 = vld [vmem:[%s166 + $0x1a8] sm:$0xf]
      %v282 = vld [vmem:[%s166 + $0x1ac] sm:$0xf]
      %v283 = vld [vmem:[%s166 + $0x1b0] sm:$0xf]
      %v284 = vld [vmem:[%s166 + $0x1b4] sm:$0xf]
      %v285 = vld [vmem:[%s166 + $0x1b8] sm:$0xf]
      %v286 = vld [vmem:[%s166 + $0x1bc] sm:$0xf]
      %v287 = vld [vmem:[%s166 + $0x1c0] sm:$0xf]
      %v288 = vld [vmem:[%s166 + $0x1c4] sm:$0xf]
      %v289 = vld [vmem:[%s166 + $0x1c8] sm:$0xf]
      %v290 = vld [vmem:[%s166 + $0x1cc] sm:$0xf]
      %v291 = vld [vmem:[%s166 + $0x1d0] sm:$0xf]
      %v292 = vld [vmem:[%s166 + $0x1d4] sm:$0xf]
      %v293 = vld [vmem:[%s166 + $0x1d8] sm:$0xf]
      %v294 = vld [vmem:[%s166 + $0x1dc] sm:$0xf]
      %v295 = vld [vmem:[%s166 + $0x1e0] sm:$0xf]
      %v296 = vld [vmem:[%s166 + $0x1e4] sm:$0xf]
      %v297 = vld [vmem:[%s166 + $0x1e8] sm:$0xf]
      %v298 = vld [vmem:[%s166 + $0x1ec] sm:$0xf]
      %v299 = vld [vmem:[%s166 + $0x1f0] sm:$0xf]
      %v300 = vld [vmem:[%s166 + $0x1f4] sm:$0xf]
      %v301 = vld [vmem:[%s166 + $0x1f8] sm:$0xf]
      %v302 = vld [vmem:[%s166 + $0x1fc] sm:$0xf]
      %v303 = vld [vmem:[%s1] sm:$0xf]
      %v304 = vld [vmem:[%s1 + $0x4] sm:$0xf]
      %v305 = vld [vmem:[%s1 + $0x8] sm:$0xf]
      %v306 = vld [vmem:[%s1 + $0xc] sm:$0x3]
      %v307 = vld [vmem:[%s2] sm:$0x1]
      %v309 = vperm.slane %v307, 0
      %v439 = vunpack.c.l.b16 %v175
      %v440 = vunpack.c.l.b16 %v176
      %v441 = vunpack.c.l.b16 %v177
      %v442 = vunpack.c.l.b16 %v178
      %v443 = vunpack.c.l.b16 %v179
      %v444 = vunpack.c.l.b16 %v180
      %v445 = vunpack.c.l.b16 %v181
      %v446 = vunpack.c.l.b16 %v182
      %v447 = vunpack.c.l.b16 %v183
      %v448 = vunpack.c.l.b16 %v184
      %v449 = vunpack.c.l.b16 %v185
      %v450 = vunpack.c.l.b16 %v186
      %v451 = vunpack.c.l.b16 %v187
      %v452 = vunpack.c.l.b16 %v188
      %v453 = vunpack.c.l.b16 %v189
      %v454 = vunpack.c.l.b16 %v190
      %v455 = vunpack.c.l.b16 %v191
      %v456 = vunpack.c.l.b16 %v192
      %v457 = vunpack.c.l.b16 %v193
      %v458 = vunpack.c.l.b16 %v194
      %v459 = vunpack.c.l.b16 %v195
      %v460 = vunpack.c.l.b16 %v196
      %v461 = vunpack.c.l.b16 %v197
      %v462 = vunpack.c.l.b16 %v198
      %v463 = vunpack.c.l.b16 %v199
      %v464 = vunpack.c.l.b16 %v200
      %v465 = vunpack.c.l.b16 %v201
      %v466 = vunpack.c.l.b16 %v202
      %v467 = vunpack.c.l.b16 %v203
      %v468 = vunpack.c.l.b16 %v204
      %v469 = vunpack.c.l.b16 %v205
      %v470 = vunpack.c.l.b16 %v206
      %v471 = vunpack.c.l.b16 %v207
      %v472 = vunpack.c.l.b16 %v208
      %v473 = vunpack.c.l.b16 %v209
      %v474 = vunpack.c.l.b16 %v210
      %v475 = vunpack.c.l.b16 %v211
      %v476 = vunpack.c.l.b16 %v212
      %v477 = vunpack.c.l.b16 %v213
      %v478 = vunpack.c.l.b16 %v214
      %v479 = vunpack.c.l.b16 %v215
      %v480 = vunpack.c.l.b16 %v216
      %v481 = vunpack.c.l.b16 %v217
      %v482 = vunpack.c.l.b16 %v218
      %v483 = vunpack.c.l.b16 %v219
      %v484 = vunpack.c.l.b16 %v220
      %v485 = vunpack.c.l.b16 %v221
      %v486 = vunpack.c.l.b16 %v222
      %v487 = vunpack.c.l.b16 %v223
      %v488 = vunpack.c.l.b16 %v224
      %v489 = vunpack.c.l.b16 %v225
      %v490 = vunpack.c.l.b16 %v226
      %v491 = vunpack.c.l.b16 %v227
      %v492 = vunpack.c.l.b16 %v228
      %v493 = vunpack.c.l.b16 %v229
      %v494 = vunpack.c.l.b16 %v230
      %v495 = vunpack.c.l.b16 %v231
      %v496 = vunpack.c.l.b16 %v232
      %v497 = vunpack.c.l.b16 %v233
      %v498 = vunpack.c.l.b16 %v234
      %v499 = vunpack.c.l.b16 %v235
      %v500 = vunpack.c.l.b16 %v236
      %v501 = vunpack.c.l.b16 %v237
      %v502 = vunpack.c.l.b16 %v238
      %v503 = vunpack.c.l.b16 %v239
      %v504 = vunpack.c.l.b16 %v240
      %v505 = vunpack.c.l.b16 %v241
      %v506 = vunpack.c.l.b16 %v242
      %v507 = vunpack.c.l.b16 %v243
      %v508 = vunpack.c.l.b16 %v244
      %v509 = vunpack.c.l.b16 %v245
      %v510 = vunpack.c.l.b16 %v246
      %v511 = vunpack.c.l.b16 %v247
      %v512 = vunpack.c.l.b16 %v248
      %v513 = vunpack.c.l.b16 %v249
      %v514 = vunpack.c.l.b16 %v250
      %v515 = vunpack.c.l.b16 %v251
      %v516 = vunpack.c.l.b16 %v252
      %v517 = vunpack.c.l.b16 %v253
      %v518 = vunpack.c.l.b16 %v254
      %v519 = vunpack.c.l.b16 %v255
      %v520 = vunpack.c.l.b16 %v256
      %v521 = vunpack.c.l.b16 %v257
      %v522 = vunpack.c.l.b16 %v258
      %v523 = vunpack.c.l.b16 %v259
      %v524 = vunpack.c.l.b16 %v260
      %v525 = vunpack.c.l.b16 %v261
      %v526 = vunpack.c.l.b16 %v262
      %v527 = vunpack.c.l.b16 %v263
      %v528 = vunpack.c.l.b16 %v264
      %v529 = vunpack.c.l.b16 %v265
      %v530 = vunpack.c.l.b16 %v266
      %v531 = vunpack.c.l.b16 %v267
      %v532 = vunpack.c.l.b16 %v268
      %v533 = vunpack.c.l.b16 %v269
      %v534 = vunpack.c.l.b16 %v270
      %v535 = vunpack.c.l.b16 %v271
      %v536 = vunpack.c.l.b16 %v272
      %v537 = vunpack.c.l.b16 %v273
      %v538 = vunpack.c.l.b16 %v274
      %v539 = vunpack.c.l.b16 %v275
      %v540 = vunpack.c.l.b16 %v276
      %v541 = vunpack.c.l.b16 %v277
      %v542 = vunpack.c.l.b16 %v278
      %v543 = vunpack.c.l.b16 %v279
      %v544 = vunpack.c.l.b16 %v280
      %v545 = vunpack.c.l.b16 %v281
      %v546 = vunpack.c.l.b16 %v282
      %v547 = vunpack.c.l.b16 %v283
      %v548 = vunpack.c.l.b16 %v284
      %v549 = vunpack.c.l.b16 %v285
      %v550 = vunpack.c.l.b16 %v286
      %v551 = vunpack.c.l.b16 %v287
      %v552 = vunpack.c.l.b16 %v288
      %v553 = vunpack.c.l.b16 %v289
      %v554 = vunpack.c.l.b16 %v290
      %v555 = vunpack.c.l.b16 %v291
      %v556 = vunpack.c.l.b16 %v292
      %v557 = vunpack.c.l.b16 %v293
      %v558 = vunpack.c.l.b16 %v294
      %v559 = vunpack.c.l.b16 %v295
      %v560 = vunpack.c.l.b16 %v296
      %v561 = vunpack.c.l.b16 %v297
      %v562 = vunpack.c.l.b16 %v298
      %v563 = vunpack.c.l.b16 %v299
      %v564 = vunpack.c.l.b16 %v300
      %v565 = vunpack.c.l.b16 %v301
      %v566 = vunpack.c.l.b16 %v302
      %v567 = vpack.c.b16 %v440, %v439
      %v568 = vpack.c.b16 %v442, %v441
      %v569 = vpack.c.b16 %v444, %v443
      %v570 = vpack.c.b16 %v446, %v445
      %v571 = vpack.c.b16 %v448, %v447
      %v572 = vpack.c.b16 %v450, %v449
      %v573 = vpack.c.b16 %v452, %v451
      %v574 = vpack.c.b16 %v454, %v453
      %v575 = vpack.c.b16 %v456, %v455
      %v576 = vpack.c.b16 %v458, %v457
      %v577 = vpack.c.b16 %v460, %v459
      %v578 = vpack.c.b16 %v462, %v461
      %v579 = vpack.c.b16 %v464, %v463
      %v580 = vpack.c.b16 %v466, %v465
      %v581 = vpack.c.b16 %v468, %v467
      %v582 = vpack.c.b16 %v470, %v469
      %v583 = vpack.c.b16 %v472, %v471
      %v584 = vpack.c.b16 %v474, %v473
      %v585 = vpack.c.b16 %v476, %v475
      %v586 = vpack.c.b16 %v478, %v477
      %v587 = vpack.c.b16 %v480, %v479
      %v588 = vpack.c.b16 %v482, %v481
      %v589 = vpack.c.b16 %v484, %v483
      %v590 = vpack.c.b16 %v486, %v485
      %v591 = vpack.c.b16 %v488, %v487
      %v592 = vpack.c.b16 %v490, %v489
      %v593 = vpack.c.b16 %v492, %v491
      %v594 = vpack.c.b16 %v494, %v493
      %v595 = vpack.c.b16 %v496, %v495
      %v596 = vpack.c.b16 %v498, %v497
      %v597 = vpack.c.b16 %v500, %v499
      %v598 = vpack.c.b16 %v502, %v501
      %v599 = vpack.c.b16 %v504, %v503
      %v600 = vpack.c.b16 %v506, %v505
      %v601 = vpack.c.b16 %v508, %v507
      %v602 = vpack.c.b16 %v510, %v509
      %v603 = vpack.c.b16 %v512, %v511
      %v604 = vpack.c.b16 %v514, %v513
      %v605 = vpack.c.b16 %v516, %v515
      %v606 = vpack.c.b16 %v518, %v517
      %v607 = vpack.c.b16 %v520, %v519
      %v608 = vpack.c.b16 %v522, %v521
      %v609 = vpack.c.b16 %v524, %v523
      %v610 = vpack.c.b16 %v526, %v525
      %v611 = vpack.c.b16 %v528, %v527
      %v612 = vpack.c.b16 %v530, %v529
      %v613 = vpack.c.b16 %v532, %v531
      %v614 = vpack.c.b16 %v534, %v533
      %v615 = vpack.c.b16 %v536, %v535
      %v616 = vpack.c.b16 %v538, %v537
      %v617 = vpack.c.b16 %v540, %v539
      %v618 = vpack.c.b16 %v542, %v541
      %v619 = vpack.c.b16 %v544, %v543
      %v620 = vpack.c.b16 %v546, %v545
      %v621 = vpack.c.b16 %v548, %v547
      %v622 = vpack.c.b16 %v550, %v549
      %v623 = vpack.c.b16 %v552, %v551
      %v624 = vpack.c.b16 %v554, %v553
      %v625 = vpack.c.b16 %v556, %v555
      %v626 = vpack.c.b16 %v558, %v557
      %v627 = vpack.c.b16 %v560, %v559
      %v628 = vpack.c.b16 %v562, %v561
      %v629 = vpack.c.b16 %v564, %v563
      %v630 = vpack.c.b16 %v566, %v565
      %v635 = vunpack.c.l.b16 %v303
      %v636 = vunpack.c.l.b16 %v304
      %v637 = vunpack.c.l.b16 %v305
      %v638 = vunpack.c.l.b16 %v306
      %v639 = vpack.c.b16 %v636, %v635
      %v640 = vpack.c.b16 %v638, %v637
      %vm642 = vcmask 220160
      %v644 = vsel %vm642, %v567, 0
      %v647 = vsel %vm642, %v568, 0
      %v650 = vsel %vm642, %v569, 0
      %v653 = vsel %vm642, %v570, 0
      %v656 = vsel %vm642, %v571, 0
      %v659 = vsel %vm642, %v572, 0
      %v662 = vsel %vm642, %v573, 0
      %v665 = vsel %vm642, %v574, 0
      %v668 = vsel %vm642, %v575, 0
      %v671 = vsel %vm642, %v576, 0
      %v674 = vsel %vm642, %v577, 0
      %v677 = vsel %vm642, %v578, 0
      %v680 = vsel %vm642, %v579, 0
      %v683 = vsel %vm642, %v580, 0
      %v686 = vsel %vm642, %v581, 0
      %v689 = vsel %vm642, %v582, 0
      %v692 = vsel %vm642, %v583, 0
      %v695 = vsel %vm642, %v584, 0
      %v698 = vsel %vm642, %v585, 0
      %v701 = vsel %vm642, %v586, 0
      %v704 = vsel %vm642, %v587, 0
      %v707 = vsel %vm642, %v588, 0
      %v710 = vsel %vm642, %v589, 0
      %v713 = vsel %vm642, %v590, 0
      %v716 = vsel %vm642, %v591, 0
      %v719 = vsel %vm642, %v592, 0
      %v722 = vsel %vm642, %v593, 0
      %v725 = vsel %vm642, %v594, 0
      %v728 = vsel %vm642, %v595, 0
      %v731 = vsel %vm642, %v596, 0
      %v734 = vsel %vm642, %v597, 0
      %v737 = vsel %vm642, %v598, 0
      %v740 = vsel %vm642, %v599, 0
      %v743 = vsel %vm642, %v600, 0
      %v746 = vsel %vm642, %v601, 0
      %v749 = vsel %vm642, %v602, 0
      %v752 = vsel %vm642, %v603, 0
      %v755 = vsel %vm642, %v604, 0
      %v758 = vsel %vm642, %v605, 0
      %v761 = vsel %vm642, %v606, 0
      %v764 = vsel %vm642, %v607, 0
      %v767 = vsel %vm642, %v608, 0
      %v770 = vsel %vm642, %v609, 0
      %v773 = vsel %vm642, %v610, 0
      %v776 = vsel %vm642, %v611, 0
      %v779 = vsel %vm642, %v612, 0
      %v782 = vsel %vm642, %v613, 0
      %v785 = vsel %vm642, %v614, 0
      %v788 = vsel %vm642, %v615, 0
      %v791 = vsel %vm642, %v616, 0
      %v794 = vsel %vm642, %v617, 0
      %v797 = vsel %vm642, %v618, 0
      %v800 = vsel %vm642, %v619, 0
      %v803 = vsel %vm642, %v620, 0
      %v806 = vsel %vm642, %v621, 0
      %v809 = vsel %vm642, %v622, 0
      %v812 = vsel %vm642, %v623, 0
      %v815 = vsel %vm642, %v624, 0
      %v818 = vsel %vm642, %v625, 0
      %v821 = vsel %vm642, %v626, 0
      %v824 = vsel %vm642, %v627, 0
      %v827 = vsel %vm642, %v628, 0
      %v830 = vsel %vm642, %v629, 0
      %v833 = vsel %vm642, %v630, 0
      %vm835 = vcmask 1044480
      %vm836 = vcmask 1045504
      %v837 = vsel %vm835, 4294967295, 65535
      %v838 = vsel %vm836, %v837, 0
      %v840 = vand.u32 %v640, %v838
      %842 = vmatpush.bf16.msra.mxu0 0
      %843 = vmatpush.bf16.msra.mxu0 0
      %844 = vmatpush.bf16.msra.mxu0 0
      %845 = vmatpush.bf16.msra.mxu0 0
      %846 = vmatpush.bf16.msra.mxu0 0
      %847 = vmatpush.bf16.msra.mxu0 0
      %848 = vmatpush.bf16.msra.mxu0 %v840
      %849 = vmatpush.bf16.msra.mxu0 %v639
      %850 = vmatmul.bf16.gmra.mxu0 %v644
      %v851 = vpop.f32.mrf.mxu0
      %v852 = vadd.f32 %v309, %v851
      %v853 = vpop.f32.mrf.mxu0
      %v854 = vadd.f32 %v309, %v853
      %855 = vmatmul.bf16.gmra.mxu0 %v647
      %v856 = vpop.f32.mrf.mxu0
      %v857 = vadd.f32 %v309, %v856
      %v858 = vpop.f32.mrf.mxu0
      %v859 = vadd.f32 %v309, %v858
      %860 = vmatmul.bf16.gmra.mxu0 %v650
      %v861 = vpop.f32.mrf.mxu0
      %v862 = vadd.f32 %v309, %v861
      %v863 = vpop.f32.mrf.mxu0
      %v864 = vadd.f32 %v309, %v863
      %865 = vmatmul.bf16.gmra.mxu0 %v653
      %v866 = vpop.f32.mrf.mxu0
      %v867 = vadd.f32 %v309, %v866
      %v868 = vpop.f32.mrf.mxu0
      %v869 = vadd.f32 %v309, %v868
      %870 = vmatmul.bf16.gmra.mxu0 %v656
      %v871 = vpop.f32.mrf.mxu0
      %v872 = vadd.f32 %v309, %v871
      %v873 = vpop.f32.mrf.mxu0
      %v874 = vadd.f32 %v309, %v873
      %875 = vmatmul.bf16.gmra.mxu0 %v659
      %v876 = vpop.f32.mrf.mxu0
      %v877 = vadd.f32 %v309, %v876
      %v878 = vpop.f32.mrf.mxu0
      %v879 = vadd.f32 %v309, %v878
      %880 = vmatmul.bf16.gmra.mxu0 %v662
      %v881 = vpop.f32.mrf.mxu0
      %v882 = vadd.f32 %v309, %v881
      %v883 = vpop.f32.mrf.mxu0
      %v884 = vadd.f32 %v309, %v883
      %885 = vmatmul.bf16.gmra.mxu0 %v665
      %v886 = vpop.f32.mrf.mxu0
      %v887 = vadd.f32 %v309, %v886
      %v888 = vpop.f32.mrf.mxu0
      %v889 = vadd.f32 %v309, %v888
      %890 = vmatmul.bf16.gmra.mxu0 %v668
      %v891 = vpop.f32.mrf.mxu0
      %v892 = vadd.f32 %v309, %v891
      %v893 = vpop.f32.mrf.mxu0
      %v894 = vadd.f32 %v309, %v893
      %895 = vmatmul.bf16.gmra.mxu0 %v671
      %v896 = vpop.f32.mrf.mxu0
      %v897 = vadd.f32 %v309, %v896
      %v898 = vpop.f32.mrf.mxu0
      %v899 = vadd.f32 %v309, %v898
      %900 = vmatmul.bf16.gmra.mxu0 %v674
      %v901 = vpop.f32.mrf.mxu0
      %v902 = vadd.f32 %v309, %v901
      %v903 = vpop.f32.mrf.mxu0
      %v904 = vadd.f32 %v309, %v903
      %905 = vmatmul.bf16.gmra.mxu0 %v677
      %v906 = vpop.f32.mrf.mxu0
      %v907 = vadd.f32 %v309, %v906
      %v908 = vpop.f32.mrf.mxu0
      %v909 = vadd.f32 %v309, %v908
      %910 = vmatmul.bf16.gmra.mxu0 %v680
      %v911 = vpop.f32.mrf.mxu0
      %v912 = vadd.f32 %v309, %v911
      %v913 = vpop.f32.mrf.mxu0
      %v914 = vadd.f32 %v309, %v913
      %915 = vmatmul.bf16.gmra.mxu0 %v683
      %v916 = vpop.f32.mrf.mxu0
      %v917 = vadd.f32 %v309, %v916
      %v918 = vpop.f32.mrf.mxu0
      %v919 = vadd.f32 %v309, %v918
      %920 = vmatmul.bf16.gmra.mxu0 %v686
      %v921 = vpop.f32.mrf.mxu0
      %v922 = vadd.f32 %v309, %v921
      %v923 = vpop.f32.mrf.mxu0
      %v924 = vadd.f32 %v309, %v923
      %925 = vmatmul.bf16.gmra.mxu0 %v689
      %v926 = vpop.f32.mrf.mxu0
      %v927 = vadd.f32 %v309, %v926
      %v928 = vpop.f32.mrf.mxu0
      %v929 = vadd.f32 %v309, %v928
      %930 = vmatmul.bf16.gmra.mxu0 %v692
      %v931 = vpop.f32.mrf.mxu0
      %v932 = vadd.f32 %v309, %v931
      %v933 = vpop.f32.mrf.mxu0
      %v934 = vadd.f32 %v309, %v933
      %935 = vmatmul.bf16.gmra.mxu0 %v695
      %v936 = vpop.f32.mrf.mxu0
      %v937 = vadd.f32 %v309, %v936
      %v938 = vpop.f32.mrf.mxu0
      %v939 = vadd.f32 %v309, %v938
      %940 = vmatmul.bf16.gmra.mxu0 %v698
      %v941 = vpop.f32.mrf.mxu0
      %v942 = vadd.f32 %v309, %v941
      %v943 = vpop.f32.mrf.mxu0
      %v944 = vadd.f32 %v309, %v943
      %945 = vmatmul.bf16.gmra.mxu0 %v701
      %v946 = vpop.f32.mrf.mxu0
      %v947 = vadd.f32 %v309, %v946
      %v948 = vpop.f32.mrf.mxu0
      %v949 = vadd.f32 %v309, %v948
      %950 = vmatmul.bf16.gmra.mxu0 %v704
      %v951 = vpop.f32.mrf.mxu0
      %v952 = vadd.f32 %v309, %v951
      %v953 = vpop.f32.mrf.mxu0
      %v954 = vadd.f32 %v309, %v953
      %955 = vmatmul.bf16.gmra.mxu0 %v707
      %v956 = vpop.f32.mrf.mxu0
      %v957 = vadd.f32 %v309, %v956
      %v958 = vpop.f32.mrf.mxu0
      %v959 = vadd.f32 %v309, %v958
      %960 = vmatmul.bf16.gmra.mxu0 %v710
      %v961 = vpop.f32.mrf.mxu0
      %v962 = vadd.f32 %v309, %v961
      %v963 = vpop.f32.mrf.mxu0
      %v964 = vadd.f32 %v309, %v963
      %965 = vmatmul.bf16.gmra.mxu0 %v713
      %v966 = vpop.f32.mrf.mxu0
      %v967 = vadd.f32 %v309, %v966
      %v968 = vpop.f32.mrf.mxu0
      %v969 = vadd.f32 %v309, %v968
      %970 = vmatmul.bf16.gmra.mxu0 %v716
      %v971 = vpop.f32.mrf.mxu0
      %v972 = vadd.f32 %v309, %v971
      %v973 = vpop.f32.mrf.mxu0
      %v974 = vadd.f32 %v309, %v973
      %975 = vmatmul.bf16.gmra.mxu0 %v719
      %v976 = vpop.f32.mrf.mxu0
      %v977 = vadd.f32 %v309, %v976
      %v978 = vpop.f32.mrf.mxu0
      %v979 = vadd.f32 %v309, %v978
      %980 = vmatmul.bf16.gmra.mxu0 %v722
      %v981 = vpop.f32.mrf.mxu0
      %v982 = vadd.f32 %v309, %v981
      %v983 = vpop.f32.mrf.mxu0
      %v984 = vadd.f32 %v309, %v983
      %985 = vmatmul.bf16.gmra.mxu0 %v725
      %v986 = vpop.f32.mrf.mxu0
      %v987 = vadd.f32 %v309, %v986
      %v988 = vpop.f32.mrf.mxu0
      %v989 = vadd.f32 %v309, %v988
      %990 = vmatmul.bf16.gmra.mxu0 %v728
      %v991 = vpop.f32.mrf.mxu0
      %v992 = vadd.f32 %v309, %v991
      %v993 = vpop.f32.mrf.mxu0
      %v994 = vadd.f32 %v309, %v993
      %995 = vmatmul.bf16.gmra.mxu0 %v731
      %v996 = vpop.f32.mrf.mxu0
      %v997 = vadd.f32 %v309, %v996
      %v998 = vpop.f32.mrf.mxu0
      %v999 = vadd.f32 %v309, %v998
      %1000 = vmatmul.bf16.gmra.mxu0 %v734
      %v1001 = vpop.f32.mrf.mxu0
      %v1002 = vadd.f32 %v309, %v1001
      %v1003 = vpop.f32.mrf.mxu0
      %v1004 = vadd.f32 %v309, %v1003
      %1005 = vmatmul.bf16.gmra.mxu0 %v737
      %v1006 = vpop.f32.mrf.mxu0
      %v1007 = vadd.f32 %v309, %v1006
      %v1008 = vpop.f32.mrf.mxu0
      %v1009 = vadd.f32 %v309, %v1008
      %1010 = vmatmul.bf16.gmra.mxu0 %v740
      %v1011 = vpop.f32.mrf.mxu0
      %v1012 = vadd.f32 %v309, %v1011
      %v1013 = vpop.f32.mrf.mxu0
      %v1014 = vadd.f32 %v309, %v1013
      %1015 = vmatmul.bf16.gmra.mxu0 %v743
      %v1016 = vpop.f32.mrf.mxu0
      %v1017 = vadd.f32 %v309, %v1016
      %v1018 = vpop.f32.mrf.mxu0
      %v1019 = vadd.f32 %v309, %v1018
      %1020 = vmatmul.bf16.gmra.mxu0 %v746
      %v1021 = vpop.f32.mrf.mxu0
      %v1022 = vadd.f32 %v309, %v1021
      %v1023 = vpop.f32.mrf.mxu0
      %v1024 = vadd.f32 %v309, %v1023
      %1025 = vmatmul.bf16.gmra.mxu0 %v749
      %v1026 = vpop.f32.mrf.mxu0
      %v1027 = vadd.f32 %v309, %v1026
      %v1028 = vpop.f32.mrf.mxu0
      %v1029 = vadd.f32 %v309, %v1028
      %1030 = vmatmul.bf16.gmra.mxu0 %v752
      %v1031 = vpop.f32.mrf.mxu0
      %v1032 = vadd.f32 %v309, %v1031
      %v1033 = vpop.f32.mrf.mxu0
      %v1034 = vadd.f32 %v309, %v1033
      %1035 = vmatmul.bf16.gmra.mxu0 %v755
      %v1036 = vpop.f32.mrf.mxu0
      %v1037 = vadd.f32 %v309, %v1036
      %v1038 = vpop.f32.mrf.mxu0
      %v1039 = vadd.f32 %v309, %v1038
      %1040 = vmatmul.bf16.gmra.mxu0 %v758
      %v1041 = vpop.f32.mrf.mxu0
      %v1042 = vadd.f32 %v309, %v1041
      %v1043 = vpop.f32.mrf.mxu0
      %v1044 = vadd.f32 %v309, %v1043
      %1045 = vmatmul.bf16.gmra.mxu0 %v761
      %v1046 = vpop.f32.mrf.mxu0
      %v1047 = vadd.f32 %v309, %v1046
      %v1048 = vpop.f32.mrf.mxu0
      %v1049 = vadd.f32 %v309, %v1048
      %1050 = vmatmul.bf16.gmra.mxu0 %v764
      %v1051 = vpop.f32.mrf.mxu0
      %v1052 = vadd.f32 %v309, %v1051
      %v1053 = vpop.f32.mrf.mxu0
      %v1054 = vadd.f32 %v309, %v1053
      %1055 = vmatmul.bf16.gmra.mxu0 %v767
      %v1056 = vpop.f32.mrf.mxu0
      %v1057 = vadd.f32 %v309, %v1056
      %v1058 = vpop.f32.mrf.mxu0
      %v1059 = vadd.f32 %v309, %v1058
      %1060 = vmatmul.bf16.gmra.mxu0 %v770
      %v1061 = vpop.f32.mrf.mxu0
      %v1062 = vadd.f32 %v309, %v1061
      %v1063 = vpop.f32.mrf.mxu0
      %v1064 = vadd.f32 %v309, %v1063
      %1065 = vmatmul.bf16.gmra.mxu0 %v773
      %v1066 = vpop.f32.mrf.mxu0
      %v1067 = vadd.f32 %v309, %v1066
      %v1068 = vpop.f32.mrf.mxu0
      %v1069 = vadd.f32 %v309, %v1068
      %1070 = vmatmul.bf16.gmra.mxu0 %v776
      %v1071 = vpop.f32.mrf.mxu0
      %v1072 = vadd.f32 %v309, %v1071
      %v1073 = vpop.f32.mrf.mxu0
      %v1074 = vadd.f32 %v309, %v1073
      %1075 = vmatmul.bf16.gmra.mxu0 %v779
      %v1076 = vpop.f32.mrf.mxu0
      %v1077 = vadd.f32 %v309, %v1076
      %v1078 = vpop.f32.mrf.mxu0
      %v1079 = vadd.f32 %v309, %v1078
      %1080 = vmatmul.bf16.gmra.mxu0 %v782
      %v1081 = vpop.f32.mrf.mxu0
      %v1082 = vadd.f32 %v309, %v1081
      %v1083 = vpop.f32.mrf.mxu0
      %v1084 = vadd.f32 %v309, %v1083
      %1085 = vmatmul.bf16.gmra.mxu0 %v785
      %v1086 = vpop.f32.mrf.mxu0
      %v1087 = vadd.f32 %v309, %v1086
      %v1088 = vpop.f32.mrf.mxu0
      %v1089 = vadd.f32 %v309, %v1088
      %1090 = vmatmul.bf16.gmra.mxu0 %v788
      %v1091 = vpop.f32.mrf.mxu0
      %v1092 = vadd.f32 %v309, %v1091
      %v1093 = vpop.f32.mrf.mxu0
      %v1094 = vadd.f32 %v309, %v1093
      %1095 = vmatmul.bf16.gmra.mxu0 %v791
      %v1096 = vpop.f32.mrf.mxu0
      %v1097 = vadd.f32 %v309, %v1096
      %v1098 = vpop.f32.mrf.mxu0
      %v1099 = vadd.f32 %v309, %v1098
      %1100 = vmatmul.bf16.gmra.mxu0 %v794
      %v1101 = vpop.f32.mrf.mxu0
      %v1102 = vadd.f32 %v309, %v1101
      %v1103 = vpop.f32.mrf.mxu0
      %v1104 = vadd.f32 %v309, %v1103
      %1105 = vmatmul.bf16.gmra.mxu0 %v797
      %v1106 = vpop.f32.mrf.mxu0
      %v1107 = vadd.f32 %v309, %v1106
      %v1108 = vpop.f32.mrf.mxu0
      %v1109 = vadd.f32 %v309, %v1108
      %1110 = vmatmul.bf16.gmra.mxu0 %v800
      %v1111 = vpop.f32.mrf.mxu0
      %v1112 = vadd.f32 %v309, %v1111
      %v1113 = vpop.f32.mrf.mxu0
      %v1114 = vadd.f32 %v309, %v1113
      %1115 = vmatmul.bf16.gmra.mxu0 %v803
      %v1116 = vpop.f32.mrf.mxu0
      %v1117 = vadd.f32 %v309, %v1116
      %v1118 = vpop.f32.mrf.mxu0
      %v1119 = vadd.f32 %v309, %v1118
      %1120 = vmatmul.bf16.gmra.mxu0 %v806
      %v1121 = vpop.f32.mrf.mxu0
      %v1122 = vadd.f32 %v309, %v1121
      %v1123 = vpop.f32.mrf.mxu0
      %v1124 = vadd.f32 %v309, %v1123
      %1125 = vmatmul.bf16.gmra.mxu0 %v809
      %v1126 = vpop.f32.mrf.mxu0
      %v1127 = vadd.f32 %v309, %v1126
      %v1128 = vpop.f32.mrf.mxu0
      %v1129 = vadd.f32 %v309, %v1128
      %1130 = vmatmul.bf16.gmra.mxu0 %v812
      %v1131 = vpop.f32.mrf.mxu0
      %v1132 = vadd.f32 %v309, %v1131
      %v1133 = vpop.f32.mrf.mxu0
      %v1134 = vadd.f32 %v309, %v1133
      %1135 = vmatmul.bf16.gmra.mxu0 %v815
      %v1136 = vpop.f32.mrf.mxu0
      %v1137 = vadd.f32 %v309, %v1136
      %v1138 = vpop.f32.mrf.mxu0
      %v1139 = vadd.f32 %v309, %v1138
      %1140 = vmatmul.bf16.gmra.mxu0 %v818
      %v1141 = vpop.f32.mrf.mxu0
      %v1142 = vadd.f32 %v309, %v1141
      %v1143 = vpop.f32.mrf.mxu0
      %v1144 = vadd.f32 %v309, %v1143
      %1145 = vmatmul.bf16.gmra.mxu0 %v821
      %v1146 = vpop.f32.mrf.mxu0
      %v1147 = vadd.f32 %v309, %v1146
      %v1148 = vpop.f32.mrf.mxu0
      %v1149 = vadd.f32 %v309, %v1148
      %1150 = vmatmul.bf16.gmra.mxu0 %v824
      %v1151 = vpop.f32.mrf.mxu0
      %v1152 = vadd.f32 %v309, %v1151
      %v1153 = vpop.f32.mrf.mxu0
      %v1154 = vadd.f32 %v309, %v1153
      %1155 = vmatmul.bf16.gmra.mxu0 %v827
      %v1156 = vpop.f32.mrf.mxu0
      %v1157 = vadd.f32 %v309, %v1156
      %v1158 = vpop.f32.mrf.mxu0
      %v1159 = vadd.f32 %v309, %v1158
      %1160 = vmatmul.bf16.gmra.mxu0 %v830
      %v1161 = vpop.f32.mrf.mxu0
      %v1162 = vadd.f32 %v309, %v1161
      %v1163 = vpop.f32.mrf.mxu0
      %v1164 = vadd.f32 %v309, %v1163
      %1165 = vmatmul.bf16.gmra.mxu0 %v833
      %v1166 = vpop.f32.mrf.mxu0
      %v1167 = vadd.f32 %v309, %v1166
      %v1168 = vpop.f32.mrf.mxu0
      %v1169 = vadd.f32 %v309, %v1168
      %1170 = vdwg.mxu0
      %v1171 = vpack.c.bf16 %v852, %v852
      %v1172 = vpack.c.bf16 %v854, %v854
      %v1173 = vpack.c.bf16 %v857, %v857
      %v1174 = vpack.c.bf16 %v859, %v859
      %v1175 = vpack.c.bf16 %v862, %v862
      %v1176 = vpack.c.bf16 %v864, %v864
      %v1177 = vpack.c.bf16 %v867, %v867
      %v1178 = vpack.c.bf16 %v869, %v869
      %v1179 = vpack.c.bf16 %v872, %v872
      %v1180 = vpack.c.bf16 %v874, %v874
      %v1181 = vpack.c.bf16 %v877, %v877
      %v1182 = vpack.c.bf16 %v879, %v879
      %v1183 = vpack.c.bf16 %v882, %v882
      %v1184 = vpack.c.bf16 %v884, %v884
      %v1185 = vpack.c.bf16 %v887, %v887
      %v1186 = vpack.c.bf16 %v889, %v889
      %v1187 = vpack.c.bf16 %v892, %v892
      %v1188 = vpack.c.bf16 %v894, %v894
      %v1189 = vpack.c.bf16 %v897, %v897
      %v1190 = vpack.c.bf16 %v899, %v899
      %v1191 = vpack.c.bf16 %v902, %v902
      %v1192 = vpack.c.bf16 %v904, %v904
      %v1193 = vpack.c.bf16 %v907, %v907
      %v1194 = vpack.c.bf16 %v909, %v909
      %v1195 = vpack.c.bf16 %v912, %v912
      %v1196 = vpack.c.bf16 %v914, %v914
      %v1197 = vpack.c.bf16 %v917, %v917
      %v1198 = vpack.c.bf16 %v919, %v919
      %v1199 = vpack.c.bf16 %v922, %v922
      %v1200 = vpack.c.bf16 %v924, %v924
      %v1201 = vpack.c.bf16 %v927, %v927
      %v1202 = vpack.c.bf16 %v929, %v929
      %v1203 = vpack.c.bf16 %v932, %v932
      %v1204 = vpack.c.bf16 %v934, %v934
      %v1205 = vpack.c.bf16 %v937, %v937
      %v1206 = vpack.c.bf16 %v939, %v939
      %v1207 = vpack.c.bf16 %v942, %v942
      %v1208 = vpack.c.bf16 %v944, %v944
      %v1209 = vpack.c.bf16 %v947, %v947
      %v1210 = vpack.c.bf16 %v949, %v949
      %v1211 = vpack.c.bf16 %v952, %v952
      %v1212 = vpack.c.bf16 %v954, %v954
      %v1213 = vpack.c.bf16 %v957, %v957
      %v1214 = vpack.c.bf16 %v959, %v959
      %v1215 = vpack.c.bf16 %v962, %v962
      %v1216 = vpack.c.bf16 %v964, %v964
      %v1217 = vpack.c.bf16 %v967, %v967
      %v1218 = vpack.c.bf16 %v969, %v969
      %v1219 = vpack.c.bf16 %v972, %v972
      %v1220 = vpack.c.bf16 %v974, %v974
      %v1221 = vpack.c.bf16 %v977, %v977
      %v1222 = vpack.c.bf16 %v979, %v979
      %v1223 = vpack.c.bf16 %v982, %v982
      %v1224 = vpack.c.bf16 %v984, %v984
      %v1225 = vpack.c.bf16 %v987, %v987
      %v1226 = vpack.c.bf16 %v989, %v989
      %v1227 = vpack.c.bf16 %v992, %v992
      %v1228 = vpack.c.bf16 %v994, %v994
      %v1229 = vpack.c.bf16 %v997, %v997
      %v1230 = vpack.c.bf16 %v999, %v999
      %v1231 = vpack.c.bf16 %v1002, %v1002
      %v1232 = vpack.c.bf16 %v1004, %v1004
      %v1233 = vpack.c.bf16 %v1007, %v1007
      %v1234 = vpack.c.bf16 %v1009, %v1009
      %v1235 = vpack.c.bf16 %v1012, %v1012
      %v1236 = vpack.c.bf16 %v1014, %v1014
      %v1237 = vpack.c.bf16 %v1017, %v1017
      %v1238 = vpack.c.bf16 %v1019, %v1019
      %v1239 = vpack.c.bf16 %v1022, %v1022
      %v1240 = vpack.c.bf16 %v1024, %v1024
      %v1241 = vpack.c.bf16 %v1027, %v1027
      %v1242 = vpack.c.bf16 %v1029, %v1029
      %v1243 = vpack.c.bf16 %v1032, %v1032
      %v1244 = vpack.c.bf16 %v1034, %v1034
      %v1245 = vpack.c.bf16 %v1037, %v1037
      %v1246 = vpack.c.bf16 %v1039, %v1039
      %v1247 = vpack.c.bf16 %v1042, %v1042
      %v1248 = vpack.c.bf16 %v1044, %v1044
      %v1249 = vpack.c.bf16 %v1047, %v1047
      %v1250 = vpack.c.bf16 %v1049, %v1049
      %v1251 = vpack.c.bf16 %v1052, %v1052
      %v1252 = vpack.c.bf16 %v1054, %v1054
      %v1253 = vpack.c.bf16 %v1057, %v1057
      %v1254 = vpack.c.bf16 %v1059, %v1059
      %v1255 = vpack.c.bf16 %v1062, %v1062
      %v1256 = vpack.c.bf16 %v1064, %v1064
      %v1257 = vpack.c.bf16 %v1067, %v1067
      %v1258 = vpack.c.bf16 %v1069, %v1069
      %v1259 = vpack.c.bf16 %v1072, %v1072
      %v1260 = vpack.c.bf16 %v1074, %v1074
      %v1261 = vpack.c.bf16 %v1077, %v1077
      %v1262 = vpack.c.bf16 %v1079, %v1079
      %v1263 = vpack.c.bf16 %v1082, %v1082
      %v1264 = vpack.c.bf16 %v1084, %v1084
      %v1265 = vpack.c.bf16 %v1087, %v1087
      %v1266 = vpack.c.bf16 %v1089, %v1089
      %v1267 = vpack.c.bf16 %v1092, %v1092
      %v1268 = vpack.c.bf16 %v1094, %v1094
      %v1269 = vpack.c.bf16 %v1097, %v1097
      %v1270 = vpack.c.bf16 %v1099, %v1099
      %v1271 = vpack.c.bf16 %v1102, %v1102
      %v1272 = vpack.c.bf16 %v1104, %v1104
      %v1273 = vpack.c.bf16 %v1107, %v1107
      %v1274 = vpack.c.bf16 %v1109, %v1109
      %v1275 = vpack.c.bf16 %v1112, %v1112
      %v1276 = vpack.c.bf16 %v1114, %v1114
      %v1277 = vpack.c.bf16 %v1117, %v1117
      %v1278 = vpack.c.bf16 %v1119, %v1119
      %v1279 = vpack.c.bf16 %v1122, %v1122
      %v1280 = vpack.c.bf16 %v1124, %v1124
      %v1281 = vpack.c.bf16 %v1127, %v1127
      %v1282 = vpack.c.bf16 %v1129, %v1129
      %v1283 = vpack.c.bf16 %v1132, %v1132
      %v1284 = vpack.c.bf16 %v1134, %v1134
      %v1285 = vpack.c.bf16 %v1137, %v1137
      %v1286 = vpack.c.bf16 %v1139, %v1139
      %v1287 = vpack.c.bf16 %v1142, %v1142
      %v1288 = vpack.c.bf16 %v1144, %v1144
      %v1289 = vpack.c.bf16 %v1147, %v1147
      %v1290 = vpack.c.bf16 %v1149, %v1149
      %v1291 = vpack.c.bf16 %v1152, %v1152
      %v1292 = vpack.c.bf16 %v1154, %v1154
      %v1293 = vpack.c.bf16 %v1157, %v1157
      %v1294 = vpack.c.bf16 %v1159, %v1159
      %v1295 = vpack.c.bf16 %v1162, %v1162
      %v1296 = vpack.c.bf16 %v1164, %v1164
      %v1297 = vpack.c.bf16 %v1167, %v1167
      %v1298 = vpack.c.bf16 %v1169, %v1169
      %vm1299 = vcmask 93184
      %1300 = vst.msk [vmem:[%s172] sm:$0xf] %vm1299, %v1171
      %1301 = vst.msk [vmem:[%s172 + $0x4] sm:$0xf] %vm1299, %v1172
      %1302 = vst.msk [vmem:[%s172 + $0x8] sm:$0xf] %vm1299, %v1173
      %1303 = vst.msk [vmem:[%s172 + $0xc] sm:$0xf] %vm1299, %v1174
      %1304 = vst.msk [vmem:[%s172 + $0x10] sm:$0xf] %vm1299, %v1175
      %1305 = vst.msk [vmem:[%s172 + $0x14] sm:$0xf] %vm1299, %v1176
      %1306 = vst.msk [vmem:[%s172 + $0x18] sm:$0xf] %vm1299, %v1177
      %1307 = vst.msk [vmem:[%s172 + $0x1c] sm:$0xf] %vm1299, %v1178
      %1308 = vst.msk [vmem:[%s172 + $0x20] sm:$0xf] %vm1299, %v1179
      %1309 = vst.msk [vmem:[%s172 + $0x24] sm:$0xf] %vm1299, %v1180
      %1310 = vst.msk [vmem:[%s172 + $0x28] sm:$0xf] %vm1299, %v1181
      %1311 = vst.msk [vmem:[%s172 + $0x2c] sm:$0xf] %vm1299, %v1182
      %1312 = vst.msk [vmem:[%s172 + $0x30] sm:$0xf] %vm1299, %v1183
      %1313 = vst.msk [vmem:[%s172 + $0x34] sm:$0xf] %vm1299, %v1184
      %1314 = vst.msk [vmem:[%s172 + $0x38] sm:$0xf] %vm1299, %v1185
      %1315 = vst.msk [vmem:[%s172 + $0x3c] sm:$0xf] %vm1299, %v1186
      %1316 = vst.msk [vmem:[%s172 + $0x40] sm:$0xf] %vm1299, %v1187
      %1317 = vst.msk [vmem:[%s172 + $0x44] sm:$0xf] %vm1299, %v1188
      %1318 = vst.msk [vmem:[%s172 + $0x48] sm:$0xf] %vm1299, %v1189
      %1319 = vst.msk [vmem:[%s172 + $0x4c] sm:$0xf] %vm1299, %v1190
      %1320 = vst.msk [vmem:[%s172 + $0x50] sm:$0xf] %vm1299, %v1191
      %1321 = vst.msk [vmem:[%s172 + $0x54] sm:$0xf] %vm1299, %v1192
      %1322 = vst.msk [vmem:[%s172 + $0x58] sm:$0xf] %vm1299, %v1193
      %1323 = vst.msk [vmem:[%s172 + $0x5c] sm:$0xf] %vm1299, %v1194
      %1324 = vst.msk [vmem:[%s172 + $0x60] sm:$0xf] %vm1299, %v1195
      %1325 = vst.msk [vmem:[%s172 + $0x64] sm:$0xf] %vm1299, %v1196
      %1326 = vst.msk [vmem:[%s172 + $0x68] sm:$0xf] %vm1299, %v1197
      %1327 = vst.msk [vmem:[%s172 + $0x6c] sm:$0xf] %vm1299, %v1198
      %1328 = vst.msk [vmem:[%s172 + $0x70] sm:$0xf] %vm1299, %v1199
      %1329 = vst.msk [vmem:[%s172 + $0x74] sm:$0xf] %vm1299, %v1200
      %1330 = vst.msk [vmem:[%s172 + $0x78] sm:$0xf] %vm1299, %v1201
      %1331 = vst.msk [vmem:[%s172 + $0x7c] sm:$0xf] %vm1299, %v1202
      %1332 = vst.msk [vmem:[%s172 + $0x80] sm:$0xf] %vm1299, %v1203
      %1333 = vst.msk [vmem:[%s172 + $0x84] sm:$0xf] %vm1299, %v1204
      %1334 = vst.msk [vmem:[%s172 + $0x88] sm:$0xf] %vm1299, %v1205
      %1335 = vst.msk [vmem:[%s172 + $0x8c] sm:$0xf] %vm1299, %v1206
      %1336 = vst.msk [vmem:[%s172 + $0x90] sm:$0xf] %vm1299, %v1207
      %1337 = vst.msk [vmem:[%s172 + $0x94] sm:$0xf] %vm1299, %v1208
      %1338 = vst.msk [vmem:[%s172 + $0x98] sm:$0xf] %vm1299, %v1209
      %1339 = vst.msk [vmem:[%s172 + $0x9c] sm:$0xf] %vm1299, %v1210
      %1340 = vst.msk [vmem:[%s172 + $0xa0] sm:$0xf] %vm1299, %v1211
      %1341 = vst.msk [vmem:[%s172 + $0xa4] sm:$0xf] %vm1299, %v1212
      %1342 = vst.msk [vmem:[%s172 + $0xa8] sm:$0xf] %vm1299, %v1213
      %1343 = vst.msk [vmem:[%s172 + $0xac] sm:$0xf] %vm1299, %v1214
      %1344 = vst.msk [vmem:[%s172 + $0xb0] sm:$0xf] %vm1299, %v1215
      %1345 = vst.msk [vmem:[%s172 + $0xb4] sm:$0xf] %vm1299, %v1216
      %1346 = vst.msk [vmem:[%s172 + $0xb8] sm:$0xf] %vm1299, %v1217
      %1347 = vst.msk [vmem:[%s172 + $0xbc] sm:$0xf] %vm1299, %v1218
      %1348 = vst.msk [vmem:[%s172 + $0xc0] sm:$0xf] %vm1299, %v1219
      %1349 = vst.msk [vmem:[%s172 + $0xc4] sm:$0xf] %vm1299, %v1220
      %1350 = vst.msk [vmem:[%s172 + $0xc8] sm:$0xf] %vm1299, %v1221
      %1351 = vst.msk [vmem:[%s172 + $0xcc] sm:$0xf] %vm1299, %v1222
      %1352 = vst.msk [vmem:[%s172 + $0xd0] sm:$0xf] %vm1299, %v1223
      %1353 = vst.msk [vmem:[%s172 + $0xd4] sm:$0xf] %vm1299, %v1224
      %1354 = vst.msk [vmem:[%s172 + $0xd8] sm:$0xf] %vm1299, %v1225
      %1355 = vst.msk [vmem:[%s172 + $0xdc] sm:$0xf] %vm1299, %v1226
      %1356 = vst.msk [vmem:[%s172 + $0xe0] sm:$0xf] %vm1299, %v1227
      %1357 = vst.msk [vmem:[%s172 + $0xe4] sm:$0xf] %vm1299, %v1228
      %1358 = vst.msk [vmem:[%s172 + $0xe8] sm:$0xf] %vm1299, %v1229
      %1359 = vst.msk [vmem:[%s172 + $0xec] sm:$0xf] %vm1299, %v1230
      %1360 = vst.msk [vmem:[%s172 + $0xf0] sm:$0xf] %vm1299, %v1231
      %1361 = vst.msk [vmem:[%s172 + $0xf4] sm:$0xf] %vm1299, %v1232
      %1362 = vst.msk [vmem:[%s172 + $0xf8] sm:$0xf] %vm1299, %v1233
      %1363 = vst.msk [vmem:[%s172 + $0xfc] sm:$0xf] %vm1299, %v1234
      %1364 = vst.msk [vmem:[%s172 + $0x100] sm:$0xf] %vm1299, %v1235
      %1365 = vst.msk [vmem:[%s172 + $0x104] sm:$0xf] %vm1299, %v1236
      %1366 = vst.msk [vmem:[%s172 + $0x108] sm:$0xf] %vm1299, %v1237
      %1367 = vst.msk [vmem:[%s172 + $0x10c] sm:$0xf] %vm1299, %v1238
      %1368 = vst.msk [vmem:[%s172 + $0x110] sm:$0xf] %vm1299, %v1239
      %1369 = vst.msk [vmem:[%s172 + $0x114] sm:$0xf] %vm1299, %v1240
      %1370 = vst.msk [vmem:[%s172 + $0x118] sm:$0xf] %vm1299, %v1241
      %1371 = vst.msk [vmem:[%s172 + $0x11c] sm:$0xf] %vm1299, %v1242
      %1372 = vst.msk [vmem:[%s172 + $0x120] sm:$0xf] %vm1299, %v1243
      %1373 = vst.msk [vmem:[%s172 + $0x124] sm:$0xf] %vm1299, %v1244
      %1374 = vst.msk [vmem:[%s172 + $0x128] sm:$0xf] %vm1299, %v1245
      %1375 = vst.msk [vmem:[%s172 + $0x12c] sm:$0xf] %vm1299, %v1246
      %1376 = vst.msk [vmem:[%s172 + $0x130] sm:$0xf] %vm1299, %v1247
      %1377 = vst.msk [vmem:[%s172 + $0x134] sm:$0xf] %vm1299, %v1248
      %1378 = vst.msk [vmem:[%s172 + $0x138] sm:$0xf] %vm1299, %v1249
      %1379 = vst.msk [vmem:[%s172 + $0x13c] sm:$0xf] %vm1299, %v1250
      %1380 = vst.msk [vmem:[%s172 + $0x140] sm:$0xf] %vm1299, %v1251
      %1381 = vst.msk [vmem:[%s172 + $0x144] sm:$0xf] %vm1299, %v1252
      %1382 = vst.msk [vmem:[%s172 + $0x148] sm:$0xf] %vm1299, %v1253
      %1383 = vst.msk [vmem:[%s172 + $0x14c] sm:$0xf] %vm1299, %v1254
      %1384 = vst.msk [vmem:[%s172 + $0x150] sm:$0xf] %vm1299, %v1255
      %1385 = vst.msk [vmem:[%s172 + $0x154] sm:$0xf] %vm1299, %v1256
      %1386 = vst.msk [vmem:[%s172 + $0x158] sm:$0xf] %vm1299, %v1257
      %1387 = vst.msk [vmem:[%s172 + $0x15c] sm:$0xf] %vm1299, %v1258
      %1388 = vst.msk [vmem:[%s172 + $0x160] sm:$0xf] %vm1299, %v1259
      %1389 = vst.msk [vmem:[%s172 + $0x164] sm:$0xf] %vm1299, %v1260
      %1390 = vst.msk [vmem:[%s172 + $0x168] sm:$0xf] %vm1299, %v1261
      %1391 = vst.msk [vmem:[%s172 + $0x16c] sm:$0xf] %vm1299, %v1262
      %1392 = vst.msk [vmem:[%s172 + $0x170] sm:$0xf] %vm1299, %v1263
      %1393 = vst.msk [vmem:[%s172 + $0x174] sm:$0xf] %vm1299, %v1264
      %1394 = vst.msk [vmem:[%s172 + $0x178] sm:$0xf] %vm1299, %v1265
      %1395 = vst.msk [vmem:[%s172 + $0x17c] sm:$0xf] %vm1299, %v1266
      %1396 = vst.msk [vmem:[%s172 + $0x180] sm:$0xf] %vm1299, %v1267
      %1397 = vst.msk [vmem:[%s172 + $0x184] sm:$0xf] %vm1299, %v1268
      %1398 = vst.msk [vmem:[%s172 + $0x188] sm:$0xf] %vm1299, %v1269
      %1399 = vst.msk [vmem:[%s172 + $0x18c] sm:$0xf] %vm1299, %v1270
      %1400 = vst.msk [vmem:[%s172 + $0x190] sm:$0xf] %vm1299, %v1271
      %1401 = vst.msk [vmem:[%s172 + $0x194] sm:$0xf] %vm1299, %v1272
      %1402 = vst.msk [vmem:[%s172 + $0x198] sm:$0xf] %vm1299, %v1273
      %1403 = vst.msk [vmem:[%s172 + $0x19c] sm:$0xf] %vm1299, %v1274
      %1404 = vst.msk [vmem:[%s172 + $0x1a0] sm:$0xf] %vm1299, %v1275
      %1405 = vst.msk [vmem:[%s172 + $0x1a4] sm:$0xf] %vm1299, %v1276
      %1406 = vst.msk [vmem:[%s172 + $0x1a8] sm:$0xf] %vm1299, %v1277
      %1407 = vst.msk [vmem:[%s172 + $0x1ac] sm:$0xf] %vm1299, %v1278
      %1408 = vst.msk [vmem:[%s172 + $0x1b0] sm:$0xf] %vm1299, %v1279
      %1409 = vst.msk [vmem:[%s172 + $0x1b4] sm:$0xf] %vm1299, %v1280
      %1410 = vst.msk [vmem:[%s172 + $0x1b8] sm:$0xf] %vm1299, %v1281
      %1411 = vst.msk [vmem:[%s172 + $0x1bc] sm:$0xf] %vm1299, %v1282
      %1412 = vst.msk [vmem:[%s172 + $0x1c0] sm:$0xf] %vm1299, %v1283
      %1413 = vst.msk [vmem:[%s172 + $0x1c4] sm:$0xf] %vm1299, %v1284
      %1414 = vst.msk [vmem:[%s172 + $0x1c8] sm:$0xf] %vm1299, %v1285
      %1415 = vst.msk [vmem:[%s172 + $0x1cc] sm:$0xf] %vm1299, %v1286
      %1416 = vst.msk [vmem:[%s172 + $0x1d0] sm:$0xf] %vm1299, %v1287
      %1417 = vst.msk [vmem:[%s172 + $0x1d4] sm:$0xf] %vm1299, %v1288
      %1418 = vst.msk [vmem:[%s172 + $0x1d8] sm:$0xf] %vm1299, %v1289
      %1419 = vst.msk [vmem:[%s172 + $0x1dc] sm:$0xf] %vm1299, %v1290
      %1420 = vst.msk [vmem:[%s172 + $0x1e0] sm:$0xf] %vm1299, %v1291
      %1421 = vst.msk [vmem:[%s172 + $0x1e4] sm:$0xf] %vm1299, %v1292
      %1422 = vst.msk [vmem:[%s172 + $0x1e8] sm:$0xf] %vm1299, %v1293
      %1423 = vst.msk [vmem:[%s172 + $0x1ec] sm:$0xf] %vm1299, %v1294
      %1424 = vst.msk [vmem:[%s172 + $0x1f0] sm:$0xf] %vm1299, %v1295
      %1425 = vst.msk [vmem:[%s172 + $0x1f4] sm:$0xf] %vm1299, %v1296
      %1426 = vst.msk [vmem:[%s172 + $0x1f8] sm:$0xf] %vm1299, %v1297
      %1427 = vst.msk [vmem:[%s172 + $0x1fc] sm:$0xf] %vm1299, %v1298
      %s1428 = smul.u32 128, %s14
      %p1429 = scmp.lt.s32.totalorder %s1428, 255
      %s1430 = scalar_select %p1429, %s1428, 255
      %s1431 = smul.addr %s1430, 4
      %s1432 = scalar_lea.vmem %s3, %s1431
      // Predicated region
      $region33: #{_lambda_.7} parent=31 // pred_check
        %p1433 = pneg %p100
      $region34: #{_lambda_.7} parent=31 // pred_check_branch
        %1435 = sbr.rel (%p1433) target = $region36
      $region35: #{_lambda_.7} parent=31 // pred_region
        %s1436 = smul.u32 128, %s14
      $region36: #{_lambda_.7} parent=31 // pred_fallthru
        _
    $region32: #{_lambda_.7} parent=5 // pred_fallthru
      _
    %p1437 = scmp.le.s32.totalorder 2, %s9
    // Predicated region
    $region37: #{_lambda_.7} parent=5 // pred_check
      %p1438 = pneg %p1437
    $region38: #{_lambda_.7} parent=5 // pred_check_branch
      %1440 = sbr.rel (%p1438) target = $region40
    $region39: #{_lambda_.7} parent=5 // pred_region
      %s1441 = ssub.s32 %s9, 2
      // Predicated region
      $region41: #{_lambda_.7} parent=39 // pred_check
        %p1442 = pneg %p106
      $region42: #{_lambda_.7} parent=39 // pred_check_branch
        %1444 = sbr.rel (%p1442) target = $region44
      $region43: #{_lambda_.7} parent=39 // pred_region
        %s1445 = smul.u32 128, %s15
        %p1446 = scmp.lt.s32.totalorder %s1445, 255
        %s1447 = scalar_select %p1446, %s1445, 255
        %s1448 = smul.addr %s1447, 4
        %s1449 = scalar_lea.vmem %s3, %s1448
      $region44: #{_lambda_.7} parent=39 // pred_fallthru
        _
    $region40: #{_lambda_.7} parent=5 // pred_fallthru
      _
  $region6: #{_lambda_.7} parent=0 // loop_footer
    %s13 = sadd.s32 1, %s9
  $region7: #{_lambda_.7} parent=0 // loop_footer_branch
    %8 = sbr.rel target = $region3
  $region8: #{_lambda_.7} parent=0 // loop_exit
    _

// kernel: _lambda_.9
$region0: #{_lambda_.9}
  #allocation0 [shape = 'u32[]', space=smem, size = 0x4, offset = 0x4, fixed_abs, tag = 'smem constant byte address 0x4 - core index']
  #allocation1 [shape = 'u32[72,128]{1,0:T(1,128)}', space=vmem, size = 0x9000, scoped, tag = 'internal scratch']
  %s0 = inlined_call_operand.vmem [shape: bf16[2048,20], index: 0, kind: input, shape index: {}]
  %s1 = inlined_call_operand.vmem [shape: bf16[20,16], index: 1, kind: input, shape index: {}]
  %s2 = inlined_call_operand.vmem [shape: f32[1,16], index: 2, kind: input, shape index: {}]
  %s3 = inlined_call_operand.vmem [shape: bf16[2048,16], index: 3, kind: output, shape index: {}]
  %s4 = sld [smem:[#allocation0]]
  $region45: #{_lambda_.9} parent=0
    _
  %s6 = ssub.s32 1, %s4
  %s7 = scalar_select 0, %s6, %s4
  loop: start=0, step=1, limit=4
  $region2: #{_lambda_.9} parent=0 // loop_pre_header
    _
  $region3: #{_lambda_.9} parent=0 // loop_header
    %s9 = sphi 0, %s13
    %p10 = scmp.ge.s32.totalorder %s9, 4
    %s19 = sphi 0, %s21
    %s22 = sphi 0, %s19
    %s23 = sphi 0, %s22
    %s39 = sphi 0, %s23
    %s43 = sphi 0, %s43
    %s45 = sphi 0, %s43
    %s46 = sphi 0, %s45
    %s60 = sphi 0, %s46
    %s64 = sphi 0, %s64
    %s66 = sphi 0, %s64
    %s67 = sphi 0, %s66
    %s81 = sphi 0, %s67
    %s87 = sphi 0, %s89
    %s90 = sphi 0, %s87
    %s91 = sphi 0, %s90
    %s107 = sphi 0, %s91
  $region4: #{_lambda_.9} parent=0 // loop_header_branch
    %12 = sbr.rel (%p10) target = $region8
  $region5: #{_lambda_.9} parent=0 // loop_body
    %s14 = ssub.s32 %s9, 1
    %s15 = ssub.s32 %s9, 2
    %s16 = sadd.s32 %s9, 1
    %s17 = ssub.s32 %s9, %s16
    %p18 = scmp.eq.s32.totalorder %s17, 0
    %s20 = sadd.s32 %s19, 1
    %s21 = scalar_select %p18, %s19, %s20
    %p24 = pneg %p18
    %p25 = scmp.eq.s32.totalorder %s9, 1
    %p26 = por %p24, %p25
    %p27 = scmp.ne.s32.totalorder %s19, %s22
    %p28 = scmp.eq.s32.totalorder %s9, 0
    %p29 = por %p27, %p28
    %p30 = scmp.ne.s32.totalorder %s19, %s22
    %p31 = scmp.eq.s32.totalorder %s14, 1
    %p32 = por %p30, %p31
    %p33 = scmp.ne.s32.totalorder %s22, %s23
    %p34 = scmp.eq.s32.totalorder %s14, 0
    %p35 = por %p33, %p34
    %p36 = scmp.ne.s32.totalorder %s22, %s23
    %p37 = scmp.eq.s32.totalorder %s15, 1
    %p38 = por %p36, %p37
    %p40 = scmp.ne.s32.totalorder %s23, %s39
    %p41 = scmp.eq.s32.totalorder %s15, 0
    %p42 = por %p40, %p41
    %s44 = sadd.s32 %s43, 1
    %p47 = scmp.eq.s32.totalorder %s9, 1
    %p48 = scmp.ne.s32.totalorder %s43, %s45
    %p49 = scmp.eq.s32.totalorder %s9, 0
    %p50 = por %p48, %p49
    %p51 = scmp.ne.s32.totalorder %s43, %s45
    %p52 = scmp.eq.s32.totalorder %s14, 1
    %p53 = por %p51, %p52
    %p54 = scmp.ne.s32.totalorder %s45, %s46
    %p55 = scmp.eq.s32.totalorder %s14, 0
    %p56 = por %p54, %p55
    %p57 = scmp.ne.s32.totalorder %s45, %s46
    %p58 = scmp.eq.s32.totalorder %s15, 1
    %p59 = por %p57, %p58
    %p61 = scmp.ne.s32.totalorder %s46, %s60
    %p62 = scmp.eq.s32.totalorder %s15, 0
    %p63 = por %p61, %p62
    %s65 = sadd.s32 %s64, 1
    %p68 = scmp.eq.s32.totalorder %s9, 1
    %p69 = scmp.ne.s32.totalorder %s64, %s66
    %p70 = scmp.eq.s32.totalorder %s9, 0
    %p71 = por %p69, %p70
    %p72 = scmp.ne.s32.totalorder %s64, %s66
    %p73 = scmp.eq.s32.totalorder %s14, 1
    %p74 = por %p72, %p73
    %p75 = scmp.ne.s32.totalorder %s66, %s67
    %p76 = scmp.eq.s32.totalorder %s14, 0
    %p77 = por %p75, %p76
    %p78 = scmp.ne.s32.totalorder %s66, %s67
    %p79 = scmp.eq.s32.totalorder %s15, 1
    %p80 = por %p78, %p79
    %p82 = scmp.ne.s32.totalorder %s67, %s81
    %p83 = scmp.eq.s32.totalorder %s15, 0
    %p84 = por %p82, %p83
    %s85 = ssub.s32 %s9, %s16
    %p86 = scmp.eq.s32.totalorder %s85, 0
    %s88 = sadd.s32 %s87, 1
    %s89 = scalar_select %p86, %s87, %s88
    %p92 = pneg %p86
    %p93 = scmp.eq.s32.totalorder %s9, 1
    %p94 = por %p92, %p93
    %p95 = scmp.ne.s32.totalorder %s87, %s90
    %p96 = scmp.eq.s32.totalorder %s9, 0
    %p97 = por %p95, %p96
    %p98 = scmp.ne.s32.totalorder %s87, %s90
    %p99 = scmp.eq.s32.totalorder %s14, 1
    %p100 = por %p98, %p99
    %p101 = scmp.ne.s32.totalorder %s90, %s91
    %p102 = scmp.eq.s32.totalorder %s14, 0
    %p103 = por %p101, %p102
    %p104 = scmp.ne.s32.totalorder %s90, %s91
    %p105 = scmp.eq.s32.totalorder %s15, 1
    %p106 = por %p104, %p105
    %p108 = scmp.ne.s32.totalorder %s91, %s107
    %p109 = scmp.eq.s32.totalorder %s15, 0
    %p110 = por %p108, %p109
    %p111 = scmp.le.s32.totalorder 1, %s9
    %p112 = scmp.lt.s32.totalorder %s9, 3
    %p113 = pnand %p111, %p112
    %p114 = pneg %p113
    // Predicated region
    $region9: #{_lambda_.9} parent=5 // pred_check
      _
    $region10: #{_lambda_.9} parent=5 // pred_check_branch
      %116 = sbr.rel (%p113) target = $region12
    $region11: #{_lambda_.9} parent=5 // pred_region
      %s117 = ssub.s32 %s9, 1
      // Predicated region
      $region13: #{_lambda_.9} parent=11 // pred_check
        %p118 = pneg %p56
      $region14: #{_lambda_.9} parent=11 // pred_check_branch
        %120 = sbr.rel (%p118) target = $region16
      $region15: #{_lambda_.9} parent=11 // pred_region
        _
      $region16: #{_lambda_.9} parent=11 // pred_fallthru
        _
      // Predicated region
      $region17: #{_lambda_.9} parent=11 // pred_check
        %p121 = pneg %p77
      $region18: #{_lambda_.9} parent=11 // pred_check_branch
        %123 = sbr.rel (%p121) target = $region20
      $region19: #{_lambda_.9} parent=11 // pred_region
        _
      $region20: #{_lambda_.9} parent=11 // pred_fallthru
        _
    $region12: #{_lambda_.9} parent=5 // pred_fallthru
      _
    %p124 = scmp.lt.s32.totalorder %s9, 2
    // Predicated region
    $region21: #{_lambda_.9} parent=5 // pred_check
      %p125 = pneg %p124
    $region22: #{_lambda_.9} parent=5 // pred_check_branch
      %127 = sbr.rel (%p125) target = $region24
    $region23: #{_lambda_.9} parent=5 // pred_region
      // Predicated region
      $region25: #{_lambda_.9} parent=23 // pred_check
        %p128 = pneg %p29
      $region26: #{_lambda_.9} parent=23 // pred_check_branch
        %130 = sbr.rel (%p128) target = $region28
      $region27: #{_lambda_.9} parent=23 // pred_region
        %s131 = smul.u32 128, %s9
        %p132 = scmp.lt.s32.totalorder %s131, 255
        %s133 = scalar_select %p132, %s131, 255
        %s134 = smul.addr %s133, 4
        %s135 = scalar_lea.vmem %s0, %s134
        %s136 = smul.u32 128, %s9
      $region28: #{_lambda_.9} parent=23 // pred_fallthru
        _
    $region24: #{_lambda_.9} parent=5 // pred_fallthru
      _
    %p137 = scmp.le.s32.totalorder 1, %s9
    %p138 = scmp.lt.s32.totalorder %s9, 3
    %p139 = pnand %p137, %p138
    %p140 = pneg %p139
    // Predicated region
    $region29: #{_lambda_.9} parent=5 // pred_check
      _
    $region30: #{_lambda_.9} parent=5 // pred_check_branch
      %142 = sbr.rel (%p139) target = $region32
    $region31: #{_lambda_.9} parent=5 // pred_region
      %s143 = ssub.s32 %s9, 1
      %s144 = smul.u32 128, %s14
      %p145 = scmp.lt.s32.totalorder %s144, 255
      %s146 = scalar_select %p145, %s144, 255
      %s147 = smul.addr %s146, 4
      %s148 = scalar_lea.vmem %s0, %s147
      %p149 = pneg %p35
      %p150 = pneg %p32
      %p151 = pneg %p56
      %p152 = pneg %p53
      %p153 = pneg %p77
      %p154 = pneg %p74
      %p155 = pneg %p103
      %p156 = pneg %p100
      %s157 = smul.u32 128, %s14
      %p158 = scmp.lt.s32.totalorder %s157, 255
      %s159 = scalar_select %p158, %s157, 255
      %s160 = smul.addr %s159, 4
      %s161 = scalar_lea.vmem %s3, %s160
      %s162 = smul.u32 128, %s14
      %p163 = scmp.lt.s32.totalorder %s162, 255
      %s164 = scalar_select %p163, %s162, 255
      %s165 = smul.addr %s164, 4
      %s166 = scalar_lea.vmem %s0, %s165
      %s167 = smul.u32 128, %s14
      %s168 = smul.u32 128, %s14
      %p169 = scmp.lt.s32.totalorder %s168, 255
      %s170 = scalar_select %p169, %s168, 255
      %s171 = smul.addr %s170, 4
      %s172 = scalar_lea.vmem %s3, %s171
      %s173 = smul.u32 128, %s14
      %v175 = vld [vmem:[%s166] sm:$0xf]
      %v176 = vld [vmem:[%s166 + $0x4] sm:$0xf]
      %v177 = vld [vmem:[%s166 + $0x8] sm:$0xf]
      %v178 = vld [vmem:[%s166 + $0xc] sm:$0xf]
      %v179 = vld [vmem:[%s166 + $0x10] sm:$0xf]
      %v180 = vld [vmem:[%s166 + $0x14] sm:$0xf]
      %v181 = vld [vmem:[%s166 + $0x18] sm:$0xf]
      %v182 = vld [vmem:[%s166 + $0x1c] sm:$0xf]
      %v183 = vld [vmem:[%s166 + $0x20] sm:$0xf]
      %v184 = vld [vmem:[%s166 + $0x24] sm:$0xf]
      %v185 = vld [vmem:[%s166 + $0x28] sm:$0xf]
      %v186 = vld [vmem:[%s166 + $0x2c] sm:$0xf]
      %v187 = vld [vmem:[%s166 + $0x30] sm:$0xf]
      %v188 = vld [vmem:[%s166 + $0x34] sm:$0xf]
      %v189 = vld [vmem:[%s166 + $0x38] sm:$0xf]
      %v190 = vld [vmem:[%s166 + $0x3c] sm:$0xf]
      %v191 = vld [vmem:[%s166 + $0x40] sm:$0xf]
      %v192 = vld [vmem:[%s166 + $0x44] sm:$0xf]
      %v193 = vld [vmem:[%s166 + $0x48] sm:$0xf]
      %v194 = vld [vmem:[%s166 + $0x4c] sm:$0xf]
      %v195 = vld [vmem:[%s166 + $0x50] sm:$0xf]
      %v196 = vld [vmem:[%s166 + $0x54] sm:$0xf]
      %v197 = vld [vmem:[%s166 + $0x58] sm:$0xf]
      %v198 = vld [vmem:[%s166 + $0x5c] sm:$0xf]
      %v199 = vld [vmem:[%s166 + $0x60] sm:$0xf]
      %v200 = vld [vmem:[%s166 + $0x64] sm:$0xf]
      %v201 = vld [vmem:[%s166 + $0x68] sm:$0xf]
      %v202 = vld [vmem:[%s166 + $0x6c] sm:$0xf]
      %v203 = vld [vmem:[%s166 + $0x70] sm:$0xf]
      %v204 = vld [vmem:[%s166 + $0x74] sm:$0xf]
      %v205 = vld [vmem:[%s166 + $0x78] sm:$0xf]
      %v206 = vld [vmem:[%s166 + $0x7c] sm:$0xf]
      %v207 = vld [vmem:[%s166 + $0x80] sm:$0xf]
      %v208 = vld [vmem:[%s166 + $0x84] sm:$0xf]
      %v209 = vld [vmem:[%s166 + $0x88] sm:$0xf]
      %v210 = vld [vmem:[%s166 + $0x8c] sm:$0xf]
      %v211 = vld [vmem:[%s166 + $0x90] sm:$0xf]
      %v212 = vld [vmem:[%s166 + $0x94] sm:$0xf]
      %v213 = vld [vmem:[%s166 + $0x98] sm:$0xf]
      %v214 = vld [vmem:[%s166 + $0x9c] sm:$0xf]
      %v215 = vld [vmem:[%s166 + $0xa0] sm:$0xf]
      %v216 = vld [vmem:[%s166 + $0xa4] sm:$0xf]
      %v217 = vld [vmem:[%s166 + $0xa8] sm:$0xf]
      %v218 = vld [vmem:[%s166 + $0xac] sm:$0xf]
      %v219 = vld [vmem:[%s166 + $0xb0] sm:$0xf]
      %v220 = vld [vmem:[%s166 + $0xb4] sm:$0xf]
      %v221 = vld [vmem:[%s166 + $0xb8] sm:$0xf]
      %v222 = vld [vmem:[%s166 + $0xbc] sm:$0xf]
      %v223 = vld [vmem:[%s166 + $0xc0] sm:$0xf]
      %v224 = vld [vmem:[%s166 + $0xc4] sm:$0xf]
      %v225 = vld [vmem:[%s166 + $0xc8] sm:$0xf]
      %v226 = vld [vmem:[%s166 + $0xcc] sm:$0xf]
      %v227 = vld [vmem:[%s166 + $0xd0] sm:$0xf]
      %v228 = vld [vmem:[%s166 + $0xd4] sm:$0xf]
      %v229 = vld [vmem:[%s166 + $0xd8] sm:$0xf]
      %v230 = vld [vmem:[%s166 + $0xdc] sm:$0xf]
      %v231 = vld [vmem:[%s166 + $0xe0] sm:$0xf]
      %v232 = vld [vmem:[%s166 + $0xe4] sm:$0xf]
      %v233 = vld [vmem:[%s166 + $0xe8] sm:$0xf]
      %v234 = vld [vmem:[%s166 + $0xec] sm:$0xf]
      %v235 = vld [vmem:[%s166 + $0xf0] sm:$0xf]
      %v236 = vld [vmem:[%s166 + $0xf4] sm:$0xf]
      %v237 = vld [vmem:[%s166 + $0xf8] sm:$0xf]
      %v238 = vld [vmem:[%s166 + $0xfc] sm:$0xf]
      %v239 = vld [vmem:[%s166 + $0x100] sm:$0xf]
      %v240 = vld [vmem:[%s166 + $0x104] sm:$0xf]
      %v241 = vld [vmem:[%s166 + $0x108] sm:$0xf]
      %v242 = vld [vmem:[%s166 + $0x10c] sm:$0xf]
      %v243 = vld [vmem:[%s166 + $0x110] sm:$0xf]
      %v244 = vld [vmem:[%s166 + $0x114] sm:$0xf]
      %v245 = vld [vmem:[%s166 + $0x118] sm:$0xf]
      %v246 = vld [vmem:[%s166 + $0x11c] sm:$0xf]
      %v247 = vld [vmem:[%s166 + $0x120] sm:$0xf]
      %v248 = vld [vmem:[%s166 + $0x124] sm:$0xf]
      %v249 = vld [vmem:[%s166 + $0x128] sm:$0xf]
      %v250 = vld [vmem:[%s166 + $0x12c] sm:$0xf]
      %v251 = vld [vmem:[%s166 + $0x130] sm:$0xf]
      %v252 = vld [vmem:[%s166 + $0x134] sm:$0xf]
      %v253 = vld [vmem:[%s166 + $0x138] sm:$0xf]
      %v254 = vld [vmem:[%s166 + $0x13c] sm:$0xf]
      %v255 = vld [vmem:[%s166 + $0x140] sm:$0xf]
      %v256 = vld [vmem:[%s166 + $0x144] sm:$0xf]
      %v257 = vld [vmem:[%s166 + $0x148] sm:$0xf]
      %v258 = vld [vmem:[%s166 + $0x14c] sm:$0xf]
      %v259 = vld [vmem:[%s166 + $0x150] sm:$0xf]
      %v260 = vld [vmem:[%s166 + $0x154] sm:$0xf]
      %v261 = vld [vmem:[%s166 + $0x158] sm:$0xf]
      %v262 = vld [vmem:[%s166 + $0x15c] sm:$0xf]
      %v263 = vld [vmem:[%s166 + $0x160] sm:$0xf]
      %v264 = vld [vmem:[%s166 + $0x164] sm:$0xf]
      %v265 = vld [vmem:[%s166 + $0x168] sm:$0xf]
      %v266 = vld [vmem:[%s166 + $0x16c] sm:$0xf]
      %v267 = vld [vmem:[%s166 + $0x170] sm:$0xf]
      %v268 = vld [vmem:[%s166 + $0x174] sm:$0xf]
      %v269 = vld [vmem:[%s166 + $0x178] sm:$0xf]
      %v270 = vld [vmem:[%s166 + $0x17c] sm:$0xf]
      %v271 = vld [vmem:[%s166 + $0x180] sm:$0xf]
      %v272 = vld [vmem:[%s166 + $0x184] sm:$0xf]
      %v273 = vld [vmem:[%s166 + $0x188] sm:$0xf]
      %v274 = vld [vmem:[%s166 + $0x18c] sm:$0xf]
      %v275 = vld [vmem:[%s166 + $0x190] sm:$0xf]
      %v276 = vld [vmem:[%s166 + $0x194] sm:$0xf]
      %v277 = vld [vmem:[%s166 + $0x198] sm:$0xf]
      %v278 = vld [vmem:[%s166 + $0x19c] sm:$0xf]
      %v279 = vld [vmem:[%s166 + $0x1a0] sm:$0xf]
      %v280 = vld [vmem:[%s166 + $0x1a4] sm:$0xf]
      %v281 = vld [vmem:[%s166 + $0x1a8] sm:$0xf]
      %v282 = vld [vmem:[%s166 + $0x1ac] sm:$0xf]
      %v283 = vld [vmem:[%s166 + $0x1b0] sm:$0xf]
      %v284 = vld [vmem:[%s166 + $0x1b4] sm:$0xf]
      %v285 = vld [vmem:[%s166 + $0x1b8] sm:$0xf]
      %v286 = vld [vmem:[%s166 + $0x1bc] sm:$0xf]
      %v287 = vld [vmem:[%s166 + $0x1c0] sm:$0xf]
      %v288 = vld [vmem:[%s166 + $0x1c4] sm:$0xf]
      %v289 = vld [vmem:[%s166 + $0x1c8] sm:$0xf]
      %v290 = vld [vmem:[%s166 + $0x1cc] sm:$0xf]
      %v291 = vld [vmem:[%s166 + $0x1d0] sm:$0xf]
      %v292 = vld [vmem:[%s166 + $0x1d4] sm:$0xf]
      %v293 = vld [vmem:[%s166 + $0x1d8] sm:$0xf]
      %v294 = vld [vmem:[%s166 + $0x1dc] sm:$0xf]
      %v295 = vld [vmem:[%s166 + $0x1e0] sm:$0xf]
      %v296 = vld [vmem:[%s166 + $0x1e4] sm:$0xf]
      %v297 = vld [vmem:[%s166 + $0x1e8] sm:$0xf]
      %v298 = vld [vmem:[%s166 + $0x1ec] sm:$0xf]
      %v299 = vld [vmem:[%s166 + $0x1f0] sm:$0xf]
      %v300 = vld [vmem:[%s166 + $0x1f4] sm:$0xf]
      %v301 = vld [vmem:[%s166 + $0x1f8] sm:$0xf]
      %v302 = vld [vmem:[%s166 + $0x1fc] sm:$0xf]
      %v303 = vunpack.c.l.bf16 %v175
      %v304 = vunpack.c.l.bf16 %v176
      %v305 = vunpack.c.l.bf16 %v177
      %v306 = vunpack.c.l.bf16 %v178
      %v307 = vunpack.c.l.bf16 %v179
      %v308 = vunpack.c.l.bf16 %v180
      %v309 = vunpack.c.l.bf16 %v181
      %v310 = vunpack.c.l.bf16 %v182
      %v311 = vunpack.c.l.bf16 %v183
      %v312 = vunpack.c.l.bf16 %v184
      %v313 = vunpack.c.l.bf16 %v185
      %v314 = vunpack.c.l.bf16 %v186
      %v315 = vunpack.c.l.bf16 %v187
      %v316 = vunpack.c.l.bf16 %v188
      %v317 = vunpack.c.l.bf16 %v189
      %v318 = vunpack.c.l.bf16 %v190
      %v319 = vunpack.c.l.bf16 %v191
      %v320 = vunpack.c.l.bf16 %v192
      %v321 = vunpack.c.l.bf16 %v193
      %v322 = vunpack.c.l.bf16 %v194
      %v323 = vunpack.c.l.bf16 %v195
      %v324 = vunpack.c.l.bf16 %v196
      %v325 = vunpack.c.l.bf16 %v197
      %v326 = vunpack.c.l.bf16 %v198
      %v327 = vunpack.c.l.bf16 %v199
      %v328 = vunpack.c.l.bf16 %v200
      %v329 = vunpack.c.l.bf16 %v201
      %v330 = vunpack.c.l.bf16 %v202
      %v331 = vunpack.c.l.bf16 %v203
      %v332 = vunpack.c.l.bf16 %v204
      %v333 = vunpack.c.l.bf16 %v205
      %v334 = vunpack.c.l.bf16 %v206
      %v335 = vunpack.c.l.bf16 %v207
      %v336 = vunpack.c.l.bf16 %v208
      %v337 = vunpack.c.l.bf16 %v209
      %v338 = vunpack.c.l.bf16 %v210
      %v339 = vunpack.c.l.bf16 %v211
      %v340 = vunpack.c.l.bf16 %v212
      %v341 = vunpack.c.l.bf16 %v213
      %v342 = vunpack.c.l.bf16 %v214
      %v343 = vunpack.c.l.bf16 %v215
      %v344 = vunpack.c.l.bf16 %v216
      %v345 = vunpack.c.l.bf16 %v217
      %v346 = vunpack.c.l.bf16 %v218
      %v347 = vunpack.c.l.bf16 %v219
      %v348 = vunpack.c.l.bf16 %v220
      %v349 = vunpack.c.l.bf16 %v221
      %v350 = vunpack.c.l.bf16 %v222
      %v351 = vunpack.c.l.bf16 %v223
      %v352 = vunpack.c.l.bf16 %v224
      %v353 = vunpack.c.l.bf16 %v225
      %v354 = vunpack.c.l.bf16 %v226
      %v355 = vunpack.c.l.bf16 %v227
      %v356 = vunpack.c.l.bf16 %v228
      %v357 = vunpack.c.l.bf16 %v229
      %v358 = vunpack.c.l.bf16 %v230
      %v359 = vunpack.c.l.bf16 %v231
      %v360 = vunpack.c.l.bf16 %v232
      %v361 = vunpack.c.l.bf16 %v233
      %v362 = vunpack.c.l.bf16 %v234
      %v363 = vunpack.c.l.bf16 %v235
      %v364 = vunpack.c.l.bf16 %v236
      %v365 = vunpack.c.l.bf16 %v237
      %v366 = vunpack.c.l.bf16 %v238
      %v367 = vunpack.c.l.bf16 %v239
      %v368 = vunpack.c.l.bf16 %v240
      %v369 = vunpack.c.l.bf16 %v241
      %v370 = vunpack.c.l.bf16 %v242
      %v371 = vunpack.c.l.bf16 %v243
      %v372 = vunpack.c.l.bf16 %v244
      %v373 = vunpack.c.l.bf16 %v245
      %v374 = vunpack.c.l.bf16 %v246
      %v375 = vunpack.c.l.bf16 %v247
      %v376 = vunpack.c.l.bf16 %v248
      %v377 = vunpack.c.l.bf16 %v249
      %v378 = vunpack.c.l.bf16 %v250
      %v379 = vunpack.c.l.bf16 %v251
      %v380 = vunpack.c.l.bf16 %v252
      %v381 = vunpack.c.l.bf16 %v253
      %v382 = vunpack.c.l.bf16 %v254
      %v383 = vunpack.c.l.bf16 %v255
      %v384 = vunpack.c.l.bf16 %v256
      %v385 = vunpack.c.l.bf16 %v257
      %v386 = vunpack.c.l.bf16 %v258
      %v387 = vunpack.c.l.bf16 %v259
      %v388 = vunpack.c.l.bf16 %v260
      %v389 = vunpack.c.l.bf16 %v261
      %v390 = vunpack.c.l.bf16 %v262
      %v391 = vunpack.c.l.bf16 %v263
      %v392 = vunpack.c.l.bf16 %v264
      %v393 = vunpack.c.l.bf16 %v265
      %v394 = vunpack.c.l.bf16 %v266
      %v395 = vunpack.c.l.bf16 %v267
      %v396 = vunpack.c.l.bf16 %v268
      %v397 = vunpack.c.l.bf16 %v269
      %v398 = vunpack.c.l.bf16 %v270
      %v399 = vunpack.c.l.bf16 %v271
      %v400 = vunpack.c.l.bf16 %v272
      %v401 = vunpack.c.l.bf16 %v273
      %v402 = vunpack.c.l.bf16 %v274
      %v403 = vunpack.c.l.bf16 %v275
      %v404 = vunpack.c.l.bf16 %v276
      %v405 = vunpack.c.l.bf16 %v277
      %v406 = vunpack.c.l.bf16 %v278
      %v407 = vunpack.c.l.bf16 %v279
      %v408 = vunpack.c.l.bf16 %v280
      %v409 = vunpack.c.l.bf16 %v281
      %v410 = vunpack.c.l.bf16 %v282
      %v411 = vunpack.c.l.bf16 %v283
      %v412 = vunpack.c.l.bf16 %v284
      %v413 = vunpack.c.l.bf16 %v285
      %v414 = vunpack.c.l.bf16 %v286
      %v415 = vunpack.c.l.bf16 %v287
      %v416 = vunpack.c.l.bf16 %v288
      %v417 = vunpack.c.l.bf16 %v289
      %v418 = vunpack.c.l.bf16 %v290
      %v419 = vunpack.c.l.bf16 %v291
      %v420 = vunpack.c.l.bf16 %v292
      %v421 = vunpack.c.l.bf16 %v293
      %v422 = vunpack.c.l.bf16 %v294
      %v423 = vunpack.c.l.bf16 %v295
      %v424 = vunpack.c.l.bf16 %v296
      %v425 = vunpack.c.l.bf16 %v297
      %v426 = vunpack.c.l.bf16 %v298
      %v427 = vunpack.c.l.bf16 %v299
      %v428 = vunpack.c.l.bf16 %v300
      %v429 = vunpack.c.l.bf16 %v301
      %v430 = vunpack.c.l.bf16 %v302
      %v431 = vmax.f32 %v303, 0.0
      %v432 = vmax.f32 %v304, 0.0
      %v433 = vmax.f32 %v305, 0.0
      %v434 = vmax.f32 %v306, 0.0
      %v435 = vmax.f32 %v307, 0.0
      %v436 = vmax.f32 %v308, 0.0
      %v437 = vmax.f32 %v309, 0.0
      %v438 = vmax.f32 %v310, 0.0
      %v439 = vmax.f32 %v311, 0.0
      %v440 = vmax.f32 %v312, 0.0
      %v441 = vmax.f32 %v313, 0.0
      %v442 = vmax.f32 %v314, 0.0
      %v443 = vmax.f32 %v315, 0.0
      %v444 = vmax.f32 %v316, 0.0
      %v445 = vmax.f32 %v317, 0.0
      %v446 = vmax.f32 %v318, 0.0
      %v447 = vmax.f32 %v319, 0.0
      %v448 = vmax.f32 %v320, 0.0
      %v449 = vmax.f32 %v321, 0.0
      %v450 = vmax.f32 %v322, 0.0
      %v451 = vmax.f32 %v323, 0.0
      %v452 = vmax.f32 %v324, 0.0
      %v453 = vmax.f32 %v325, 0.0
      %v454 = vmax.f32 %v326, 0.0
      %v455 = vmax.f32 %v327, 0.0
      %v456 = vmax.f32 %v328, 0.0
      %v457 = vmax.f32 %v329, 0.0
      %v458 = vmax.f32 %v330, 0.0
      %v459 = vmax.f32 %v331, 0.0
      %v460 = vmax.f32 %v332, 0.0
      %v461 = vmax.f32 %v333, 0.0
      %v462 = vmax.f32 %v334, 0.0
      %v463 = vmax.f32 %v335, 0.0
      %v464 = vmax.f32 %v336, 0.0
      %v465 = vmax.f32 %v337, 0.0
      %v466 = vmax.f32 %v338, 0.0
      %v467 = vmax.f32 %v339, 0.0
      %v468 = vmax.f32 %v340, 0.0
      %v469 = vmax.f32 %v341, 0.0
      %v470 = vmax.f32 %v342, 0.0
      %v471 = vmax.f32 %v343, 0.0
      %v472 = vmax.f32 %v344, 0.0
      %v473 = vmax.f32 %v345, 0.0
      %v474 = vmax.f32 %v346, 0.0
      %v475 = vmax.f32 %v347, 0.0
      %v476 = vmax.f32 %v348, 0.0
      %v477 = vmax.f32 %v349, 0.0
      %v478 = vmax.f32 %v350, 0.0
      %v479 = vmax.f32 %v351, 0.0
      %v480 = vmax.f32 %v352, 0.0
      %v481 = vmax.f32 %v353, 0.0
      %v482 = vmax.f32 %v354, 0.0
      %v483 = vmax.f32 %v355, 0.0
      %v484 = vmax.f32 %v356, 0.0
      %v485 = vmax.f32 %v357, 0.0
      %v486 = vmax.f32 %v358, 0.0
      %v487 = vmax.f32 %v359, 0.0
      %v488 = vmax.f32 %v360, 0.0
      %v489 = vmax.f32 %v361, 0.0
      %v490 = vmax.f32 %v362, 0.0
      %v491 = vmax.f32 %v363, 0.0
      %v492 = vmax.f32 %v364, 0.0
      %v493 = vmax.f32 %v365, 0.0
      %v494 = vmax.f32 %v366, 0.0
      %v495 = vmax.f32 %v367, 0.0
      %v496 = vmax.f32 %v368, 0.0
      %v497 = vmax.f32 %v369, 0.0
      %v498 = vmax.f32 %v370, 0.0
      %v499 = vmax.f32 %v371, 0.0
      %v500 = vmax.f32 %v372, 0.0
      %v501 = vmax.f32 %v373, 0.0
      %v502 = vmax.f32 %v374, 0.0
      %v503 = vmax.f32 %v375, 0.0
      %v504 = vmax.f32 %v376, 0.0
      %v505 = vmax.f32 %v377, 0.0
      %v506 = vmax.f32 %v378, 0.0
      %v507 = vmax.f32 %v379, 0.0
      %v508 = vmax.f32 %v380, 0.0
      %v509 = vmax.f32 %v381, 0.0
      %v510 = vmax.f32 %v382, 0.0
      %v511 = vmax.f32 %v383, 0.0
      %v512 = vmax.f32 %v384, 0.0
      %v513 = vmax.f32 %v385, 0.0
      %v514 = vmax.f32 %v386, 0.0
      %v515 = vmax.f32 %v387, 0.0
      %v516 = vmax.f32 %v388, 0.0
      %v517 = vmax.f32 %v389, 0.0
      %v518 = vmax.f32 %v390, 0.0
      %v519 = vmax.f32 %v391, 0.0
      %v520 = vmax.f32 %v392, 0.0
      %v521 = vmax.f32 %v393, 0.0
      %v522 = vmax.f32 %v394, 0.0
      %v523 = vmax.f32 %v395, 0.0
      %v524 = vmax.f32 %v396, 0.0
      %v525 = vmax.f32 %v397, 0.0
      %v526 = vmax.f32 %v398, 0.0
      %v527 = vmax.f32 %v399, 0.0
      %v528 = vmax.f32 %v400, 0.0
      %v529 = vmax.f32 %v401, 0.0
      %v530 = vmax.f32 %v402, 0.0
      %v531 = vmax.f32 %v403, 0.0
      %v532 = vmax.f32 %v404, 0.0
      %v533 = vmax.f32 %v405, 0.0
      %v534 = vmax.f32 %v406, 0.0
      %v535 = vmax.f32 %v407, 0.0
      %v536 = vmax.f32 %v408, 0.0
      %v537 = vmax.f32 %v409, 0.0
      %v538 = vmax.f32 %v410, 0.0
      %v539 = vmax.f32 %v411, 0.0
      %v540 = vmax.f32 %v412, 0.0
      %v541 = vmax.f32 %v413, 0.0
      %v542 = vmax.f32 %v414, 0.0
      %v543 = vmax.f32 %v415, 0.0
      %v544 = vmax.f32 %v416, 0.0
      %v545 = vmax.f32 %v417, 0.0
      %v546 = vmax.f32 %v418, 0.0
      %v547 = vmax.f32 %v419, 0.0
      %v548 = vmax.f32 %v420, 0.0
      %v549 = vmax.f32 %v421, 0.0
      %v550 = vmax.f32 %v422, 0.0
      %v551 = vmax.f32 %v423, 0.0
      %v552 = vmax.f32 %v424, 0.0
      %v553 = vmax.f32 %v425, 0.0
      %v554 = vmax.f32 %v426, 0.0
      %v555 = vmax.f32 %v427, 0.0
      %v556 = vmax.f32 %v428, 0.0
      %v557 = vmax.f32 %v429, 0.0
      %v558 = vmax.f32 %v430, 0.0
      %v559 = vpack.c.bf16 %v432, %v431
      %v560 = vpack.c.bf16 %v434, %v433
      %v561 = vpack.c.bf16 %v436, %v435
      %v562 = vpack.c.bf16 %v438, %v437
      %v563 = vpack.c.bf16 %v440, %v439
      %v564 = vpack.c.bf16 %v442, %v441
      %v565 = vpack.c.bf16 %v444, %v443
      %v566 = vpack.c.bf16 %v446, %v445
      %v567 = vpack.c.bf16 %v448, %v447
      %v568 = vpack.c.bf16 %v450, %v449
      %v569 = vpack.c.bf16 %v452, %v451
      %v570 = vpack.c.bf16 %v454, %v453
      %v571 = vpack.c.bf16 %v456, %v455
      %v572 = vpack.c.bf16 %v458, %v457
      %v573 = vpack.c.bf16 %v460, %v459
      %v574 = vpack.c.bf16 %v462, %v461
      %v575 = vpack.c.bf16 %v464, %v463
      %v576 = vpack.c.bf16 %v466, %v465
      %v577 = vpack.c.bf16 %v468, %v467
      %v578 = vpack.c.bf16 %v470, %v469
      %v579 = vpack.c.bf16 %v472, %v471
      %v580 = vpack.c.bf16 %v474, %v473
      %v581 = vpack.c.bf16 %v476, %v475
      %v582 = vpack.c.bf16 %v478, %v477
      %v583 = vpack.c.bf16 %v480, %v479
      %v584 = vpack.c.bf16 %v482, %v481
      %v585 = vpack.c.bf16 %v484, %v483
      %v586 = vpack.c.bf16 %v486, %v485
      %v587 = vpack.c.bf16 %v488, %v487
      %v588 = vpack.c.bf16 %v490, %v489
      %v589 = vpack.c.bf16 %v492, %v491
      %v590 = vpack.c.bf16 %v494, %v493
      %v591 = vpack.c.bf16 %v496, %v495
      %v592 = vpack.c.bf16 %v498, %v497
      %v593 = vpack.c.bf16 %v500, %v499
      %v594 = vpack.c.bf16 %v502, %v501
      %v595 = vpack.c.bf16 %v504, %v503
      %v596 = vpack.c.bf16 %v506, %v505
      %v597 = vpack.c.bf16 %v508, %v507
      %v598 = vpack.c.bf16 %v510, %v509
      %v599 = vpack.c.bf16 %v512, %v511
      %v600 = vpack.c.bf16 %v514, %v513
      %v601 = vpack.c.bf16 %v516, %v515
      %v602 = vpack.c.bf16 %v518, %v517
      %v603 = vpack.c.bf16 %v520, %v519
      %v604 = vpack.c.bf16 %v522, %v521
      %v605 = vpack.c.bf16 %v524, %v523
      %v606 = vpack.c.bf16 %v526, %v525
      %v607 = vpack.c.bf16 %v528, %v527
      %v608 = vpack.c.bf16 %v530, %v529
      %v609 = vpack.c.bf16 %v532, %v531
      %v610 = vpack.c.bf16 %v534, %v533
      %v611 = vpack.c.bf16 %v536, %v535
      %v612 = vpack.c.bf16 %v538, %v537
      %v613 = vpack.c.bf16 %v540, %v539
      %v614 = vpack.c.bf16 %v542, %v541
      %v615 = vpack.c.bf16 %v544, %v543
      %v616 = vpack.c.bf16 %v546, %v545
      %v617 = vpack.c.bf16 %v548, %v547
      %v618 = vpack.c.bf16 %v550, %v549
      %v619 = vpack.c.bf16 %v552, %v551
      %v620 = vpack.c.bf16 %v554, %v553
      %v621 = vpack.c.bf16 %v556, %v555
      %v622 = vpack.c.bf16 %v558, %v557
      %v623 = vld [vmem:[%s1] sm:$0xf]
      %v624 = vld [vmem:[%s1 + $0x4] sm:$0xf]
      %v625 = vld [vmem:[%s1 + $0x8] sm:$0x3]
      %v626 = vld [vmem:[%s2] sm:$0x1]
      %v628 = vperm.slane %v626, 0
      %v633 = vunpack.c.l.b16 %v623
      %v634 = vunpack.c.l.b16 %v624
      %v635 = vunpack.c.l.b16 %v625
      %v636 = vpack.c.b16 %v634, %v633
      %v637 = vpack.c.b16 %v635, %v635
      %vm639 = vcmask 162816
      %v641 = vsel %vm639, %v559, 0
      %v644 = vsel %vm639, %v560, 0
      %v647 = vsel %vm639, %v561, 0
      %v650 = vsel %vm639, %v562, 0
      %v653 = vsel %vm639, %v563, 0
      %v656 = vsel %vm639, %v564, 0
      %v659 = vsel %vm639, %v565, 0
      %v662 = vsel %vm639, %v566, 0
      %v665 = vsel %vm639, %v567, 0
      %v668 = vsel %vm639, %v568, 0
      %v671 = vsel %vm639, %v569, 0
      %v674 = vsel %vm639, %v570, 0
      %v677 = vsel %vm639, %v571, 0
      %v680 = vsel %vm639, %v572, 0
      %v683 = vsel %vm639, %v573, 0
      %v686 = vsel %vm639, %v574, 0
      %v689 = vsel %vm639, %v575, 0
      %v692 = vsel %vm639, %v576, 0
      %v695 = vsel %vm639, %v577, 0
      %v698 = vsel %vm639, %v578, 0
      %v701 = vsel %vm639, %v579, 0
      %v704 = vsel %vm639, %v580, 0
      %v707 = vsel %vm639, %v581, 0
      %v710 = vsel %vm639, %v582, 0
      %v713 = vsel %vm639, %v583, 0
      %v716 = vsel %vm639, %v584, 0
      %v719 = vsel %vm639, %v585, 0
      %v722 = vsel %vm639, %v586, 0
      %v725 = vsel %vm639, %v587, 0
      %v728 = vsel %vm639, %v588, 0
      %v731 = vsel %vm639, %v589, 0
      %v734 = vsel %vm639, %v590, 0
      %v737 = vsel %vm639, %v591, 0
      %v740 = vsel %vm639, %v592, 0
      %v743 = vsel %vm639, %v593, 0
      %v746 = vsel %vm639, %v594, 0
      %v749 = vsel %vm639, %v595, 0
      %v752 = vsel %vm639, %v596, 0
      %v755 = vsel %vm639, %v597, 0
      %v758 = vsel %vm639, %v598, 0
      %v761 = vsel %vm639, %v599, 0
      %v764 = vsel %vm639, %v600, 0
      %v767 = vsel %vm639, %v601, 0
      %v770 = vsel %vm639, %v602, 0
      %v773 = vsel %vm639, %v603, 0
      %v776 = vsel %vm639, %v604, 0
      %v779 = vsel %vm639, %v605, 0
      %v782 = vsel %vm639, %v606, 0
      %v785 = vsel %vm639, %v607, 0
      %v788 = vsel %vm639, %v608, 0
      %v791 = vsel %vm639, %v609, 0
      %v794 = vsel %vm639, %v610, 0
      %v797 = vsel %vm639, %v611, 0
      %v800 = vsel %vm639, %v612, 0
      %v803 = vsel %vm639, %v613, 0
      %v806 = vsel %vm639, %v614, 0
      %v809 = vsel %vm639, %v615, 0
      %v812 = vsel %vm639, %v616, 0
      %v815 = vsel %vm639, %v617, 0
      %v818 = vsel %vm639, %v618, 0
      %v821 = vsel %vm639, %v619, 0
      %v824 = vsel %vm639, %v620, 0
      %v827 = vsel %vm639, %v621, 0
      %v830 = vsel %vm639, %v622, 0
      %vm832 = vcmask 1041408
      %v834 = vsel %vm832, %v637, 0
      %836 = vmatpush.bf16.msra.mxu0 0
      %837 = vmatpush.bf16.msra.mxu0 0
      %838 = vmatpush.bf16.msra.mxu0 0
      %839 = vmatpush.bf16.msra.mxu0 0
      %840 = vmatpush.bf16.msra.mxu0 0
      %841 = vmatpush.bf16.msra.mxu0 0
      %842 = vmatpush.bf16.msra.mxu0 %v834
      %843 = vmatpush.bf16.msra.mxu0 %v636
      %844 = vmatmul.bf16.gmra.mxu0 %v641
      %v845 = vpop.f32.mrf.mxu0
      %v846 = vadd.f32 %v628, %v845
      %v847 = vpop.f32.mrf.mxu0
      %v848 = vadd.f32 %v628, %v847
      %849 = vmatmul.bf16.gmra.mxu0 %v644
      %v850 = vpop.f32.mrf.mxu0
      %v851 = vadd.f32 %v628, %v850
      %v852 = vpop.f32.mrf.mxu0
      %v853 = vadd.f32 %v628, %v852
      %854 = vmatmul.bf16.gmra.mxu0 %v647
      %v855 = vpop.f32.mrf.mxu0
      %v856 = vadd.f32 %v628, %v855
      %v857 = vpop.f32.mrf.mxu0
      %v858 = vadd.f32 %v628, %v857
      %859 = vmatmul.bf16.gmra.mxu0 %v650
      %v860 = vpop.f32.mrf.mxu0
      %v861 = vadd.f32 %v628, %v860
      %v862 = vpop.f32.mrf.mxu0
      %v863 = vadd.f32 %v628, %v862
      %864 = vmatmul.bf16.gmra.mxu0 %v653
      %v865 = vpop.f32.mrf.mxu0
      %v866 = vadd.f32 %v628, %v865
      %v867 = vpop.f32.mrf.mxu0
      %v868 = vadd.f32 %v628, %v867
      %869 = vmatmul.bf16.gmra.mxu0 %v656
      %v870 = vpop.f32.mrf.mxu0
      %v871 = vadd.f32 %v628, %v870
      %v872 = vpop.f32.mrf.mxu0
      %v873 = vadd.f32 %v628, %v872
      %874 = vmatmul.bf16.gmra.mxu0 %v659
      %v875 = vpop.f32.mrf.mxu0
      %v876 = vadd.f32 %v628, %v875
      %v877 = vpop.f32.mrf.mxu0
      %v878 = vadd.f32 %v628, %v877
      %879 = vmatmul.bf16.gmra.mxu0 %v662
      %v880 = vpop.f32.mrf.mxu0
      %v881 = vadd.f32 %v628, %v880
      %v882 = vpop.f32.mrf.mxu0
      %v883 = vadd.f32 %v628, %v882
      %884 = vmatmul.bf16.gmra.mxu0 %v665
      %v885 = vpop.f32.mrf.mxu0
      %v886 = vadd.f32 %v628, %v885
      %v887 = vpop.f32.mrf.mxu0
      %v888 = vadd.f32 %v628, %v887
      %889 = vmatmul.bf16.gmra.mxu0 %v668
      %v890 = vpop.f32.mrf.mxu0
      %v891 = vadd.f32 %v628, %v890
      %v892 = vpop.f32.mrf.mxu0
      %v893 = vadd.f32 %v628, %v892
      %894 = vmatmul.bf16.gmra.mxu0 %v671
      %v895 = vpop.f32.mrf.mxu0
      %v896 = vadd.f32 %v628, %v895
      %v897 = vpop.f32.mrf.mxu0
      %v898 = vadd.f32 %v628, %v897
      %899 = vmatmul.bf16.gmra.mxu0 %v674
      %v900 = vpop.f32.mrf.mxu0
      %v901 = vadd.f32 %v628, %v900
      %v902 = vpop.f32.mrf.mxu0
      %v903 = vadd.f32 %v628, %v902
      %904 = vmatmul.bf16.gmra.mxu0 %v677
      %v905 = vpop.f32.mrf.mxu0
      %v906 = vadd.f32 %v628, %v905
      %v907 = vpop.f32.mrf.mxu0
      %v908 = vadd.f32 %v628, %v907
      %909 = vmatmul.bf16.gmra.mxu0 %v680
      %v910 = vpop.f32.mrf.mxu0
      %v911 = vadd.f32 %v628, %v910
      %v912 = vpop.f32.mrf.mxu0
      %v913 = vadd.f32 %v628, %v912
      %914 = vmatmul.bf16.gmra.mxu0 %v683
      %v915 = vpop.f32.mrf.mxu0
      %v916 = vadd.f32 %v628, %v915
      %v917 = vpop.f32.mrf.mxu0
      %v918 = vadd.f32 %v628, %v917
      %919 = vmatmul.bf16.gmra.mxu0 %v686
      %v920 = vpop.f32.mrf.mxu0
      %v921 = vadd.f32 %v628, %v920
      %v922 = vpop.f32.mrf.mxu0
      %v923 = vadd.f32 %v628, %v922
      %924 = vmatmul.bf16.gmra.mxu0 %v689
      %v925 = vpop.f32.mrf.mxu0
      %v926 = vadd.f32 %v628, %v925
      %v927 = vpop.f32.mrf.mxu0
      %v928 = vadd.f32 %v628, %v927
      %929 = vmatmul.bf16.gmra.mxu0 %v692
      %v930 = vpop.f32.mrf.mxu0
      %v931 = vadd.f32 %v628, %v930
      %v932 = vpop.f32.mrf.mxu0
      %v933 = vadd.f32 %v628, %v932
      %934 = vmatmul.bf16.gmra.mxu0 %v695
      %v935 = vpop.f32.mrf.mxu0
      %v936 = vadd.f32 %v628, %v935
      %v937 = vpop.f32.mrf.mxu0
      %v938 = vadd.f32 %v628, %v937
      %939 = vmatmul.bf16.gmra.mxu0 %v698
      %v940 = vpop.f32.mrf.mxu0
      %v941 = vadd.f32 %v628, %v940
      %v942 = vpop.f32.mrf.mxu0
      %v943 = vadd.f32 %v628, %v942
      %944 = vmatmul.bf16.gmra.mxu0 %v701
      %v945 = vpop.f32.mrf.mxu0
      %v946 = vadd.f32 %v628, %v945
      %v947 = vpop.f32.mrf.mxu0
      %v948 = vadd.f32 %v628, %v947
      %949 = vmatmul.bf16.gmra.mxu0 %v704
      %v950 = vpop.f32.mrf.mxu0
      %v951 = vadd.f32 %v628, %v950
      %v952 = vpop.f32.mrf.mxu0
      %v953 = vadd.f32 %v628, %v952
      %954 = vmatmul.bf16.gmra.mxu0 %v707
      %v955 = vpop.f32.mrf.mxu0
      %v956 = vadd.f32 %v628, %v955
      %v957 = vpop.f32.mrf.mxu0
      %v958 = vadd.f32 %v628, %v957
      %959 = vmatmul.bf16.gmra.mxu0 %v710
      %v960 = vpop.f32.mrf.mxu0
      %v961 = vadd.f32 %v628, %v960
      %v962 = vpop.f32.mrf.mxu0
      %v963 = vadd.f32 %v628, %v962
      %964 = vmatmul.bf16.gmra.mxu0 %v713
      %v965 = vpop.f32.mrf.mxu0
      %v966 = vadd.f32 %v628, %v965
      %v967 = vpop.f32.mrf.mxu0
      %v968 = vadd.f32 %v628, %v967
      %969 = vmatmul.bf16.gmra.mxu0 %v716
      %v970 = vpop.f32.mrf.mxu0
      %v971 = vadd.f32 %v628, %v970
      %v972 = vpop.f32.mrf.mxu0
      %v973 = vadd.f32 %v628, %v972
      %974 = vmatmul.bf16.gmra.mxu0 %v719
      %v975 = vpop.f32.mrf.mxu0
      %v976 = vadd.f32 %v628, %v975
      %v977 = vpop.f32.mrf.mxu0
      %v978 = vadd.f32 %v628, %v977
      %979 = vmatmul.bf16.gmra.mxu0 %v722
      %v980 = vpop.f32.mrf.mxu0
      %v981 = vadd.f32 %v628, %v980
      %v982 = vpop.f32.mrf.mxu0
      %v983 = vadd.f32 %v628, %v982
      %984 = vmatmul.bf16.gmra.mxu0 %v725
      %v985 = vpop.f32.mrf.mxu0
      %v986 = vadd.f32 %v628, %v985
      %v987 = vpop.f32.mrf.mxu0
      %v988 = vadd.f32 %v628, %v987
      %989 = vmatmul.bf16.gmra.mxu0 %v728
      %v990 = vpop.f32.mrf.mxu0
      %v991 = vadd.f32 %v628, %v990
      %v992 = vpop.f32.mrf.mxu0
      %v993 = vadd.f32 %v628, %v992
      %994 = vmatmul.bf16.gmra.mxu0 %v731
      %v995 = vpop.f32.mrf.mxu0
      %v996 = vadd.f32 %v628, %v995
      %v997 = vpop.f32.mrf.mxu0
      %v998 = vadd.f32 %v628, %v997
      %999 = vmatmul.bf16.gmra.mxu0 %v734
      %v1000 = vpop.f32.mrf.mxu0
      %v1001 = vadd.f32 %v628, %v1000
      %v1002 = vpop.f32.mrf.mxu0
      %v1003 = vadd.f32 %v628, %v1002
      %1004 = vmatmul.bf16.gmra.mxu0 %v737
      %v1005 = vpop.f32.mrf.mxu0
      %v1006 = vadd.f32 %v628, %v1005
      %v1007 = vpop.f32.mrf.mxu0
      %v1008 = vadd.f32 %v628, %v1007
      %1009 = vmatmul.bf16.gmra.mxu0 %v740
      %v1010 = vpop.f32.mrf.mxu0
      %v1011 = vadd.f32 %v628, %v1010
      %v1012 = vpop.f32.mrf.mxu0
      %v1013 = vadd.f32 %v628, %v1012
      %1014 = vmatmul.bf16.gmra.mxu0 %v743
      %v1015 = vpop.f32.mrf.mxu0
      %v1016 = vadd.f32 %v628, %v1015
      %v1017 = vpop.f32.mrf.mxu0
      %v1018 = vadd.f32 %v628, %v1017
      %1019 = vmatmul.bf16.gmra.mxu0 %v746
      %v1020 = vpop.f32.mrf.mxu0
      %v1021 = vadd.f32 %v628, %v1020
      %v1022 = vpop.f32.mrf.mxu0
      %v1023 = vadd.f32 %v628, %v1022
      %1024 = vmatmul.bf16.gmra.mxu0 %v749
      %v1025 = vpop.f32.mrf.mxu0
      %v1026 = vadd.f32 %v628, %v1025
      %v1027 = vpop.f32.mrf.mxu0
      %v1028 = vadd.f32 %v628, %v1027
      %1029 = vmatmul.bf16.gmra.mxu0 %v752
      %v1030 = vpop.f32.mrf.mxu0
      %v1031 = vadd.f32 %v628, %v1030
      %v1032 = vpop.f32.mrf.mxu0
      %v1033 = vadd.f32 %v628, %v1032
      %1034 = vmatmul.bf16.gmra.mxu0 %v755
      %v1035 = vpop.f32.mrf.mxu0
      %v1036 = vadd.f32 %v628, %v1035
      %v1037 = vpop.f32.mrf.mxu0
      %v1038 = vadd.f32 %v628, %v1037
      %1039 = vmatmul.bf16.gmra.mxu0 %v758
      %v1040 = vpop.f32.mrf.mxu0
      %v1041 = vadd.f32 %v628, %v1040
      %v1042 = vpop.f32.mrf.mxu0
      %v1043 = vadd.f32 %v628, %v1042
      %1044 = vmatmul.bf16.gmra.mxu0 %v761
      %v1045 = vpop.f32.mrf.mxu0
      %v1046 = vadd.f32 %v628, %v1045
      %v1047 = vpop.f32.mrf.mxu0
      %v1048 = vadd.f32 %v628, %v1047
      %1049 = vmatmul.bf16.gmra.mxu0 %v764
      %v1050 = vpop.f32.mrf.mxu0
      %v1051 = vadd.f32 %v628, %v1050
      %v1052 = vpop.f32.mrf.mxu0
      %v1053 = vadd.f32 %v628, %v1052
      %1054 = vmatmul.bf16.gmra.mxu0 %v767
      %v1055 = vpop.f32.mrf.mxu0
      %v1056 = vadd.f32 %v628, %v1055
      %v1057 = vpop.f32.mrf.mxu0
      %v1058 = vadd.f32 %v628, %v1057
      %1059 = vmatmul.bf16.gmra.mxu0 %v770
      %v1060 = vpop.f32.mrf.mxu0
      %v1061 = vadd.f32 %v628, %v1060
      %v1062 = vpop.f32.mrf.mxu0
      %v1063 = vadd.f32 %v628, %v1062
      %1064 = vmatmul.bf16.gmra.mxu0 %v773
      %v1065 = vpop.f32.mrf.mxu0
      %v1066 = vadd.f32 %v628, %v1065
      %v1067 = vpop.f32.mrf.mxu0
      %v1068 = vadd.f32 %v628, %v1067
      %1069 = vmatmul.bf16.gmra.mxu0 %v776
      %v1070 = vpop.f32.mrf.mxu0
      %v1071 = vadd.f32 %v628, %v1070
      %v1072 = vpop.f32.mrf.mxu0
      %v1073 = vadd.f32 %v628, %v1072
      %1074 = vmatmul.bf16.gmra.mxu0 %v779
      %v1075 = vpop.f32.mrf.mxu0
      %v1076 = vadd.f32 %v628, %v1075
      %v1077 = vpop.f32.mrf.mxu0
      %v1078 = vadd.f32 %v628, %v1077
      %1079 = vmatmul.bf16.gmra.mxu0 %v782
      %v1080 = vpop.f32.mrf.mxu0
      %v1081 = vadd.f32 %v628, %v1080
      %v1082 = vpop.f32.mrf.mxu0
      %v1083 = vadd.f32 %v628, %v1082
      %1084 = vmatmul.bf16.gmra.mxu0 %v785
      %v1085 = vpop.f32.mrf.mxu0
      %v1086 = vadd.f32 %v628, %v1085
      %v1087 = vpop.f32.mrf.mxu0
      %v1088 = vadd.f32 %v628, %v1087
      %1089 = vmatmul.bf16.gmra.mxu0 %v788
      %v1090 = vpop.f32.mrf.mxu0
      %v1091 = vadd.f32 %v628, %v1090
      %v1092 = vpop.f32.mrf.mxu0
      %v1093 = vadd.f32 %v628, %v1092
      %1094 = vmatmul.bf16.gmra.mxu0 %v791
      %v1095 = vpop.f32.mrf.mxu0
      %v1096 = vadd.f32 %v628, %v1095
      %v1097 = vpop.f32.mrf.mxu0
      %v1098 = vadd.f32 %v628, %v1097
      %1099 = vmatmul.bf16.gmra.mxu0 %v794
      %v1100 = vpop.f32.mrf.mxu0
      %v1101 = vadd.f32 %v628, %v1100
      %v1102 = vpop.f32.mrf.mxu0
      %v1103 = vadd.f32 %v628, %v1102
      %1104 = vmatmul.bf16.gmra.mxu0 %v797
      %v1105 = vpop.f32.mrf.mxu0
      %v1106 = vadd.f32 %v628, %v1105
      %v1107 = vpop.f32.mrf.mxu0
      %v1108 = vadd.f32 %v628, %v1107
      %1109 = vmatmul.bf16.gmra.mxu0 %v800
      %v1110 = vpop.f32.mrf.mxu0
      %v1111 = vadd.f32 %v628, %v1110
      %v1112 = vpop.f32.mrf.mxu0
      %v1113 = vadd.f32 %v628, %v1112
      %1114 = vmatmul.bf16.gmra.mxu0 %v803
      %v1115 = vpop.f32.mrf.mxu0
      %v1116 = vadd.f32 %v628, %v1115
      %v1117 = vpop.f32.mrf.mxu0
      %v1118 = vadd.f32 %v628, %v1117
      %1119 = vmatmul.bf16.gmra.mxu0 %v806
      %v1120 = vpop.f32.mrf.mxu0
      %v1121 = vadd.f32 %v628, %v1120
      %v1122 = vpop.f32.mrf.mxu0
      %v1123 = vadd.f32 %v628, %v1122
      %1124 = vmatmul.bf16.gmra.mxu0 %v809
      %v1125 = vpop.f32.mrf.mxu0
      %v1126 = vadd.f32 %v628, %v1125
      %v1127 = vpop.f32.mrf.mxu0
      %v1128 = vadd.f32 %v628, %v1127
      %1129 = vmatmul.bf16.gmra.mxu0 %v812
      %v1130 = vpop.f32.mrf.mxu0
      %v1131 = vadd.f32 %v628, %v1130
      %v1132 = vpop.f32.mrf.mxu0
      %v1133 = vadd.f32 %v628, %v1132
      %1134 = vmatmul.bf16.gmra.mxu0 %v815
      %v1135 = vpop.f32.mrf.mxu0
      %v1136 = vadd.f32 %v628, %v1135
      %v1137 = vpop.f32.mrf.mxu0
      %v1138 = vadd.f32 %v628, %v1137
      %1139 = vmatmul.bf16.gmra.mxu0 %v818
      %v1140 = vpop.f32.mrf.mxu0
      %v1141 = vadd.f32 %v628, %v1140
      %v1142 = vpop.f32.mrf.mxu0
      %v1143 = vadd.f32 %v628, %v1142
      %1144 = vmatmul.bf16.gmra.mxu0 %v821
      %v1145 = vpop.f32.mrf.mxu0
      %v1146 = vadd.f32 %v628, %v1145
      %v1147 = vpop.f32.mrf.mxu0
      %v1148 = vadd.f32 %v628, %v1147
      %1149 = vmatmul.bf16.gmra.mxu0 %v824
      %v1150 = vpop.f32.mrf.mxu0
      %v1151 = vadd.f32 %v628, %v1150
      %v1152 = vpop.f32.mrf.mxu0
      %v1153 = vadd.f32 %v628, %v1152
      %1154 = vmatmul.bf16.gmra.mxu0 %v827
      %v1155 = vpop.f32.mrf.mxu0
      %v1156 = vadd.f32 %v628, %v1155
      %v1157 = vpop.f32.mrf.mxu0
      %v1158 = vadd.f32 %v628, %v1157
      %1159 = vmatmul.bf16.gmra.mxu0 %v830
      %v1160 = vpop.f32.mrf.mxu0
      %v1161 = vadd.f32 %v628, %v1160
      %v1162 = vpop.f32.mrf.mxu0
      %v1163 = vadd.f32 %v628, %v1162
      %1164 = vdwg.mxu0
      %v1165 = vpack.c.bf16 %v846, %v846
      %v1166 = vpack.c.bf16 %v848, %v848
      %v1167 = vpack.c.bf16 %v851, %v851
      %v1168 = vpack.c.bf16 %v853, %v853
      %v1169 = vpack.c.bf16 %v856, %v856
      %v1170 = vpack.c.bf16 %v858, %v858
      %v1171 = vpack.c.bf16 %v861, %v861
      %v1172 = vpack.c.bf16 %v863, %v863
      %v1173 = vpack.c.bf16 %v866, %v866
      %v1174 = vpack.c.bf16 %v868, %v868
      %v1175 = vpack.c.bf16 %v871, %v871
      %v1176 = vpack.c.bf16 %v873, %v873
      %v1177 = vpack.c.bf16 %v876, %v876
      %v1178 = vpack.c.bf16 %v878, %v878
      %v1179 = vpack.c.bf16 %v881, %v881
      %v1180 = vpack.c.bf16 %v883, %v883
      %v1181 = vpack.c.bf16 %v886, %v886
      %v1182 = vpack.c.bf16 %v888, %v888
      %v1183 = vpack.c.bf16 %v891, %v891
      %v1184 = vpack.c.bf16 %v893, %v893
      %v1185 = vpack.c.bf16 %v896, %v896
      %v1186 = vpack.c.bf16 %v898, %v898
      %v1187 = vpack.c.bf16 %v901, %v901
      %v1188 = vpack.c.bf16 %v903, %v903
      %v1189 = vpack.c.bf16 %v906, %v906
      %v1190 = vpack.c.bf16 %v908, %v908
      %v1191 = vpack.c.bf16 %v911, %v911
      %v1192 = vpack.c.bf16 %v913, %v913
      %v1193 = vpack.c.bf16 %v916, %v916
      %v1194 = vpack.c.bf16 %v918, %v918
      %v1195 = vpack.c.bf16 %v921, %v921
      %v1196 = vpack.c.bf16 %v923, %v923
      %v1197 = vpack.c.bf16 %v926, %v926
      %v1198 = vpack.c.bf16 %v928, %v928
      %v1199 = vpack.c.bf16 %v931, %v931
      %v1200 = vpack.c.bf16 %v933, %v933
      %v1201 = vpack.c.bf16 %v936, %v936
      %v1202 = vpack.c.bf16 %v938, %v938
      %v1203 = vpack.c.bf16 %v941, %v941
      %v1204 = vpack.c.bf16 %v943, %v943
      %v1205 = vpack.c.bf16 %v946, %v946
      %v1206 = vpack.c.bf16 %v948, %v948
      %v1207 = vpack.c.bf16 %v951, %v951
      %v1208 = vpack.c.bf16 %v953, %v953
      %v1209 = vpack.c.bf16 %v956, %v956
      %v1210 = vpack.c.bf16 %v958, %v958
      %v1211 = vpack.c.bf16 %v961, %v961
      %v1212 = vpack.c.bf16 %v963, %v963
      %v1213 = vpack.c.bf16 %v966, %v966
      %v1214 = vpack.c.bf16 %v968, %v968
      %v1215 = vpack.c.bf16 %v971, %v971
      %v1216 = vpack.c.bf16 %v973, %v973
      %v1217 = vpack.c.bf16 %v976, %v976
      %v1218 = vpack.c.bf16 %v978, %v978
      %v1219 = vpack.c.bf16 %v981, %v981
      %v1220 = vpack.c.bf16 %v983, %v983
      %v1221 = vpack.c.bf16 %v986, %v986
      %v1222 = vpack.c.bf16 %v988, %v988
      %v1223 = vpack.c.bf16 %v991, %v991
      %v1224 = vpack.c.bf16 %v993, %v993
      %v1225 = vpack.c.bf16 %v996, %v996
      %v1226 = vpack.c.bf16 %v998, %v998
      %v1227 = vpack.c.bf16 %v1001, %v1001
      %v1228 = vpack.c.bf16 %v1003, %v1003
      %v1229 = vpack.c.bf16 %v1006, %v1006
      %v1230 = vpack.c.bf16 %v1008, %v1008
      %v1231 = vpack.c.bf16 %v1011, %v1011
      %v1232 = vpack.c.bf16 %v1013, %v1013
      %v1233 = vpack.c.bf16 %v1016, %v1016
      %v1234 = vpack.c.bf16 %v1018, %v1018
      %v1235 = vpack.c.bf16 %v1021, %v1021
      %v1236 = vpack.c.bf16 %v1023, %v1023
      %v1237 = vpack.c.bf16 %v1026, %v1026
      %v1238 = vpack.c.bf16 %v1028, %v1028
      %v1239 = vpack.c.bf16 %v1031, %v1031
      %v1240 = vpack.c.bf16 %v1033, %v1033
      %v1241 = vpack.c.bf16 %v1036, %v1036
      %v1242 = vpack.c.bf16 %v1038, %v1038
      %v1243 = vpack.c.bf16 %v1041, %v1041
      %v1244 = vpack.c.bf16 %v1043, %v1043
      %v1245 = vpack.c.bf16 %v1046, %v1046
      %v1246 = vpack.c.bf16 %v1048, %v1048
      %v1247 = vpack.c.bf16 %v1051, %v1051
      %v1248 = vpack.c.bf16 %v1053, %v1053
      %v1249 = vpack.c.bf16 %v1056, %v1056
      %v1250 = vpack.c.bf16 %v1058, %v1058
      %v1251 = vpack.c.bf16 %v1061, %v1061
      %v1252 = vpack.c.bf16 %v1063, %v1063
      %v1253 = vpack.c.bf16 %v1066, %v1066
      %v1254 = vpack.c.bf16 %v1068, %v1068
      %v1255 = vpack.c.bf16 %v1071, %v1071
      %v1256 = vpack.c.bf16 %v1073, %v1073
      %v1257 = vpack.c.bf16 %v1076, %v1076
      %v1258 = vpack.c.bf16 %v1078, %v1078
      %v1259 = vpack.c.bf16 %v1081, %v1081
      %v1260 = vpack.c.bf16 %v1083, %v1083
      %v1261 = vpack.c.bf16 %v1086, %v1086
      %v1262 = vpack.c.bf16 %v1088, %v1088
      %v1263 = vpack.c.bf16 %v1091, %v1091
      %v1264 = vpack.c.bf16 %v1093, %v1093
      %v1265 = vpack.c.bf16 %v1096, %v1096
      %v1266 = vpack.c.bf16 %v1098, %v1098
      %v1267 = vpack.c.bf16 %v1101, %v1101
      %v1268 = vpack.c.bf16 %v1103, %v1103
      %v1269 = vpack.c.bf16 %v1106, %v1106
      %v1270 = vpack.c.bf16 %v1108, %v1108
      %v1271 = vpack.c.bf16 %v1111, %v1111
      %v1272 = vpack.c.bf16 %v1113, %v1113
      %v1273 = vpack.c.bf16 %v1116, %v1116
      %v1274 = vpack.c.bf16 %v1118, %v1118
      %v1275 = vpack.c.bf16 %v1121, %v1121
      %v1276 = vpack.c.bf16 %v1123, %v1123
      %v1277 = vpack.c.bf16 %v1126, %v1126
      %v1278 = vpack.c.bf16 %v1128, %v1128
      %v1279 = vpack.c.bf16 %v1131, %v1131
      %v1280 = vpack.c.bf16 %v1133, %v1133
      %v1281 = vpack.c.bf16 %v1136, %v1136
      %v1282 = vpack.c.bf16 %v1138, %v1138
      %v1283 = vpack.c.bf16 %v1141, %v1141
      %v1284 = vpack.c.bf16 %v1143, %v1143
      %v1285 = vpack.c.bf16 %v1146, %v1146
      %v1286 = vpack.c.bf16 %v1148, %v1148
      %v1287 = vpack.c.bf16 %v1151, %v1151
      %v1288 = vpack.c.bf16 %v1153, %v1153
      %v1289 = vpack.c.bf16 %v1156, %v1156
      %v1290 = vpack.c.bf16 %v1158, %v1158
      %v1291 = vpack.c.bf16 %v1161, %v1161
      %v1292 = vpack.c.bf16 %v1163, %v1163
      %vm1293 = vcmask 125952
      %1294 = vst.msk [vmem:[%s172] sm:$0xf] %vm1293, %v1165
      %1295 = vst.msk [vmem:[%s172 + $0x4] sm:$0xf] %vm1293, %v1166
      %1296 = vst.msk [vmem:[%s172 + $0x8] sm:$0xf] %vm1293, %v1167
      %1297 = vst.msk [vmem:[%s172 + $0xc] sm:$0xf] %vm1293, %v1168
      %1298 = vst.msk [vmem:[%s172 + $0x10] sm:$0xf] %vm1293, %v1169
      %1299 = vst.msk [vmem:[%s172 + $0x14] sm:$0xf] %vm1293, %v1170
      %1300 = vst.msk [vmem:[%s172 + $0x18] sm:$0xf] %vm1293, %v1171
      %1301 = vst.msk [vmem:[%s172 + $0x1c] sm:$0xf] %vm1293, %v1172
      %1302 = vst.msk [vmem:[%s172 + $0x20] sm:$0xf] %vm1293, %v1173
      %1303 = vst.msk [vmem:[%s172 + $0x24] sm:$0xf] %vm1293, %v1174
      %1304 = vst.msk [vmem:[%s172 + $0x28] sm:$0xf] %vm1293, %v1175
      %1305 = vst.msk [vmem:[%s172 + $0x2c] sm:$0xf] %vm1293, %v1176
      %1306 = vst.msk [vmem:[%s172 + $0x30] sm:$0xf] %vm1293, %v1177
      %1307 = vst.msk [vmem:[%s172 + $0x34] sm:$0xf] %vm1293, %v1178
      %1308 = vst.msk [vmem:[%s172 + $0x38] sm:$0xf] %vm1293, %v1179
      %1309 = vst.msk [vmem:[%s172 + $0x3c] sm:$0xf] %vm1293, %v1180
      %1310 = vst.msk [vmem:[%s172 + $0x40] sm:$0xf] %vm1293, %v1181
      %1311 = vst.msk [vmem:[%s172 + $0x44] sm:$0xf] %vm1293, %v1182
      %1312 = vst.msk [vmem:[%s172 + $0x48] sm:$0xf] %vm1293, %v1183
      %1313 = vst.msk [vmem:[%s172 + $0x4c] sm:$0xf] %vm1293, %v1184
      %1314 = vst.msk [vmem:[%s172 + $0x50] sm:$0xf] %vm1293, %v1185
      %1315 = vst.msk [vmem:[%s172 + $0x54] sm:$0xf] %vm1293, %v1186
      %1316 = vst.msk [vmem:[%s172 + $0x58] sm:$0xf] %vm1293, %v1187
      %1317 = vst.msk [vmem:[%s172 + $0x5c] sm:$0xf] %vm1293, %v1188
      %1318 = vst.msk [vmem:[%s172 + $0x60] sm:$0xf] %vm1293, %v1189
      %1319 = vst.msk [vmem:[%s172 + $0x64] sm:$0xf] %vm1293, %v1190
      %1320 = vst.msk [vmem:[%s172 + $0x68] sm:$0xf] %vm1293, %v1191
      %1321 = vst.msk [vmem:[%s172 + $0x6c] sm:$0xf] %vm1293, %v1192
      %1322 = vst.msk [vmem:[%s172 + $0x70] sm:$0xf] %vm1293, %v1193
      %1323 = vst.msk [vmem:[%s172 + $0x74] sm:$0xf] %vm1293, %v1194
      %1324 = vst.msk [vmem:[%s172 + $0x78] sm:$0xf] %vm1293, %v1195
      %1325 = vst.msk [vmem:[%s172 + $0x7c] sm:$0xf] %vm1293, %v1196
      %1326 = vst.msk [vmem:[%s172 + $0x80] sm:$0xf] %vm1293, %v1197
      %1327 = vst.msk [vmem:[%s172 + $0x84] sm:$0xf] %vm1293, %v1198
      %1328 = vst.msk [vmem:[%s172 + $0x88] sm:$0xf] %vm1293, %v1199
      %1329 = vst.msk [vmem:[%s172 + $0x8c] sm:$0xf] %vm1293, %v1200
      %1330 = vst.msk [vmem:[%s172 + $0x90] sm:$0xf] %vm1293, %v1201
      %1331 = vst.msk [vmem:[%s172 + $0x94] sm:$0xf] %vm1293, %v1202
      %1332 = vst.msk [vmem:[%s172 + $0x98] sm:$0xf] %vm1293, %v1203
      %1333 = vst.msk [vmem:[%s172 + $0x9c] sm:$0xf] %vm1293, %v1204
      %1334 = vst.msk [vmem:[%s172 + $0xa0] sm:$0xf] %vm1293, %v1205
      %1335 = vst.msk [vmem:[%s172 + $0xa4] sm:$0xf] %vm1293, %v1206
      %1336 = vst.msk [vmem:[%s172 + $0xa8] sm:$0xf] %vm1293, %v1207
      %1337 = vst.msk [vmem:[%s172 + $0xac] sm:$0xf] %vm1293, %v1208
      %1338 = vst.msk [vmem:[%s172 + $0xb0] sm:$0xf] %vm1293, %v1209
      %1339 = vst.msk [vmem:[%s172 + $0xb4] sm:$0xf] %vm1293, %v1210
      %1340 = vst.msk [vmem:[%s172 + $0xb8] sm:$0xf] %vm1293, %v1211
      %1341 = vst.msk [vmem:[%s172 + $0xbc] sm:$0xf] %vm1293, %v1212
      %1342 = vst.msk [vmem:[%s172 + $0xc0] sm:$0xf] %vm1293, %v1213
      %1343 = vst.msk [vmem:[%s172 + $0xc4] sm:$0xf] %vm1293, %v1214
      %1344 = vst.msk [vmem:[%s172 + $0xc8] sm:$0xf] %vm1293, %v1215
      %1345 = vst.msk [vmem:[%s172 + $0xcc] sm:$0xf] %vm1293, %v1216
      %1346 = vst.msk [vmem:[%s172 + $0xd0] sm:$0xf] %vm1293, %v1217
      %1347 = vst.msk [vmem:[%s172 + $0xd4] sm:$0xf] %vm1293, %v1218
      %1348 = vst.msk [vmem:[%s172 + $0xd8] sm:$0xf] %vm1293, %v1219
      %1349 = vst.msk [vmem:[%s172 + $0xdc] sm:$0xf] %vm1293, %v1220
      %1350 = vst.msk [vmem:[%s172 + $0xe0] sm:$0xf] %vm1293, %v1221
      %1351 = vst.msk [vmem:[%s172 + $0xe4] sm:$0xf] %vm1293, %v1222
      %1352 = vst.msk [vmem:[%s172 + $0xe8] sm:$0xf] %vm1293, %v1223
      %1353 = vst.msk [vmem:[%s172 + $0xec] sm:$0xf] %vm1293, %v1224
      %1354 = vst.msk [vmem:[%s172 + $0xf0] sm:$0xf] %vm1293, %v1225
      %1355 = vst.msk [vmem:[%s172 + $0xf4] sm:$0xf] %vm1293, %v1226
      %1356 = vst.msk [vmem:[%s172 + $0xf8] sm:$0xf] %vm1293, %v1227
      %1357 = vst.msk [vmem:[%s172 + $0xfc] sm:$0xf] %vm1293, %v1228
      %1358 = vst.msk [vmem:[%s172 + $0x100] sm:$0xf] %vm1293, %v1229
      %1359 = vst.msk [vmem:[%s172 + $0x104] sm:$0xf] %vm1293, %v1230
      %1360 = vst.msk [vmem:[%s172 + $0x108] sm:$0xf] %vm1293, %v1231
      %1361 = vst.msk [vmem:[%s172 + $0x10c] sm:$0xf] %vm1293, %v1232
      %1362 = vst.msk [vmem:[%s172 + $0x110] sm:$0xf] %vm1293, %v1233
      %1363 = vst.msk [vmem:[%s172 + $0x114] sm:$0xf] %vm1293, %v1234
      %1364 = vst.msk [vmem:[%s172 + $0x118] sm:$0xf] %vm1293, %v1235
      %1365 = vst.msk [vmem:[%s172 + $0x11c] sm:$0xf] %vm1293, %v1236
      %1366 = vst.msk [vmem:[%s172 + $0x120] sm:$0xf] %vm1293, %v1237
      %1367 = vst.msk [vmem:[%s172 + $0x124] sm:$0xf] %vm1293, %v1238
      %1368 = vst.msk [vmem:[%s172 + $0x128] sm:$0xf] %vm1293, %v1239
      %1369 = vst.msk [vmem:[%s172 + $0x12c] sm:$0xf] %vm1293, %v1240
      %1370 = vst.msk [vmem:[%s172 + $0x130] sm:$0xf] %vm1293, %v1241
      %1371 = vst.msk [vmem:[%s172 + $0x134] sm:$0xf] %vm1293, %v1242
      %1372 = vst.msk [vmem:[%s172 + $0x138] sm:$0xf] %vm1293, %v1243
      %1373 = vst.msk [vmem:[%s172 + $0x13c] sm:$0xf] %vm1293, %v1244
      %1374 = vst.msk [vmem:[%s172 + $0x140] sm:$0xf] %vm1293, %v1245
      %1375 = vst.msk [vmem:[%s172 + $0x144] sm:$0xf] %vm1293, %v1246
      %1376 = vst.msk [vmem:[%s172 + $0x148] sm:$0xf] %vm1293, %v1247
      %1377 = vst.msk [vmem:[%s172 + $0x14c] sm:$0xf] %vm1293, %v1248
      %1378 = vst.msk [vmem:[%s172 + $0x150] sm:$0xf] %vm1293, %v1249
      %1379 = vst.msk [vmem:[%s172 + $0x154] sm:$0xf] %vm1293, %v1250
      %1380 = vst.msk [vmem:[%s172 + $0x158] sm:$0xf] %vm1293, %v1251
      %1381 = vst.msk [vmem:[%s172 + $0x15c] sm:$0xf] %vm1293, %v1252
      %1382 = vst.msk [vmem:[%s172 + $0x160] sm:$0xf] %vm1293, %v1253
      %1383 = vst.msk [vmem:[%s172 + $0x164] sm:$0xf] %vm1293, %v1254
      %1384 = vst.msk [vmem:[%s172 + $0x168] sm:$0xf] %vm1293, %v1255
      %1385 = vst.msk [vmem:[%s172 + $0x16c] sm:$0xf] %vm1293, %v1256
      %1386 = vst.msk [vmem:[%s172 + $0x170] sm:$0xf] %vm1293, %v1257
      %1387 = vst.msk [vmem:[%s172 + $0x174] sm:$0xf] %vm1293, %v1258
      %1388 = vst.msk [vmem:[%s172 + $0x178] sm:$0xf] %vm1293, %v1259
      %1389 = vst.msk [vmem:[%s172 + $0x17c] sm:$0xf] %vm1293, %v1260
      %1390 = vst.msk [vmem:[%s172 + $0x180] sm:$0xf] %vm1293, %v1261
      %1391 = vst.msk [vmem:[%s172 + $0x184] sm:$0xf] %vm1293, %v1262
      %1392 = vst.msk [vmem:[%s172 + $0x188] sm:$0xf] %vm1293, %v1263
      %1393 = vst.msk [vmem:[%s172 + $0x18c] sm:$0xf] %vm1293, %v1264
      %1394 = vst.msk [vmem:[%s172 + $0x190] sm:$0xf] %vm1293, %v1265
      %1395 = vst.msk [vmem:[%s172 + $0x194] sm:$0xf] %vm1293, %v1266
      %1396 = vst.msk [vmem:[%s172 + $0x198] sm:$0xf] %vm1293, %v1267
      %1397 = vst.msk [vmem:[%s172 + $0x19c] sm:$0xf] %vm1293, %v1268
      %1398 = vst.msk [vmem:[%s172 + $0x1a0] sm:$0xf] %vm1293, %v1269
      %1399 = vst.msk [vmem:[%s172 + $0x1a4] sm:$0xf] %vm1293, %v1270
      %1400 = vst.msk [vmem:[%s172 + $0x1a8] sm:$0xf] %vm1293, %v1271
      %1401 = vst.msk [vmem:[%s172 + $0x1ac] sm:$0xf] %vm1293, %v1272
      %1402 = vst.msk [vmem:[%s172 + $0x1b0] sm:$0xf] %vm1293, %v1273
      %1403 = vst.msk [vmem:[%s172 + $0x1b4] sm:$0xf] %vm1293, %v1274
      %1404 = vst.msk [vmem:[%s172 + $0x1b8] sm:$0xf] %vm1293, %v1275
      %1405 = vst.msk [vmem:[%s172 + $0x1bc] sm:$0xf] %vm1293, %v1276
      %1406 = vst.msk [vmem:[%s172 + $0x1c0] sm:$0xf] %vm1293, %v1277
      %1407 = vst.msk [vmem:[%s172 + $0x1c4] sm:$0xf] %vm1293, %v1278
      %1408 = vst.msk [vmem:[%s172 + $0x1c8] sm:$0xf] %vm1293, %v1279
      %1409 = vst.msk [vmem:[%s172 + $0x1cc] sm:$0xf] %vm1293, %v1280
      %1410 = vst.msk [vmem:[%s172 + $0x1d0] sm:$0xf] %vm1293, %v1281
      %1411 = vst.msk [vmem:[%s172 + $0x1d4] sm:$0xf] %vm1293, %v1282
      %1412 = vst.msk [vmem:[%s172 + $0x1d8] sm:$0xf] %vm1293, %v1283
      %1413 = vst.msk [vmem:[%s172 + $0x1dc] sm:$0xf] %vm1293, %v1284
      %1414 = vst.msk [vmem:[%s172 + $0x1e0] sm:$0xf] %vm1293, %v1285
      %1415 = vst.msk [vmem:[%s172 + $0x1e4] sm:$0xf] %vm1293, %v1286
      %1416 = vst.msk [vmem:[%s172 + $0x1e8] sm:$0xf] %vm1293, %v1287
      %1417 = vst.msk [vmem:[%s172 + $0x1ec] sm:$0xf] %vm1293, %v1288
      %1418 = vst.msk [vmem:[%s172 + $0x1f0] sm:$0xf] %vm1293, %v1289
      %1419 = vst.msk [vmem:[%s172 + $0x1f4] sm:$0xf] %vm1293, %v1290
      %1420 = vst.msk [vmem:[%s172 + $0x1f8] sm:$0xf] %vm1293, %v1291
      %1421 = vst.msk [vmem:[%s172 + $0x1fc] sm:$0xf] %vm1293, %v1292
      %s1422 = smul.u32 128, %s14
      %p1423 = scmp.lt.s32.totalorder %s1422, 255
      %s1424 = scalar_select %p1423, %s1422, 255
      %s1425 = smul.addr %s1424, 4
      %s1426 = scalar_lea.vmem %s3, %s1425
      // Predicated region
      $region33: #{_lambda_.9} parent=31 // pred_check
        %p1427 = pneg %p100
      $region34: #{_lambda_.9} parent=31 // pred_check_branch
        %1429 = sbr.rel (%p1427) target = $region36
      $region35: #{_lambda_.9} parent=31 // pred_region
        %s1430 = smul.u32 128, %s14
      $region36: #{_lambda_.9} parent=31 // pred_fallthru
        _
    $region32: #{_lambda_.9} parent=5 // pred_fallthru
      _
    %p1431 = scmp.le.s32.totalorder 2, %s9
    // Predicated region
    $region37: #{_lambda_.9} parent=5 // pred_check
      %p1432 = pneg %p1431
    $region38: #{_lambda_.9} parent=5 // pred_check_branch
      %1434 = sbr.rel (%p1432) target = $region40
    $region39: #{_lambda_.9} parent=5 // pred_region
      %s1435 = ssub.s32 %s9, 2
      // Predicated region
      $region41: #{_lambda_.9} parent=39 // pred_check
        %p1436 = pneg %p106
      $region42: #{_lambda_.9} parent=39 // pred_check_branch
        %1438 = sbr.rel (%p1436) target = $region44
      $region43: #{_lambda_.9} parent=39 // pred_region
        %s1439 = smul.u32 128, %s15
        %p1440 = scmp.lt.s32.totalorder %s1439, 255
        %s1441 = scalar_select %p1440, %s1439, 255
        %s1442 = smul.addr %s1441, 4
        %s1443 = scalar_lea.vmem %s3, %s1442
      $region44: #{_lambda_.9} parent=39 // pred_fallthru
        _
    $region40: #{_lambda_.9} parent=5 // pred_fallthru
      _
  $region6: #{_lambda_.9} parent=0 // loop_footer
    %s13 = sadd.s32 1, %s9
  $region7: #{_lambda_.9} parent=0 // loop_footer_branch
    %8 = sbr.rel target = $region3
  $region8: #{_lambda_.9} parent=0 // loop_exit
    _

// kernel: _lambda_.10
$region0: #{_lambda_.10}
  #allocation0 [shape = 'u32[]', space=smem, size = 0x4, offset = 0x4, fixed_abs, tag = 'smem constant byte address 0x4 - core index']
  #allocation1 [shape = 'u32[72,128]{1,0:T(1,128)}', space=vmem, size = 0x9000, scoped, tag = 'internal scratch']
  %s0 = inlined_call_operand.vmem [shape: bf16[512,32], index: 0, kind: input, shape index: {}]
  %s1 = inlined_call_operand.vmem [shape: bf16[32,32], index: 1, kind: input, shape index: {}]
  %s2 = inlined_call_operand.vmem [shape: f32[1,32], index: 2, kind: input, shape index: {}]
  %s3 = inlined_call_operand.vmem [shape: bf16[512,32], index: 3, kind: output, shape index: {}]
  %s4 = sld [smem:[#allocation0]]
  $region22: #{_lambda_.10} parent=0
    _
  %s6 = ssub.s32 1, %s4
  %s7 = scalar_select 0, %s6, %s4
  // Predicated region
  $region2: #{_lambda_.10} parent=0 // pred_check
    _
  $region3: #{_lambda_.10} parent=0 // pred_check_branch
    %9 = sbr.rel (0) target = $region5
  $region4: #{_lambda_.10} parent=0 // pred_region
    _
  $region5: #{_lambda_.10} parent=0 // pred_fallthru
    _
  // Predicated region
  $region6: #{_lambda_.10} parent=0 // pred_check
    _
  $region7: #{_lambda_.10} parent=0 // pred_check_branch
    %11 = sbr.rel (0) target = $region9
  $region8: #{_lambda_.10} parent=0 // pred_region
    _
  $region9: #{_lambda_.10} parent=0 // pred_fallthru
    _
  // Predicated region
  $region10: #{_lambda_.10} parent=0 // pred_check
    _
  $region11: #{_lambda_.10} parent=0 // pred_check_branch
    %13 = sbr.rel (0) target = $region13
  $region12: #{_lambda_.10} parent=0 // pred_region
    _
  $region13: #{_lambda_.10} parent=0 // pred_fallthru
    _
  %v15 = vld [vmem:[%s0] sm:$0xf]
  %v16 = vld [vmem:[%s0 + $0x4] sm:$0xf]
  %v17 = vld [vmem:[%s0 + $0x8] sm:$0xf]
  %v18 = vld [vmem:[%s0 + $0xc] sm:$0xf]
  %v19 = vld [vmem:[%s0 + $0x10] sm:$0xf]
  %v20 = vld [vmem:[%s0 + $0x14] sm:$0xf]
  %v21 = vld [vmem:[%s0 + $0x18] sm:$0xf]
  %v22 = vld [vmem:[%s0 + $0x1c] sm:$0xf]
  %v23 = vld [vmem:[%s0 + $0x20] sm:$0xf]
  %v24 = vld [vmem:[%s0 + $0x24] sm:$0xf]
  %v25 = vld [vmem:[%s0 + $0x28] sm:$0xf]
  %v26 = vld [vmem:[%s0 + $0x2c] sm:$0xf]
  %v27 = vld [vmem:[%s0 + $0x30] sm:$0xf]
  %v28 = vld [vmem:[%s0 + $0x34] sm:$0xf]
  %v29 = vld [vmem:[%s0 + $0x38] sm:$0xf]
  %v30 = vld [vmem:[%s0 + $0x3c] sm:$0xf]
  %v31 = vld [vmem:[%s0 + $0x40] sm:$0xf]
  %v32 = vld [vmem:[%s0 + $0x44] sm:$0xf]
  %v33 = vld [vmem:[%s0 + $0x48] sm:$0xf]
  %v34 = vld [vmem:[%s0 + $0x4c] sm:$0xf]
  %v35 = vld [vmem:[%s0 + $0x50] sm:$0xf]
  %v36 = vld [vmem:[%s0 + $0x54] sm:$0xf]
  %v37 = vld [vmem:[%s0 + $0x58] sm:$0xf]
  %v38 = vld [vmem:[%s0 + $0x5c] sm:$0xf]
  %v39 = vld [vmem:[%s0 + $0x60] sm:$0xf]
  %v40 = vld [vmem:[%s0 + $0x64] sm:$0xf]
  %v41 = vld [vmem:[%s0 + $0x68] sm:$0xf]
  %v42 = vld [vmem:[%s0 + $0x6c] sm:$0xf]
  %v43 = vld [vmem:[%s0 + $0x70] sm:$0xf]
  %v44 = vld [vmem:[%s0 + $0x74] sm:$0xf]
  %v45 = vld [vmem:[%s0 + $0x78] sm:$0xf]
  %v46 = vld [vmem:[%s0 + $0x7c] sm:$0xf]
  %v47 = vld [vmem:[%s0 + $0x80] sm:$0xf]
  %v48 = vld [vmem:[%s0 + $0x84] sm:$0xf]
  %v49 = vld [vmem:[%s0 + $0x88] sm:$0xf]
  %v50 = vld [vmem:[%s0 + $0x8c] sm:$0xf]
  %v51 = vld [vmem:[%s0 + $0x90] sm:$0xf]
  %v52 = vld [vmem:[%s0 + $0x94] sm:$0xf]
  %v53 = vld [vmem:[%s0 + $0x98] sm:$0xf]
  %v54 = vld [vmem:[%s0 + $0x9c] sm:$0xf]
  %v55 = vld [vmem:[%s0 + $0xa0] sm:$0xf]
  %v56 = vld [vmem:[%s0 + $0xa4] sm:$0xf]
  %v57 = vld [vmem:[%s0 + $0xa8] sm:$0xf]
  %v58 = vld [vmem:[%s0 + $0xac] sm:$0xf]
  %v59 = vld [vmem:[%s0 + $0xb0] sm:$0xf]
  %v60 = vld [vmem:[%s0 + $0xb4] sm:$0xf]
  %v61 = vld [vmem:[%s0 + $0xb8] sm:$0xf]
  %v62 = vld [vmem:[%s0 + $0xbc] sm:$0xf]
  %v63 = vld [vmem:[%s0 + $0xc0] sm:$0xf]
  %v64 = vld [vmem:[%s0 + $0xc4] sm:$0xf]
  %v65 = vld [vmem:[%s0 + $0xc8] sm:$0xf]
  %v66 = vld [vmem:[%s0 + $0xcc] sm:$0xf]
  %v67 = vld [vmem:[%s0 + $0xd0] sm:$0xf]
  %v68 = vld [vmem:[%s0 + $0xd4] sm:$0xf]
  %v69 = vld [vmem:[%s0 + $0xd8] sm:$0xf]
  %v70 = vld [vmem:[%s0 + $0xdc] sm:$0xf]
  %v71 = vld [vmem:[%s0 + $0xe0] sm:$0xf]
  %v72 = vld [vmem:[%s0 + $0xe4] sm:$0xf]
  %v73 = vld [vmem:[%s0 + $0xe8] sm:$0xf]
  %v74 = vld [vmem:[%s0 + $0xec] sm:$0xf]
  %v75 = vld [vmem:[%s0 + $0xf0] sm:$0xf]
  %v76 = vld [vmem:[%s0 + $0xf4] sm:$0xf]
  %v77 = vld [vmem:[%s0 + $0xf8] sm:$0xf]
  %v78 = vld [vmem:[%s0 + $0xfc] sm:$0xf]
  %v79 = vunpack.c.l.bf16 %v15
  %v80 = vunpack.c.l.bf16 %v16
  %v81 = vunpack.c.l.bf16 %v17
  %v82 = vunpack.c.l.bf16 %v18
  %v83 = vunpack.c.l.bf16 %v19
  %v84 = vunpack.c.l.bf16 %v20
  %v85 = vunpack.c.l.bf16 %v21
  %v86 = vunpack.c.l.bf16 %v22
  %v87 = vunpack.c.l.bf16 %v23
  %v88 = vunpack.c.l.bf16 %v24
  %v89 = vunpack.c.l.bf16 %v25
  %v90 = vunpack.c.l.bf16 %v26
  %v91 = vunpack.c.l.bf16 %v27
  %v92 = vunpack.c.l.bf16 %v28
  %v93 = vunpack.c.l.bf16 %v29
  %v94 = vunpack.c.l.bf16 %v30
  %v95 = vunpack.c.l.bf16 %v31
  %v96 = vunpack.c.l.bf16 %v32
  %v97 = vunpack.c.l.bf16 %v33
  %v98 = vunpack.c.l.bf16 %v34
  %v99 = vunpack.c.l.bf16 %v35
  %v100 = vunpack.c.l.bf16 %v36
  %v101 = vunpack.c.l.bf16 %v37
  %v102 = vunpack.c.l.bf16 %v38
  %v103 = vunpack.c.l.bf16 %v39
  %v104 = vunpack.c.l.bf16 %v40
  %v105 = vunpack.c.l.bf16 %v41
  %v106 = vunpack.c.l.bf16 %v42
  %v107 = vunpack.c.l.bf16 %v43
  %v108 = vunpack.c.l.bf16 %v44
  %v109 = vunpack.c.l.bf16 %v45
  %v110 = vunpack.c.l.bf16 %v46
  %v111 = vunpack.c.l.bf16 %v47
  %v112 = vunpack.c.l.bf16 %v48
  %v113 = vunpack.c.l.bf16 %v49
  %v114 = vunpack.c.l.bf16 %v50
  %v115 = vunpack.c.l.bf16 %v51
  %v116 = vunpack.c.l.bf16 %v52
  %v117 = vunpack.c.l.bf16 %v53
  %v118 = vunpack.c.l.bf16 %v54
  %v119 = vunpack.c.l.bf16 %v55
  %v120 = vunpack.c.l.bf16 %v56
  %v121 = vunpack.c.l.bf16 %v57
  %v122 = vunpack.c.l.bf16 %v58
  %v123 = vunpack.c.l.bf16 %v59
  %v124 = vunpack.c.l.bf16 %v60
  %v125 = vunpack.c.l.bf16 %v61
  %v126 = vunpack.c.l.bf16 %v62
  %v127 = vunpack.c.l.bf16 %v63
  %v128 = vunpack.c.l.bf16 %v64
  %v129 = vunpack.c.l.bf16 %v65
  %v130 = vunpack.c.l.bf16 %v66
  %v131 = vunpack.c.l.bf16 %v67
  %v132 = vunpack.c.l.bf16 %v68
  %v133 = vunpack.c.l.bf16 %v69
  %v134 = vunpack.c.l.bf16 %v70
  %v135 = vunpack.c.l.bf16 %v71
  %v136 = vunpack.c.l.bf16 %v72
  %v137 = vunpack.c.l.bf16 %v73
  %v138 = vunpack.c.l.bf16 %v74
  %v139 = vunpack.c.l.bf16 %v75
  %v140 = vunpack.c.l.bf16 %v76
  %v141 = vunpack.c.l.bf16 %v77
  %v142 = vunpack.c.l.bf16 %v78
  %v143 = vmax.f32 %v79, 0.0
  %v144 = vmax.f32 %v80, 0.0
  %v145 = vmax.f32 %v81, 0.0
  %v146 = vmax.f32 %v82, 0.0
  %v147 = vmax.f32 %v83, 0.0
  %v148 = vmax.f32 %v84, 0.0
  %v149 = vmax.f32 %v85, 0.0
  %v150 = vmax.f32 %v86, 0.0
  %v151 = vmax.f32 %v87, 0.0
  %v152 = vmax.f32 %v88, 0.0
  %v153 = vmax.f32 %v89, 0.0
  %v154 = vmax.f32 %v90, 0.0
  %v155 = vmax.f32 %v91, 0.0
  %v156 = vmax.f32 %v92, 0.0
  %v157 = vmax.f32 %v93, 0.0
  %v158 = vmax.f32 %v94, 0.0
  %v159 = vmax.f32 %v95, 0.0
  %v160 = vmax.f32 %v96, 0.0
  %v161 = vmax.f32 %v97, 0.0
  %v162 = vmax.f32 %v98, 0.0
  %v163 = vmax.f32 %v99, 0.0
  %v164 = vmax.f32 %v100, 0.0
  %v165 = vmax.f32 %v101, 0.0
  %v166 = vmax.f32 %v102, 0.0
  %v167 = vmax.f32 %v103, 0.0
  %v168 = vmax.f32 %v104, 0.0
  %v169 = vmax.f32 %v105, 0.0
  %v170 = vmax.f32 %v106, 0.0
  %v171 = vmax.f32 %v107, 0.0
  %v172 = vmax.f32 %v108, 0.0
  %v173 = vmax.f32 %v109, 0.0
  %v174 = vmax.f32 %v110, 0.0
  %v175 = vmax.f32 %v111, 0.0
  %v176 = vmax.f32 %v112, 0.0
  %v177 = vmax.f32 %v113, 0.0
  %v178 = vmax.f32 %v114, 0.0
  %v179 = vmax.f32 %v115, 0.0
  %v180 = vmax.f32 %v116, 0.0
  %v181 = vmax.f32 %v117, 0.0
  %v182 = vmax.f32 %v118, 0.0
  %v183 = vmax.f32 %v119, 0.0
  %v184 = vmax.f32 %v120, 0.0
  %v185 = vmax.f32 %v121, 0.0
  %v186 = vmax.f32 %v122, 0.0
  %v187 = vmax.f32 %v123, 0.0
  %v188 = vmax.f32 %v124, 0.0
  %v189 = vmax.f32 %v125, 0.0
  %v190 = vmax.f32 %v126, 0.0
  %v191 = vmax.f32 %v127, 0.0
  %v192 = vmax.f32 %v128, 0.0
  %v193 = vmax.f32 %v129, 0.0
  %v194 = vmax.f32 %v130, 0.0
  %v195 = vmax.f32 %v131, 0.0
  %v196 = vmax.f32 %v132, 0.0
  %v197 = vmax.f32 %v133, 0.0
  %v198 = vmax.f32 %v134, 0.0
  %v199 = vmax.f32 %v135, 0.0
  %v200 = vmax.f32 %v136, 0.0
  %v201 = vmax.f32 %v137, 0.0
  %v202 = vmax.f32 %v138, 0.0
  %v203 = vmax.f32 %v139, 0.0
  %v204 = vmax.f32 %v140, 0.0
  %v205 = vmax.f32 %v141, 0.0
  %v206 = vmax.f32 %v142, 0.0
  %v207 = vpack.c.bf16 %v144, %v143
  %v208 = vpack.c.bf16 %v146, %v145
  %v209 = vpack.c.bf16 %v148, %v147
  %v210 = vpack.c.bf16 %v150, %v149
  %v211 = vpack.c.bf16 %v152, %v151
  %v212 = vpack.c.bf16 %v154, %v153
  %v213 = vpack.c.bf16 %v156, %v155
  %v214 = vpack.c.bf16 %v158, %v157
  %v215 = vpack.c.bf16 %v160, %v159
  %v216 = vpack.c.bf16 %v162, %v161
  %v217 = vpack.c.bf16 %v164, %v163
  %v218 = vpack.c.bf16 %v166, %v165
  %v219 = vpack.c.bf16 %v168, %v167
  %v220 = vpack.c.bf16 %v170, %v169
  %v221 = vpack.c.bf16 %v172, %v171
  %v222 = vpack.c.bf16 %v174, %v173
  %v223 = vpack.c.bf16 %v176, %v175
  %v224 = vpack.c.bf16 %v178, %v177
  %v225 = vpack.c.bf16 %v180, %v179
  %v226 = vpack.c.bf16 %v182, %v181
  %v227 = vpack.c.bf16 %v184, %v183
  %v228 = vpack.c.bf16 %v186, %v185
  %v229 = vpack.c.bf16 %v188, %v187
  %v230 = vpack.c.bf16 %v190, %v189
  %v231 = vpack.c.bf16 %v192, %v191
  %v232 = vpack.c.bf16 %v194, %v193
  %v233 = vpack.c.bf16 %v196, %v195
  %v234 = vpack.c.bf16 %v198, %v197
  %v235 = vpack.c.bf16 %v200, %v199
  %v236 = vpack.c.bf16 %v202, %v201
  %v237 = vpack.c.bf16 %v204, %v203
  %v238 = vpack.c.bf16 %v206, %v205
  %v239 = vld [vmem:[%s1] sm:$0xf]
  %v240 = vld [vmem:[%s1 + $0x4] sm:$0xf]
  %v241 = vld [vmem:[%s1 + $0x8] sm:$0xf]
  %v242 = vld [vmem:[%s1 + $0xc] sm:$0xf]
  %v243 = vld [vmem:[%s2] sm:$0x1]
  %v245 = vperm.slane %v243, 0
  %v251 = vunpack.c.l.b16 %v239
  %v252 = vunpack.c.l.b16 %v240
  %v253 = vunpack.c.l.b16 %v241
  %v254 = vunpack.c.l.b16 %v242
  %v255 = vpack.c.b16 %v252, %v251
  %v256 = vpack.c.b16 %v254, %v253
  %vm259 = vcmask 261120
  %v261 = vsel %vm259, %v207, 0
  %v264 = vsel %vm259, %v208, 0
  %v267 = vsel %vm259, %v209, 0
  %v270 = vsel %vm259, %v210, 0
  %v273 = vsel %vm259, %v211, 0
  %v276 = vsel %vm259, %v212, 0
  %v279 = vsel %vm259, %v213, 0
  %v282 = vsel %vm259, %v214, 0
  %v285 = vsel %vm259, %v215, 0
  %v288 = vsel %vm259, %v216, 0
  %v291 = vsel %vm259, %v217, 0
  %v294 = vsel %vm259, %v218, 0
  %v297 = vsel %vm259, %v219, 0
  %v300 = vsel %vm259, %v220, 0
  %v303 = vsel %vm259, %v221, 0
  %v306 = vsel %vm259, %v222, 0
  %v309 = vsel %vm259, %v223, 0
  %v312 = vsel %vm259, %v224, 0
  %v315 = vsel %vm259, %v225, 0
  %v318 = vsel %vm259, %v226, 0
  %v321 = vsel %vm259, %v227, 0
  %v324 = vsel %vm259, %v228, 0
  %v327 = vsel %vm259, %v229, 0
  %v330 = vsel %vm259, %v230, 0
  %v333 = vsel %vm259, %v231, 0
  %v336 = vsel %vm259, %v232, 0
  %v339 = vsel %vm259, %v233, 0
  %v342 = vsel %vm259, %v234, 0
  %v345 = vsel %vm259, %v235, 0
  %v348 = vsel %vm259, %v236, 0
  %v351 = vsel %vm259, %v237, 0
  %v354 = vsel %vm259, %v238, 0
  %356 = vmatpush.bf16.msra.mxu0 0
  %357 = vmatpush.bf16.msra.mxu0 0
  %358 = vmatpush.bf16.msra.mxu0 0
  %359 = vmatpush.bf16.msra.mxu0 0
  %360 = vmatpush.bf16.msra.mxu0 0
  %361 = vmatpush.bf16.msra.mxu0 0
  %362 = vmatpush.bf16.msra.mxu0 %v256
  %363 = vmatpush.bf16.msra.mxu0 %v255
  %364 = vmatmul.bf16.gmra.mxu0 %v261
  %v365 = vpop.f32.mrf.mxu0
  %v366 = vadd.f32 %v245, %v365
  %v367 = vpop.f32.mrf.mxu0
  %v368 = vadd.f32 %v245, %v367
  %369 = vmatmul.bf16.gmra.mxu0 %v264
  %v370 = vpop.f32.mrf.mxu0
  %v371 = vadd.f32 %v245, %v370
  %v372 = vpop.f32.mrf.mxu0
  %v373 = vadd.f32 %v245, %v372
  %374 = vmatmul.bf16.gmra.mxu0 %v267
  %v375 = vpop.f32.mrf.mxu0
  %v376 = vadd.f32 %v245, %v375
  %v377 = vpop.f32.mrf.mxu0
  %v378 = vadd.f32 %v245, %v377
  %379 = vmatmul.bf16.gmra.mxu0 %v270
  %v380 = vpop.f32.mrf.mxu0
  %v381 = vadd.f32 %v245, %v380
  %v382 = vpop.f32.mrf.mxu0
  %v383 = vadd.f32 %v245, %v382
  %384 = vmatmul.bf16.gmra.mxu0 %v273
  %v385 = vpop.f32.mrf.mxu0
  %v386 = vadd.f32 %v245, %v385
  %v387 = vpop.f32.mrf.mxu0
  %v388 = vadd.f32 %v245, %v387
  %389 = vmatmul.bf16.gmra.mxu0 %v276
  %v390 = vpop.f32.mrf.mxu0
  %v391 = vadd.f32 %v245, %v390
  %v392 = vpop.f32.mrf.mxu0
  %v393 = vadd.f32 %v245, %v392
  %394 = vmatmul.bf16.gmra.mxu0 %v279
  %v395 = vpop.f32.mrf.mxu0
  %v396 = vadd.f32 %v245, %v395
  %v397 = vpop.f32.mrf.mxu0
  %v398 = vadd.f32 %v245, %v397
  %399 = vmatmul.bf16.gmra.mxu0 %v282
  %v400 = vpop.f32.mrf.mxu0
  %v401 = vadd.f32 %v245, %v400
  %v402 = vpop.f32.mrf.mxu0
  %v403 = vadd.f32 %v245, %v402
  %404 = vmatmul.bf16.gmra.mxu0 %v285
  %v405 = vpop.f32.mrf.mxu0
  %v406 = vadd.f32 %v245, %v405
  %v407 = vpop.f32.mrf.mxu0
  %v408 = vadd.f32 %v245, %v407
  %409 = vmatmul.bf16.gmra.mxu0 %v288
  %v410 = vpop.f32.mrf.mxu0
  %v411 = vadd.f32 %v245, %v410
  %v412 = vpop.f32.mrf.mxu0
  %v413 = vadd.f32 %v245, %v412
  %414 = vmatmul.bf16.gmra.mxu0 %v291
  %v415 = vpop.f32.mrf.mxu0
  %v416 = vadd.f32 %v245, %v415
  %v417 = vpop.f32.mrf.mxu0
  %v418 = vadd.f32 %v245, %v417
  %419 = vmatmul.bf16.gmra.mxu0 %v294
  %v420 = vpop.f32.mrf.mxu0
  %v421 = vadd.f32 %v245, %v420
  %v422 = vpop.f32.mrf.mxu0
  %v423 = vadd.f32 %v245, %v422
  %424 = vmatmul.bf16.gmra.mxu0 %v297
  %v425 = vpop.f32.mrf.mxu0
  %v426 = vadd.f32 %v245, %v425
  %v427 = vpop.f32.mrf.mxu0
  %v428 = vadd.f32 %v245, %v427
  %429 = vmatmul.bf16.gmra.mxu0 %v300
  %v430 = vpop.f32.mrf.mxu0
  %v431 = vadd.f32 %v245, %v430
  %v432 = vpop.f32.mrf.mxu0
  %v433 = vadd.f32 %v245, %v432
  %434 = vmatmul.bf16.gmra.mxu0 %v303
  %v435 = vpop.f32.mrf.mxu0
  %v436 = vadd.f32 %v245, %v435
  %v437 = vpop.f32.mrf.mxu0
  %v438 = vadd.f32 %v245, %v437
  %439 = vmatmul.bf16.gmra.mxu0 %v306
  %v440 = vpop.f32.mrf.mxu0
  %v441 = vadd.f32 %v245, %v440
  %v442 = vpop.f32.mrf.mxu0
  %v443 = vadd.f32 %v245, %v442
  %444 = vmatmul.bf16.gmra.mxu0 %v309
  %v445 = vpop.f32.mrf.mxu0
  %v446 = vadd.f32 %v245, %v445
  %v447 = vpop.f32.mrf.mxu0
  %v448 = vadd.f32 %v245, %v447
  %449 = vmatmul.bf16.gmra.mxu0 %v312
  %v450 = vpop.f32.mrf.mxu0
  %v451 = vadd.f32 %v245, %v450
  %v452 = vpop.f32.mrf.mxu0
  %v453 = vadd.f32 %v245, %v452
  %454 = vmatmul.bf16.gmra.mxu0 %v315
  %v455 = vpop.f32.mrf.mxu0
  %v456 = vadd.f32 %v245, %v455
  %v457 = vpop.f32.mrf.mxu0
  %v458 = vadd.f32 %v245, %v457
  %459 = vmatmul.bf16.gmra.mxu0 %v318
  %v460 = vpop.f32.mrf.mxu0
  %v461 = vadd.f32 %v245, %v460
  %v462 = vpop.f32.mrf.mxu0
  %v463 = vadd.f32 %v245, %v462
  %464 = vmatmul.bf16.gmra.mxu0 %v321
  %v465 = vpop.f32.mrf.mxu0
  %v466 = vadd.f32 %v245, %v465
  %v467 = vpop.f32.mrf.mxu0
  %v468 = vadd.f32 %v245, %v467
  %469 = vmatmul.bf16.gmra.mxu0 %v324
  %v470 = vpop.f32.mrf.mxu0
  %v471 = vadd.f32 %v245, %v470
  %v472 = vpop.f32.mrf.mxu0
  %v473 = vadd.f32 %v245, %v472
  %474 = vmatmul.bf16.gmra.mxu0 %v327
  %v475 = vpop.f32.mrf.mxu0
  %v476 = vadd.f32 %v245, %v475
  %v477 = vpop.f32.mrf.mxu0
  %v478 = vadd.f32 %v245, %v477
  %479 = vmatmul.bf16.gmra.mxu0 %v330
  %v480 = vpop.f32.mrf.mxu0
  %v481 = vadd.f32 %v245, %v480
  %v482 = vpop.f32.mrf.mxu0
  %v483 = vadd.f32 %v245, %v482
  %484 = vmatmul.bf16.gmra.mxu0 %v333
  %v485 = vpop.f32.mrf.mxu0
  %v486 = vadd.f32 %v245, %v485
  %v487 = vpop.f32.mrf.mxu0
  %v488 = vadd.f32 %v245, %v487
  %489 = vmatmul.bf16.gmra.mxu0 %v336
  %v490 = vpop.f32.mrf.mxu0
  %v491 = vadd.f32 %v245, %v490
  %v492 = vpop.f32.mrf.mxu0
  %v493 = vadd.f32 %v245, %v492
  %494 = vmatmul.bf16.gmra.mxu0 %v339
  %v495 = vpop.f32.mrf.mxu0
  %v496 = vadd.f32 %v245, %v495
  %v497 = vpop.f32.mrf.mxu0
  %v498 = vadd.f32 %v245, %v497
  %499 = vmatmul.bf16.gmra.mxu0 %v342
  %v500 = vpop.f32.mrf.mxu0
  %v501 = vadd.f32 %v245, %v500
  %v502 = vpop.f32.mrf.mxu0
  %v503 = vadd.f32 %v245, %v502
  %504 = vmatmul.bf16.gmra.mxu0 %v345
  %v505 = vpop.f32.mrf.mxu0
  %v506 = vadd.f32 %v245, %v505
  %v507 = vpop.f32.mrf.mxu0
  %v508 = vadd.f32 %v245, %v507
  %509 = vmatmul.bf16.gmra.mxu0 %v348
  %v510 = vpop.f32.mrf.mxu0
  %v511 = vadd.f32 %v245, %v510
  %v512 = vpop.f32.mrf.mxu0
  %v513 = vadd.f32 %v245, %v512
  %514 = vmatmul.bf16.gmra.mxu0 %v351
  %v515 = vpop.f32.mrf.mxu0
  %v516 = vadd.f32 %v245, %v515
  %v517 = vpop.f32.mrf.mxu0
  %v518 = vadd.f32 %v245, %v517
  %519 = vmatmul.bf16.gmra.mxu0 %v354
  %v520 = vpop.f32.mrf.mxu0
  %v521 = vadd.f32 %v245, %v520
  %v522 = vpop.f32.mrf.mxu0
  %v523 = vadd.f32 %v245, %v522
  %524 = vdwg.mxu0
  %v525 = vpack.c.bf16 %v366, %v366
  %v526 = vpack.c.bf16 %v368, %v368
  %v527 = vpack.c.bf16 %v371, %v371
  %v528 = vpack.c.bf16 %v373, %v373
  %v529 = vpack.c.bf16 %v376, %v376
  %v530 = vpack.c.bf16 %v378, %v378
  %v531 = vpack.c.bf16 %v381, %v381
  %v532 = vpack.c.bf16 %v383, %v383
  %v533 = vpack.c.bf16 %v386, %v386
  %v534 = vpack.c.bf16 %v388, %v388
  %v535 = vpack.c.bf16 %v391, %v391
  %v536 = vpack.c.bf16 %v393, %v393
  %v537 = vpack.c.bf16 %v396, %v396
  %v538 = vpack.c.bf16 %v398, %v398
  %v539 = vpack.c.bf16 %v401, %v401
  %v540 = vpack.c.bf16 %v403, %v403
  %v541 = vpack.c.bf16 %v406, %v406
  %v542 = vpack.c.bf16 %v408, %v408
  %v543 = vpack.c.bf16 %v411, %v411
  %v544 = vpack.c.bf16 %v413, %v413
  %v545 = vpack.c.bf16 %v416, %v416
  %v546 = vpack.c.bf16 %v418, %v418
  %v547 = vpack.c.bf16 %v421, %v421
  %v548 = vpack.c.bf16 %v423, %v423
  %v549 = vpack.c.bf16 %v426, %v426
  %v550 = vpack.c.bf16 %v428, %v428
  %v551 = vpack.c.bf16 %v431, %v431
  %v552 = vpack.c.bf16 %v433, %v433
  %v553 = vpack.c.bf16 %v436, %v436
  %v554 = vpack.c.bf16 %v438, %v438
  %v555 = vpack.c.bf16 %v441, %v441
  %v556 = vpack.c.bf16 %v443, %v443
  %v557 = vpack.c.bf16 %v446, %v446
  %v558 = vpack.c.bf16 %v448, %v448
  %v559 = vpack.c.bf16 %v451, %v451
  %v560 = vpack.c.bf16 %v453, %v453
  %v561 = vpack.c.bf16 %v456, %v456
  %v562 = vpack.c.bf16 %v458, %v458
  %v563 = vpack.c.bf16 %v461, %v461
  %v564 = vpack.c.bf16 %v463, %v463
  %v565 = vpack.c.bf16 %v466, %v466
  %v566 = vpack.c.bf16 %v468, %v468
  %v567 = vpack.c.bf16 %v471, %v471
  %v568 = vpack.c.bf16 %v473, %v473
  %v569 = vpack.c.bf16 %v476, %v476
  %v570 = vpack.c.bf16 %v478, %v478
  %v571 = vpack.c.bf16 %v481, %v481
  %v572 = vpack.c.bf16 %v483, %v483
  %v573 = vpack.c.bf16 %v486, %v486
  %v574 = vpack.c.bf16 %v488, %v488
  %v575 = vpack.c.bf16 %v491, %v491
  %v576 = vpack.c.bf16 %v493, %v493
  %v577 = vpack.c.bf16 %v496, %v496
  %v578 = vpack.c.bf16 %v498, %v498
  %v579 = vpack.c.bf16 %v501, %v501
  %v580 = vpack.c.bf16 %v503, %v503
  %v581 = vpack.c.bf16 %v506, %v506
  %v582 = vpack.c.bf16 %v508, %v508
  %v583 = vpack.c.bf16 %v511, %v511
  %v584 = vpack.c.bf16 %v513, %v513
  %v585 = vpack.c.bf16 %v516, %v516
  %v586 = vpack.c.bf16 %v518, %v518
  %v587 = vpack.c.bf16 %v521, %v521
  %v588 = vpack.c.bf16 %v523, %v523
  %vm589 = vcmask 257024
  %590 = vst.msk [vmem:[%s3] sm:$0xf] %vm589, %v525
  %591 = vst.msk [vmem:[%s3 + $0x4] sm:$0xf] %vm589, %v526
  %592 = vst.msk [vmem:[%s3 + $0x8] sm:$0xf] %vm589, %v527
  %593 = vst.msk [vmem:[%s3 + $0xc] sm:$0xf] %vm589, %v528
  %594 = vst.msk [vmem:[%s3 + $0x10] sm:$0xf] %vm589, %v529
  %595 = vst.msk [vmem:[%s3 + $0x14] sm:$0xf] %vm589, %v530
  %596 = vst.msk [vmem:[%s3 + $0x18] sm:$0xf] %vm589, %v531
  %597 = vst.msk [vmem:[%s3 + $0x1c] sm:$0xf] %vm589, %v532
  %598 = vst.msk [vmem:[%s3 + $0x20] sm:$0xf] %vm589, %v533
  %599 = vst.msk [vmem:[%s3 + $0x24] sm:$0xf] %vm589, %v534
  %600 = vst.msk [vmem:[%s3 + $0x28] sm:$0xf] %vm589, %v535
  %601 = vst.msk [vmem:[%s3 + $0x2c] sm:$0xf] %vm589, %v536
  %602 = vst.msk [vmem:[%s3 + $0x30] sm:$0xf] %vm589, %v537
  %603 = vst.msk [vmem:[%s3 + $0x34] sm:$0xf] %vm589, %v538
  %604 = vst.msk [vmem:[%s3 + $0x38] sm:$0xf] %vm589, %v539
  %605 = vst.msk [vmem:[%s3 + $0x3c] sm:$0xf] %vm589, %v540
  %606 = vst.msk [vmem:[%s3 + $0x40] sm:$0xf] %vm589, %v541
  %607 = vst.msk [vmem:[%s3 + $0x44] sm:$0xf] %vm589, %v542
  %608 = vst.msk [vmem:[%s3 + $0x48] sm:$0xf] %vm589, %v543
  %609 = vst.msk [vmem:[%s3 + $0x4c] sm:$0xf] %vm589, %v544
  %610 = vst.msk [vmem:[%s3 + $0x50] sm:$0xf] %vm589, %v545
  %611 = vst.msk [vmem:[%s3 + $0x54] sm:$0xf] %vm589, %v546
  %612 = vst.msk [vmem:[%s3 + $0x58] sm:$0xf] %vm589, %v547
  %613 = vst.msk [vmem:[%s3 + $0x5c] sm:$0xf] %vm589, %v548
  %614 = vst.msk [vmem:[%s3 + $0x60] sm:$0xf] %vm589, %v549
  %615 = vst.msk [vmem:[%s3 + $0x64] sm:$0xf] %vm589, %v550
  %616 = vst.msk [vmem:[%s3 + $0x68] sm:$0xf] %vm589, %v551
  %617 = vst.msk [vmem:[%s3 + $0x6c] sm:$0xf] %vm589, %v552
  %618 = vst.msk [vmem:[%s3 + $0x70] sm:$0xf] %vm589, %v553
  %619 = vst.msk [vmem:[%s3 + $0x74] sm:$0xf] %vm589, %v554
  %620 = vst.msk [vmem:[%s3 + $0x78] sm:$0xf] %vm589, %v555
  %621 = vst.msk [vmem:[%s3 + $0x7c] sm:$0xf] %vm589, %v556
  %622 = vst.msk [vmem:[%s3 + $0x80] sm:$0xf] %vm589, %v557
  %623 = vst.msk [vmem:[%s3 + $0x84] sm:$0xf] %vm589, %v558
  %624 = vst.msk [vmem:[%s3 + $0x88] sm:$0xf] %vm589, %v559
  %625 = vst.msk [vmem:[%s3 + $0x8c] sm:$0xf] %vm589, %v560
  %626 = vst.msk [vmem:[%s3 + $0x90] sm:$0xf] %vm589, %v561
  %627 = vst.msk [vmem:[%s3 + $0x94] sm:$0xf] %vm589, %v562
  %628 = vst.msk [vmem:[%s3 + $0x98] sm:$0xf] %vm589, %v563
  %629 = vst.msk [vmem:[%s3 + $0x9c] sm:$0xf] %vm589, %v564
  %630 = vst.msk [vmem:[%s3 + $0xa0] sm:$0xf] %vm589, %v565
  %631 = vst.msk [vmem:[%s3 + $0xa4] sm:$0xf] %vm589, %v566
  %632 = vst.msk [vmem:[%s3 + $0xa8] sm:$0xf] %vm589, %v567
  %633 = vst.msk [vmem:[%s3 + $0xac] sm:$0xf] %vm589, %v568
  %634 = vst.msk [vmem:[%s3 + $0xb0] sm:$0xf] %vm589, %v569
  %635 = vst.msk [vmem:[%s3 + $0xb4] sm:$0xf] %vm589, %v570
  %636 = vst.msk [vmem:[%s3 + $0xb8] sm:$0xf] %vm589, %v571
  %637 = vst.msk [vmem:[%s3 + $0xbc] sm:$0xf] %vm589, %v572
  %638 = vst.msk [vmem:[%s3 + $0xc0] sm:$0xf] %vm589, %v573
  %639 = vst.msk [vmem:[%s3 + $0xc4] sm:$0xf] %vm589, %v574
  %640 = vst.msk [vmem:[%s3 + $0xc8] sm:$0xf] %vm589, %v575
  %641 = vst.msk [vmem:[%s3 + $0xcc] sm:$0xf] %vm589, %v576
  %642 = vst.msk [vmem:[%s3 + $0xd0] sm:$0xf] %vm589, %v577
  %643 = vst.msk [vmem:[%s3 + $0xd4] sm:$0xf] %vm589, %v578
  %644 = vst.msk [vmem:[%s3 + $0xd8] sm:$0xf] %vm589, %v579
  %645 = vst.msk [vmem:[%s3 + $0xdc] sm:$0xf] %vm589, %v580
  %646 = vst.msk [vmem:[%s3 + $0xe0] sm:$0xf] %vm589, %v581
  %647 = vst.msk [vmem:[%s3 + $0xe4] sm:$0xf] %vm589, %v582
  %648 = vst.msk [vmem:[%s3 + $0xe8] sm:$0xf] %vm589, %v583
  %649 = vst.msk [vmem:[%s3 + $0xec] sm:$0xf] %vm589, %v584
  %650 = vst.msk [vmem:[%s3 + $0xf0] sm:$0xf] %vm589, %v585
  %651 = vst.msk [vmem:[%s3 + $0xf4] sm:$0xf] %vm589, %v586
  %652 = vst.msk [vmem:[%s3 + $0xf8] sm:$0xf] %vm589, %v587
  %653 = vst.msk [vmem:[%s3 + $0xfc] sm:$0xf] %vm589, %v588
  // Predicated region
  $region14: #{_lambda_.10} parent=0 // pred_check
    _
  $region15: #{_lambda_.10} parent=0 // pred_check_branch
    %655 = sbr.rel (0) target = $region17
  $region16: #{_lambda_.10} parent=0 // pred_region
    _
  $region17: #{_lambda_.10} parent=0 // pred_fallthru
    _
  // Predicated region
  $region18: #{_lambda_.10} parent=0 // pred_check
    _
  $region19: #{_lambda_.10} parent=0 // pred_check_branch
    %657 = sbr.rel (0) target = $region21
  $region20: #{_lambda_.10} parent=0 // pred_region
    _
  $region21: #{_lambda_.10} parent=0 // pred_fallthru
    _

// kernel: _lambda_.12
$region0: #{_lambda_.12}
  #allocation0 [shape = 'u32[]', space=smem, size = 0x4, offset = 0x4, fixed_abs, tag = 'smem constant byte address 0x4 - core index']
  #allocation1 [shape = 'u32[72,128]{1,0:T(1,128)}', space=vmem, size = 0x9000, scoped, tag = 'internal scratch']
  %s0 = inlined_call_operand.vmem [shape: bf16[128,64], index: 0, kind: input, shape index: {}]
  %s1 = inlined_call_operand.vmem [shape: bf16[64,64], index: 1, kind: input, shape index: {}]
  %s2 = inlined_call_operand.vmem [shape: f32[1,64], index: 2, kind: input, shape index: {}]
  %s3 = inlined_call_operand.vmem [shape: bf16[128,64], index: 3, kind: output, shape index: {}]
  %s4 = sld [smem:[#allocation0]]
  $region22: #{_lambda_.12} parent=0
    _
  %s6 = ssub.s32 1, %s4
  %s7 = scalar_select 0, %s6, %s4
  // Predicated region
  $region2: #{_lambda_.12} parent=0 // pred_check
    _
  $region3: #{_lambda_.12} parent=0 // pred_check_branch
    %9 = sbr.rel (0) target = $region5
  $region4: #{_lambda_.12} parent=0 // pred_region
    _
  $region5: #{_lambda_.12} parent=0 // pred_fallthru
    _
  // Predicated region
  $region6: #{_lambda_.12} parent=0 // pred_check
    _
  $region7: #{_lambda_.12} parent=0 // pred_check_branch
    %11 = sbr.rel (0) target = $region9
  $region8: #{_lambda_.12} parent=0 // pred_region
    _
  $region9: #{_lambda_.12} parent=0 // pred_fallthru
    _
  // Predicated region
  $region10: #{_lambda_.12} parent=0 // pred_check
    _
  $region11: #{_lambda_.12} parent=0 // pred_check_branch
    %13 = sbr.rel (0) target = $region13
  $region12: #{_lambda_.12} parent=0 // pred_region
    _
  $region13: #{_lambda_.12} parent=0 // pred_fallthru
    _
  %v15 = vld [vmem:[%s0] sm:$0xf]
  %v16 = vld [vmem:[%s0 + $0x4] sm:$0xf]
  %v17 = vld [vmem:[%s0 + $0x8] sm:$0xf]
  %v18 = vld [vmem:[%s0 + $0xc] sm:$0xf]
  %v19 = vld [vmem:[%s0 + $0x10] sm:$0xf]
  %v20 = vld [vmem:[%s0 + $0x14] sm:$0xf]
  %v21 = vld [vmem:[%s0 + $0x18] sm:$0xf]
  %v22 = vld [vmem:[%s0 + $0x1c] sm:$0xf]
  %v23 = vld [vmem:[%s0 + $0x20] sm:$0xf]
  %v24 = vld [vmem:[%s0 + $0x24] sm:$0xf]
  %v25 = vld [vmem:[%s0 + $0x28] sm:$0xf]
  %v26 = vld [vmem:[%s0 + $0x2c] sm:$0xf]
  %v27 = vld [vmem:[%s0 + $0x30] sm:$0xf]
  %v28 = vld [vmem:[%s0 + $0x34] sm:$0xf]
  %v29 = vld [vmem:[%s0 + $0x38] sm:$0xf]
  %v30 = vld [vmem:[%s0 + $0x3c] sm:$0xf]
  %v31 = vunpack.c.l.bf16 %v15
  %v32 = vunpack.c.l.bf16 %v16
  %v33 = vunpack.c.l.bf16 %v17
  %v34 = vunpack.c.l.bf16 %v18
  %v35 = vunpack.c.l.bf16 %v19
  %v36 = vunpack.c.l.bf16 %v20
  %v37 = vunpack.c.l.bf16 %v21
  %v38 = vunpack.c.l.bf16 %v22
  %v39 = vunpack.c.l.bf16 %v23
  %v40 = vunpack.c.l.bf16 %v24
  %v41 = vunpack.c.l.bf16 %v25
  %v42 = vunpack.c.l.bf16 %v26
  %v43 = vunpack.c.l.bf16 %v27
  %v44 = vunpack.c.l.bf16 %v28
  %v45 = vunpack.c.l.bf16 %v29
  %v46 = vunpack.c.l.bf16 %v30
  %v47 = vmax.f32 %v31, 0.0
  %v48 = vmax.f32 %v32, 0.0
  %v49 = vmax.f32 %v33, 0.0
  %v50 = vmax.f32 %v34, 0.0
  %v51 = vmax.f32 %v35, 0.0
  %v52 = vmax.f32 %v36, 0.0
  %v53 = vmax.f32 %v37, 0.0
  %v54 = vmax.f32 %v38, 0.0
  %v55 = vmax.f32 %v39, 0.0
  %v56 = vmax.f32 %v40, 0.0
  %v57 = vmax.f32 %v41, 0.0
  %v58 = vmax.f32 %v42, 0.0
  %v59 = vmax.f32 %v43, 0.0
  %v60 = vmax.f32 %v44, 0.0
  %v61 = vmax.f32 %v45, 0.0
  %v62 = vmax.f32 %v46, 0.0
  %v63 = vpack.c.bf16 %v48, %v47
  %v64 = vpack.c.bf16 %v50, %v49
  %v65 = vpack.c.bf16 %v52, %v51
  %v66 = vpack.c.bf16 %v54, %v53
  %v67 = vpack.c.bf16 %v56, %v55
  %v68 = vpack.c.bf16 %v58, %v57
  %v69 = vpack.c.bf16 %v60, %v59
  %v70 = vpack.c.bf16 %v62, %v61
  %v71 = vld [vmem:[%s1] sm:$0xf]
  %v72 = vld [vmem:[%s1 + $0x4] sm:$0xf]
  %v73 = vld [vmem:[%s1 + $0x8] sm:$0xf]
  %v74 = vld [vmem:[%s1 + $0xc] sm:$0xf]
  %v75 = vld [vmem:[%s1 + $0x10] sm:$0xf]
  %v76 = vld [vmem:[%s1 + $0x14] sm:$0xf]
  %v77 = vld [vmem:[%s1 + $0x18] sm:$0xf]
  %v78 = vld [vmem:[%s1 + $0x1c] sm:$0xf]
  %v79 = vld [vmem:[%s2] sm:$0x1]
  %v81 = vperm.slane %v79, 0
  %v91 = vunpack.c.l.b16 %v71
  %v92 = vunpack.c.l.b16 %v72
  %v93 = vunpack.c.l.b16 %v73
  %v94 = vunpack.c.l.b16 %v74
  %v95 = vunpack.c.l.b16 %v75
  %v96 = vunpack.c.l.b16 %v76
  %v97 = vunpack.c.l.b16 %v77
  %v98 = vunpack.c.l.b16 %v78
  %v99 = vpack.c.b16 %v92, %v91
  %v100 = vpack.c.b16 %v94, %v93
  %v101 = vpack.c.b16 %v96, %v95
  %v102 = vpack.c.b16 %v98, %v97
  %vm107 = vcmask 523264
  %v109 = vsel %vm107, %v63, 0
  %v112 = vsel %vm107, %v64, 0
  %v115 = vsel %vm107, %v65, 0
  %v118 = vsel %vm107, %v66, 0
  %v121 = vsel %vm107, %v67, 0
  %v124 = vsel %vm107, %v68, 0
  %v127 = vsel %vm107, %v69, 0
  %v130 = vsel %vm107, %v70, 0
  %132 = vmatpush.bf16.msra.mxu0 0
  %133 = vmatpush.bf16.msra.mxu0 0
  %134 = vmatpush.bf16.msra.mxu0 0
  %135 = vmatpush.bf16.msra.mxu0 0
  %136 = vmatpush.bf16.msra.mxu0 %v102
  %137 = vmatpush.bf16.msra.mxu0 %v101
  %138 = vmatpush.bf16.msra.mxu0 %v100
  %139 = vmatpush.bf16.msra.mxu0 %v99
  %140 = vmatmul.bf16.gmra.mxu0 %v109
  %v141 = vpop.f32.mrf.mxu0
  %v142 = vadd.f32 %v81, %v141
  %v143 = vpop.f32.mrf.mxu0
  %v144 = vadd.f32 %v81, %v143
  %145 = vmatmul.bf16.gmra.mxu0 %v112
  %v146 = vpop.f32.mrf.mxu0
  %v147 = vadd.f32 %v81, %v146
  %v148 = vpop.f32.mrf.mxu0
  %v149 = vadd.f32 %v81, %v148
  %150 = vmatmul.bf16.gmra.mxu0 %v115
  %v151 = vpop.f32.mrf.mxu0
  %v152 = vadd.f32 %v81, %v151
  %v153 = vpop.f32.mrf.mxu0
  %v154 = vadd.f32 %v81, %v153
  %155 = vmatmul.bf16.gmra.mxu0 %v118
  %v156 = vpop.f32.mrf.mxu0
  %v157 = vadd.f32 %v81, %v156
  %v158 = vpop.f32.mrf.mxu0
  %v159 = vadd.f32 %v81, %v158
  %160 = vmatmul.bf16.gmra.mxu0 %v121
  %v161 = vpop.f32.mrf.mxu0
  %v162 = vadd.f32 %v81, %v161
  %v163 = vpop.f32.mrf.mxu0
  %v164 = vadd.f32 %v81, %v163
  %165 = vmatmul.bf16.gmra.mxu0 %v124
  %v166 = vpop.f32.mrf.mxu0
  %v167 = vadd.f32 %v81, %v166
  %v168 = vpop.f32.mrf.mxu0
  %v169 = vadd.f32 %v81, %v168
  %170 = vmatmul.bf16.gmra.mxu0 %v127
  %v171 = vpop.f32.mrf.mxu0
  %v172 = vadd.f32 %v81, %v171
  %v173 = vpop.f32.mrf.mxu0
  %v174 = vadd.f32 %v81, %v173
  %175 = vmatmul.bf16.gmra.mxu0 %v130
  %v176 = vpop.f32.mrf.mxu0
  %v177 = vadd.f32 %v81, %v176
  %v178 = vpop.f32.mrf.mxu0
  %v179 = vadd.f32 %v81, %v178
  %180 = vdwg.mxu0
  %v181 = vpack.c.bf16 %v142, %v142
  %v182 = vpack.c.bf16 %v144, %v144
  %v183 = vpack.c.bf16 %v147, %v147
  %v184 = vpack.c.bf16 %v149, %v149
  %v185 = vpack.c.bf16 %v152, %v152
  %v186 = vpack.c.bf16 %v154, %v154
  %v187 = vpack.c.bf16 %v157, %v157
  %v188 = vpack.c.bf16 %v159, %v159
  %v189 = vpack.c.bf16 %v162, %v162
  %v190 = vpack.c.bf16 %v164, %v164
  %v191 = vpack.c.bf16 %v167, %v167
  %v192 = vpack.c.bf16 %v169, %v169
  %v193 = vpack.c.bf16 %v172, %v172
  %v194 = vpack.c.bf16 %v174, %v174
  %v195 = vpack.c.bf16 %v177, %v177
  %v196 = vpack.c.bf16 %v179, %v179
  %vm197 = vcmask 519168
  %198 = vst.msk [vmem:[%s3] sm:$0xf] %vm197, %v181
  %199 = vst.msk [vmem:[%s3 + $0x4] sm:$0xf] %vm197, %v182
  %200 = vst.msk [vmem:[%s3 + $0x8] sm:$0xf] %vm197, %v183
  %201 = vst.msk [vmem:[%s3 + $0xc] sm:$0xf] %vm197, %v184
  %202 = vst.msk [vmem:[%s3 + $0x10] sm:$0xf] %vm197, %v185
  %203 = vst.msk [vmem:[%s3 + $0x14] sm:$0xf] %vm197, %v186
  %204 = vst.msk [vmem:[%s3 + $0x18] sm:$0xf] %vm197, %v187
  %205 = vst.msk [vmem:[%s3 + $0x1c] sm:$0xf] %vm197, %v188
  %206 = vst.msk [vmem:[%s3 + $0x20] sm:$0xf] %vm197, %v189
  %207 = vst.msk [vmem:[%s3 + $0x24] sm:$0xf] %vm197, %v190
  %208 = vst.msk [vmem:[%s3 + $0x28] sm:$0xf] %vm197, %v191
  %209 = vst.msk [vmem:[%s3 + $0x2c] sm:$0xf] %vm197, %v192
  %210 = vst.msk [vmem:[%s3 + $0x30] sm:$0xf] %vm197, %v193
  %211 = vst.msk [vmem:[%s3 + $0x34] sm:$0xf] %vm197, %v194
  %212 = vst.msk [vmem:[%s3 + $0x38] sm:$0xf] %vm197, %v195
  %213 = vst.msk [vmem:[%s3 + $0x3c] sm:$0xf] %vm197, %v196
  // Predicated region
  $region14: #{_lambda_.12} parent=0 // pred_check
    _
  $region15: #{_lambda_.12} parent=0 // pred_check_branch
    %215 = sbr.rel (0) target = $region17
  $region16: #{_lambda_.12} parent=0 // pred_region
    _
  $region17: #{_lambda_.12} parent=0 // pred_fallthru
    _
  // Predicated region
  $region18: #{_lambda_.12} parent=0 // pred_check
    _
  $region19: #{_lambda_.12} parent=0 // pred_check_branch
    %217 = sbr.rel (0) target = $region21
  $region20: #{_lambda_.12} parent=0 // pred_region
    _
  $region21: #{_lambda_.12} parent=0 // pred_fallthru
    _

// kernel: _lambda_.13
$region0: #{_lambda_.13}
  #allocation0 [shape = 'u32[]', space=smem, size = 0x4, offset = 0x4, fixed_abs, tag = 'smem constant byte address 0x4 - core index']
  #allocation1 [shape = 'u32[72,128]{1,0:T(1,128)}', space=vmem, size = 0x9000, scoped, tag = 'internal scratch']
  %s0 = inlined_call_operand.vmem [shape: bf16[18,1152], index: 0, kind: input, shape index: {}]
  %s1 = inlined_call_operand.vmem [shape: bf16[1152,32], index: 1, kind: input, shape index: {}]
  %s2 = inlined_call_operand.vmem [shape: f32[1,32], index: 2, kind: input, shape index: {}]
  %s3 = inlined_call_operand.vmem [shape: bf16[32,5], index: 3, kind: input, shape index: {}]
  %s4 = inlined_call_operand.vmem [shape: f32[1,5], index: 4, kind: input, shape index: {}]
  %s5 = inlined_call_operand.vmem [shape: f32[18,5], index: 5, kind: output, shape index: {}]
  %s6 = sld [smem:[#allocation0]]
  $region30: #{_lambda_.13} parent=0
    _
  %s8 = ssub.s32 1, %s6
  %s9 = scalar_select 0, %s8, %s6
  // Predicated region
  $region2: #{_lambda_.13} parent=0 // pred_check
    _
  $region3: #{_lambda_.13} parent=0 // pred_check_branch
    %11 = sbr.rel (0) target = $region5
  $region4: #{_lambda_.13} parent=0 // pred_region
    _
  $region5: #{_lambda_.13} parent=0 // pred_fallthru
    _
  // Predicated region
  $region6: #{_lambda_.13} parent=0 // pred_check
    _
  $region7: #{_lambda_.13} parent=0 // pred_check_branch
    %13 = sbr.rel (0) target = $region9
  $region8: #{_lambda_.13} parent=0 // pred_region
    _
  $region9: #{_lambda_.13} parent=0 // pred_fallthru
    _
  // Predicated region
  $region10: #{_lambda_.13} parent=0 // pred_check
    _
  $region11: #{_lambda_.13} parent=0 // pred_check_branch
    %15 = sbr.rel (0) target = $region13
  $region12: #{_lambda_.13} parent=0 // pred_region
    _
  $region13: #{_lambda_.13} parent=0 // pred_fallthru
    _
  // Predicated region
  $region14: #{_lambda_.13} parent=0 // pred_check
    _
  $region15: #{_lambda_.13} parent=0 // pred_check_branch
    %17 = sbr.rel (0) target = $region17
  $region16: #{_lambda_.13} parent=0 // pred_region
    _
  $region17: #{_lambda_.13} parent=0 // pred_fallthru
    _
  // Predicated region
  $region18: #{_lambda_.13} parent=0 // pred_check
    _
  $region19: #{_lambda_.13} parent=0 // pred_check_branch
    %19 = sbr.rel (0) target = $region21
  $region20: #{_lambda_.13} parent=0 // pred_region
    _
  $region21: #{_lambda_.13} parent=0 // pred_fallthru
    _
  %v21 = vld [vmem:[%s0] sm:$0xff]
  %v22 = vld [vmem:[%s0 + $0x8] sm:$0xff]
  %v23 = vld [vmem:[%s0 + $0x10] sm:$0xff]
  %v24 = vld [vmem:[%s0 + $0x18] sm:$0xff]
  %v25 = vld [vmem:[%s0 + $0x20] sm:$0xf]
  %v26 = vld [vmem:[%s0 + $0x24] sm:$0xff]
  %v27 = vld [vmem:[%s0 + $0x2c] sm:$0xff]
  %v28 = vld [vmem:[%s0 + $0x34] sm:$0xff]
  %v29 = vld [vmem:[%s0 + $0x3c] sm:$0xff]
  %v30 = vld [vmem:[%s0 + $0x44] sm:$0xf]
  %v31 = vld [vmem:[%s0 + $0x48] sm:$0x11]
  %v32 = vld [vmem:[%s0 + $0x50] sm:$0x11]
  %v33 = vld [vmem:[%s0 + $0x58] sm:$0x11]
  %v34 = vld [vmem:[%s0 + $0x60] sm:$0x11]
  %v35 = vld [vmem:[%s0 + $0x68] sm:$0x1]
  %v36 = vld [vmem:[%s1] sm:$0xf]
  %v37 = vld [vmem:[%s1 + $0x4] sm:$0xf]
  %v38 = vld [vmem:[%s1 + $0x8] sm:$0xf]
  %v39 = vld [vmem:[%s1 + $0xc] sm:$0xf]
  %v40 = vld [vmem:[%s1 + $0x10] sm:$0xf]
  %v41 = vld [vmem:[%s1 + $0x14] sm:$0xf]
  %v42 = vld [vmem:[%s1 + $0x18] sm:$0xf]
  %v43 = vld [vmem:[%s1 + $0x1c] sm:$0xf]
  %v44 = vld [vmem:[%s1 + $0x20] sm:$0xf]
  %v45 = vld [vmem:[%s1 + $0x24] sm:$0xf]
  %v46 = vld [vmem:[%s1 + $0x28] sm:$0xf]
  %v47 = vld [vmem:[%s1 + $0x2c] sm:$0xf]
  %v48 = vld [vmem:[%s1 + $0x30] sm:$0xf]
  %v49 = vld [vmem:[%s1 + $0x34] sm:$0xf]
  %v50 = vld [vmem:[%s1 + $0x38] sm:$0xf]
  %v51 = vld [vmem:[%s1 + $0x3c] sm:$0xf]
  %v52 = vld [vmem:[%s1 + $0x40] sm:$0xf]
  %v53 = vld [vmem:[%s1 + $0x44] sm:$0xf]
  %v54 = vld [vmem:[%s1 + $0x48] sm:$0xf]
  %v55 = vld [vmem:[%s1 + $0x4c] sm:$0xf]
  %v56 = vld [vmem:[%s1 + $0x50] sm:$0xf]
  %v57 = vld [vmem:[%s1 + $0x54] sm:$0xf]
  %v58 = vld [vmem:[%s1 + $0x58] sm:$0xf]
  %v59 = vld [vmem:[%s1 + $0x5c] sm:$0xf]
  %v60 = vld [vmem:[%s1 + $0x60] sm:$0xf]
  %v61 = vld [vmem:[%s1 + $0x64] sm:$0xf]
  %v62 = vld [vmem:[%s1 + $0x68] sm:$0xf]
  %v63 = vld [vmem:[%s1 + $0x6c] sm:$0xf]
  %v64 = vld [vmem:[%s1 + $0x70] sm:$0xf]
  %v65 = vld [vmem:[%s1 + $0x74] sm:$0xf]
  %v66 = vld [vmem:[%s1 + $0x78] sm:$0xf]
  %v67 = vld [vmem:[%s1 + $0x7c] sm:$0xf]
  %v68 = vld [vmem:[%s1 + $0x80] sm:$0xf]
  %v69 = vld [vmem:[%s1 + $0x84] sm:$0xf]
  %v70 = vld [vmem:[%s1 + $0x88] sm:$0xf]
  %v71 = vld [vmem:[%s1 + $0x8c] sm:$0xf]
  %v72 = vld [vmem:[%s1 + $0x90] sm:$0xf]
  %v73 = vld [vmem:[%s1 + $0x94] sm:$0xf]
  %v74 = vld [vmem:[%s1 + $0x98] sm:$0xf]
  %v75 = vld [vmem:[%s1 + $0x9c] sm:$0xf]
  %v76 = vld [vmem:[%s1 + $0xa0] sm:$0xf]
  %v77 = vld [vmem:[%s1 + $0xa4] sm:$0xf]
  %v78 = vld [vmem:[%s1 + $0xa8] sm:$0xf]
  %v79 = vld [vmem:[%s1 + $0xac] sm:$0xf]
  %v80 = vld [vmem:[%s1 + $0xb0] sm:$0xf]
  %v81 = vld [vmem:[%s1 + $0xb4] sm:$0xf]
  %v82 = vld [vmem:[%s1 + $0xb8] sm:$0xf]
  %v83 = vld [vmem:[%s1 + $0xbc] sm:$0xf]
  %v84 = vld [vmem:[%s1 + $0xc0] sm:$0xf]
  %v85 = vld [vmem:[%s1 + $0xc4] sm:$0xf]
  %v86 = vld [vmem:[%s1 + $0xc8] sm:$0xf]
  %v87 = vld [vmem:[%s1 + $0xcc] sm:$0xf]
  %v88 = vld [vmem:[%s1 + $0xd0] sm:$0xf]
  %v89 = vld [vmem:[%s1 + $0xd4] sm:$0xf]
  %v90 = vld [vmem:[%s1 + $0xd8] sm:$0xf]
  %v91 = vld [vmem:[%s1 + $0xdc] sm:$0xf]
  %v92 = vld [vmem:[%s1 + $0xe0] sm:$0xf]
  %v93 = vld [vmem:[%s1 + $0xe4] sm:$0xf]
  %v94 = vld [vmem:[%s1 + $0xe8] sm:$0xf]
  %v95 = vld [vmem:[%s1 + $0xec] sm:$0xf]
  %v96 = vld [vmem:[%s1 + $0xf0] sm:$0xf]
  %v97 = vld [vmem:[%s1 + $0xf4] sm:$0xf]
  %v98 = vld [vmem:[%s1 + $0xf8] sm:$0xf]
  %v99 = vld [vmem:[%s1 + $0xfc] sm:$0xf]
  %v100 = vld [vmem:[%s1 + $0x100] sm:$0xf]
  %v101 = vld [vmem:[%s1 + $0x104] sm:$0xf]
  %v102 = vld [vmem:[%s1 + $0x108] sm:$0xf]
  %v103 = vld [vmem:[%s1 + $0x10c] sm:$0xf]
  %v104 = vld [vmem:[%s1 + $0x110] sm:$0xf]
  %v105 = vld [vmem:[%s1 + $0x114] sm:$0xf]
  %v106 = vld [vmem:[%s1 + $0x118] sm:$0xf]
  %v107 = vld [vmem:[%s1 + $0x11c] sm:$0xf]
  %v108 = vld [vmem:[%s1 + $0x120] sm:$0xf]
  %v109 = vld [vmem:[%s1 + $0x124] sm:$0xf]
  %v110 = vld [vmem:[%s1 + $0x128] sm:$0xf]
  %v111 = vld [vmem:[%s1 + $0x12c] sm:$0xf]
  %v112 = vld [vmem:[%s1 + $0x130] sm:$0xf]
  %v113 = vld [vmem:[%s1 + $0x134] sm:$0xf]
  %v114 = vld [vmem:[%s1 + $0x138] sm:$0xf]
  %v115 = vld [vmem:[%s1 + $0x13c] sm:$0xf]
  %v116 = vld [vmem:[%s1 + $0x140] sm:$0xf]
  %v117 = vld [vmem:[%s1 + $0x144] sm:$0xf]
  %v118 = vld [vmem:[%s1 + $0x148] sm:$0xf]
  %v119 = vld [vmem:[%s1 + $0x14c] sm:$0xf]
  %v120 = vld [vmem:[%s1 + $0x150] sm:$0xf]
  %v121 = vld [vmem:[%s1 + $0x154] sm:$0xf]
  %v122 = vld [vmem:[%s1 + $0x158] sm:$0xf]
  %v123 = vld [vmem:[%s1 + $0x15c] sm:$0xf]
  %v124 = vld [vmem:[%s1 + $0x160] sm:$0xf]
  %v125 = vld [vmem:[%s1 + $0x164] sm:$0xf]
  %v126 = vld [vmem:[%s1 + $0x168] sm:$0xf]
  %v127 = vld [vmem:[%s1 + $0x16c] sm:$0xf]
  %v128 = vld [vmem:[%s1 + $0x170] sm:$0xf]
  %v129 = vld [vmem:[%s1 + $0x174] sm:$0xf]
  %v130 = vld [vmem:[%s1 + $0x178] sm:$0xf]
  %v131 = vld [vmem:[%s1 + $0x17c] sm:$0xf]
  %v132 = vld [vmem:[%s1 + $0x180] sm:$0xf]
  %v133 = vld [vmem:[%s1 + $0x184] sm:$0xf]
  %v134 = vld [vmem:[%s1 + $0x188] sm:$0xf]
  %v135 = vld [vmem:[%s1 + $0x18c] sm:$0xf]
  %v136 = vld [vmem:[%s1 + $0x190] sm:$0xf]
  %v137 = vld [vmem:[%s1 + $0x194] sm:$0xf]
  %v138 = vld [vmem:[%s1 + $0x198] sm:$0xf]
  %v139 = vld [vmem:[%s1 + $0x19c] sm:$0xf]
  %v140 = vld [vmem:[%s1 + $0x1a0] sm:$0xf]
  %v141 = vld [vmem:[%s1 + $0x1a4] sm:$0xf]
  %v142 = vld [vmem:[%s1 + $0x1a8] sm:$0xf]
  %v143 = vld [vmem:[%s1 + $0x1ac] sm:$0xf]
  %v144 = vld [vmem:[%s1 + $0x1b0] sm:$0xf]
  %v145 = vld [vmem:[%s1 + $0x1b4] sm:$0xf]
  %v146 = vld [vmem:[%s1 + $0x1b8] sm:$0xf]
  %v147 = vld [vmem:[%s1 + $0x1bc] sm:$0xf]
  %v148 = vld [vmem:[%s1 + $0x1c0] sm:$0xf]
  %v149 = vld [vmem:[%s1 + $0x1c4] sm:$0xf]
  %v150 = vld [vmem:[%s1 + $0x1c8] sm:$0xf]
  %v151 = vld [vmem:[%s1 + $0x1cc] sm:$0xf]
  %v152 = vld [vmem:[%s1 + $0x1d0] sm:$0xf]
  %v153 = vld [vmem:[%s1 + $0x1d4] sm:$0xf]
  %v154 = vld [vmem:[%s1 + $0x1d8] sm:$0xf]
  %v155 = vld [vmem:[%s1 + $0x1dc] sm:$0xf]
  %v156 = vld [vmem:[%s1 + $0x1e0] sm:$0xf]
  %v157 = vld [vmem:[%s1 + $0x1e4] sm:$0xf]
  %v158 = vld [vmem:[%s1 + $0x1e8] sm:$0xf]
  %v159 = vld [vmem:[%s1 + $0x1ec] sm:$0xf]
  %v160 = vld [vmem:[%s1 + $0x1f0] sm:$0xf]
  %v161 = vld [vmem:[%s1 + $0x1f4] sm:$0xf]
  %v162 = vld [vmem:[%s1 + $0x1f8] sm:$0xf]
  %v163 = vld [vmem:[%s1 + $0x1fc] sm:$0xf]
  %v164 = vld [vmem:[%s1 + $0x200] sm:$0xf]
  %v165 = vld [vmem:[%s1 + $0x204] sm:$0xf]
  %v166 = vld [vmem:[%s1 + $0x208] sm:$0xf]
  %v167 = vld [vmem:[%s1 + $0x20c] sm:$0xf]
  %v168 = vld [vmem:[%s1 + $0x210] sm:$0xf]
  %v169 = vld [vmem:[%s1 + $0x214] sm:$0xf]
  %v170 = vld [vmem:[%s1 + $0x218] sm:$0xf]
  %v171 = vld [vmem:[%s1 + $0x21c] sm:$0xf]
  %v172 = vld [vmem:[%s1 + $0x220] sm:$0xf]
  %v173 = vld [vmem:[%s1 + $0x224] sm:$0xf]
  %v174 = vld [vmem:[%s1 + $0x228] sm:$0xf]
  %v175 = vld [vmem:[%s1 + $0x22c] sm:$0xf]
  %v176 = vld [vmem:[%s1 + $0x230] sm:$0xf]
  %v177 = vld [vmem:[%s1 + $0x234] sm:$0xf]
  %v178 = vld [vmem:[%s1 + $0x238] sm:$0xf]
  %v179 = vld [vmem:[%s1 + $0x23c] sm:$0xf]
  %v180 = vld [vmem:[%s2] sm:$0x1]
  %v182 = vperm.slane %v180, 0
  %v199 = vunpack.c.l.b16 %v21
  %v200 = vunpack.c.h.b16 %v21
  %v201 = vunpack.c.l.b16 %v22
  %v202 = vunpack.c.h.b16 %v22
  %v203 = vunpack.c.l.b16 %v23
  %v204 = vunpack.c.h.b16 %v23
  %v205 = vunpack.c.l.b16 %v24
  %v206 = vunpack.c.h.b16 %v24
  %v207 = vunpack.c.l.b16 %v25
  %v208 = vunpack.c.l.b16 %v26
  %v209 = vunpack.c.h.b16 %v26
  %v210 = vunpack.c.l.b16 %v27
  %v211 = vunpack.c.h.b16 %v27
  %v212 = vunpack.c.l.b16 %v28
  %v213 = vunpack.c.h.b16 %v28
  %v214 = vunpack.c.l.b16 %v29
  %v215 = vunpack.c.h.b16 %v29
  %v216 = vunpack.c.l.b16 %v30
  %v217 = vunpack.c.l.b16 %v31
  %v218 = vunpack.c.h.b16 %v31
  %v219 = vunpack.c.l.b16 %v32
  %v220 = vunpack.c.h.b16 %v32
  %v221 = vunpack.c.l.b16 %v33
  %v222 = vunpack.c.h.b16 %v33
  %v223 = vunpack.c.l.b16 %v34
  %v224 = vunpack.c.h.b16 %v34
  %v225 = vunpack.c.l.b16 %v35
  %v226 = vpack.c.b16 %v208, %v199
  %v227 = vpack.c.b16 %v209, %v200
  %v228 = vpack.c.b16 %v210, %v201
  %v229 = vpack.c.b16 %v211, %v202
  %v230 = vpack.c.b16 %v212, %v203
  %v231 = vpack.c.b16 %v213, %v204
  %v232 = vpack.c.b16 %v214, %v205
  %v233 = vpack.c.b16 %v215, %v206
  %v234 = vpack.c.b16 %v216, %v207
  %v235 = vpack.c.b16 %v217, %v217
  %v236 = vpack.c.b16 %v218, %v218
  %v237 = vpack.c.b16 %v219, %v219
  %v238 = vpack.c.b16 %v220, %v220
  %v239 = vpack.c.b16 %v221, %v221
  %v240 = vpack.c.b16 %v222, %v222
  %v241 = vpack.c.b16 %v223, %v223
  %v242 = vpack.c.b16 %v224, %v224
  %v243 = vpack.c.b16 %v225, %v225
  %v406 = vunpack.c.l.b16 %v36
  %v407 = vunpack.c.l.b16 %v37
  %v408 = vunpack.c.l.b16 %v38
  %v409 = vunpack.c.l.b16 %v39
  %v410 = vunpack.c.l.b16 %v40
  %v411 = vunpack.c.l.b16 %v41
  %v412 = vunpack.c.l.b16 %v42
  %v413 = vunpack.c.l.b16 %v43
  %v414 = vunpack.c.l.b16 %v44
  %v415 = vunpack.c.l.b16 %v45
  %v416 = vunpack.c.l.b16 %v46
  %v417 = vunpack.c.l.b16 %v47
  %v418 = vunpack.c.l.b16 %v48
  %v419 = vunpack.c.l.b16 %v49
  %v420 = vunpack.c.l.b16 %v50
  %v421 = vunpack.c.l.b16 %v51
  %v422 = vunpack.c.l.b16 %v52
  %v423 = vunpack.c.l.b16 %v53
  %v424 = vunpack.c.l.b16 %v54
  %v425 = vunpack.c.l.b16 %v55
  %v426 = vunpack.c.l.b16 %v56
  %v427 = vunpack.c.l.b16 %v57
  %v428 = vunpack.c.l.b16 %v58
  %v429 = vunpack.c.l.b16 %v59
  %v430 = vunpack.c.l.b16 %v60
  %v431 = vunpack.c.l.b16 %v61
  %v432 = vunpack.c.l.b16 %v62
  %v433 = vunpack.c.l.b16 %v63
  %v434 = vunpack.c.l.b16 %v64
  %v435 = vunpack.c.l.b16 %v65
  %v436 = vunpack.c.l.b16 %v66
  %v437 = vunpack.c.l.b16 %v67
  %v438 = vunpack.c.l.b16 %v68
  %v439 = vunpack.c.l.b16 %v69
  %v440 = vunpack.c.l.b16 %v70
  %v441 = vunpack.c.l.b16 %v71
  %v442 = vunpack.c.l.b16 %v72
  %v443 = vunpack.c.l.b16 %v73
  %v444 = vunpack.c.l.b16 %v74
  %v445 = vunpack.c.l.b16 %v75
  %v446 = vunpack.c.l.b16 %v76
  %v447 = vunpack.c.l.b16 %v77
  %v448 = vunpack.c.l.b16 %v78
  %v449 = vunpack.c.l.b16 %v79
  %v450 = vunpack.c.l.b16 %v80
  %v451 = vunpack.c.l.b16 %v81
  %v452 = vunpack.c.l.b16 %v82
  %v453 = vunpack.c.l.b16 %v83
  %v454 = vunpack.c.l.b16 %v84
  %v455 = vunpack.c.l.b16 %v85
  %v456 = vunpack.c.l.b16 %v86
  %v457 = vunpack.c.l.b16 %v87
  %v458 = vunpack.c.l.b16 %v88
  %v459 = vunpack.c.l.b16 %v89
  %v460 = vunpack.c.l.b16 %v90
  %v461 = vunpack.c.l.b16 %v91
  %v462 = vunpack.c.l.b16 %v92
  %v463 = vunpack.c.l.b16 %v93
  %v464 = vunpack.c.l.b16 %v94
  %v465 = vunpack.c.l.b16 %v95
  %v466 = vunpack.c.l.b16 %v96
  %v467 = vunpack.c.l.b16 %v97
  %v468 = vunpack.c.l.b16 %v98
  %v469 = vunpack.c.l.b16 %v99
  %v470 = vunpack.c.l.b16 %v100
  %v471 = vunpack.c.l.b16 %v101
  %v472 = vunpack.c.l.b16 %v102
  %v473 = vunpack.c.l.b16 %v103
  %v474 = vunpack.c.l.b16 %v104
  %v475 = vunpack.c.l.b16 %v105
  %v476 = vunpack.c.l.b16 %v106
  %v477 = vunpack.c.l.b16 %v107
  %v478 = vunpack.c.l.b16 %v108
  %v479 = vunpack.c.l.b16 %v109
  %v480 = vunpack.c.l.b16 %v110
  %v481 = vunpack.c.l.b16 %v111
  %v482 = vunpack.c.l.b16 %v112
  %v483 = vunpack.c.l.b16 %v113
  %v484 = vunpack.c.l.b16 %v114
  %v485 = vunpack.c.l.b16 %v115
  %v486 = vunpack.c.l.b16 %v116
  %v487 = vunpack.c.l.b16 %v117
  %v488 = vunpack.c.l.b16 %v118
  %v489 = vunpack.c.l.b16 %v119
  %v490 = vunpack.c.l.b16 %v120
  %v491 = vunpack.c.l.b16 %v121
  %v492 = vunpack.c.l.b16 %v122
  %v493 = vunpack.c.l.b16 %v123
  %v494 = vunpack.c.l.b16 %v124
  %v495 = vunpack.c.l.b16 %v125
  %v496 = vunpack.c.l.b16 %v126
  %v497 = vunpack.c.l.b16 %v127
  %v498 = vunpack.c.l.b16 %v128
  %v499 = vunpack.c.l.b16 %v129
  %v500 = vunpack.c.l.b16 %v130
  %v501 = vunpack.c.l.b16 %v131
  %v502 = vunpack.c.l.b16 %v132
  %v503 = vunpack.c.l.b16 %v133
  %v504 = vunpack.c.l.b16 %v134
  %v505 = vunpack.c.l.b16 %v135
  %v506 = vunpack.c.l.b16 %v136
  %v507 = vunpack.c.l.b16 %v137
  %v508 = vunpack.c.l.b16 %v138
  %v509 = vunpack.c.l.b16 %v139
  %v510 = vunpack.c.l.b16 %v140
  %v511 = vunpack.c.l.b16 %v141
  %v512 = vunpack.c.l.b16 %v142
  %v513 = vunpack.c.l.b16 %v143
  %v514 = vunpack.c.l.b16 %v144
  %v515 = vunpack.c.l.b16 %v145
  %v516 = vunpack.c.l.b16 %v146
  %v517 = vunpack.c.l.b16 %v147
  %v518 = vunpack.c.l.b16 %v148
  %v519 = vunpack.c.l.b16 %v149
  %v520 = vunpack.c.l.b16 %v150
  %v521 = vunpack.c.l.b16 %v151
  %v522 = vunpack.c.l.b16 %v152
  %v523 = vunpack.c.l.b16 %v153
  %v524 = vunpack.c.l.b16 %v154
  %v525 = vunpack.c.l.b16 %v155
  %v526 = vunpack.c.l.b16 %v156
  %v527 = vunpack.c.l.b16 %v157
  %v528 = vunpack.c.l.b16 %v158
  %v529 = vunpack.c.l.b16 %v159
  %v530 = vunpack.c.l.b16 %v160
  %v531 = vunpack.c.l.b16 %v161
  %v532 = vunpack.c.l.b16 %v162
  %v533 = vunpack.c.l.b16 %v163
  %v534 = vunpack.c.l.b16 %v164
  %v535 = vunpack.c.l.b16 %v165
  %v536 = vunpack.c.l.b16 %v166
  %v537 = vunpack.c.l.b16 %v167
  %v538 = vunpack.c.l.b16 %v168
  %v539 = vunpack.c.l.b16 %v169
  %v540 = vunpack.c.l.b16 %v170
  %v541 = vunpack.c.l.b16 %v171
  %v542 = vunpack.c.l.b16 %v172
  %v543 = vunpack.c.l.b16 %v173
  %v544 = vunpack.c.l.b16 %v174
  %v545 = vunpack.c.l.b16 %v175
  %v546 = vunpack.c.l.b16 %v176
  %v547 = vunpack.c.l.b16 %v177
  %v548 = vunpack.c.l.b16 %v178
  %v549 = vunpack.c.l.b16 %v179
  %v550 = vpack.c.b16 %v407, %v406
  %v551 = vpack.c.b16 %v409, %v408
  %v552 = vpack.c.b16 %v411, %v410
  %v553 = vpack.c.b16 %v413, %v412
  %v554 = vpack.c.b16 %v415, %v414
  %v555 = vpack.c.b16 %v417, %v416
  %v556 = vpack.c.b16 %v419, %v418
  %v557 = vpack.c.b16 %v421, %v420
  %v558 = vpack.c.b16 %v423, %v422
  %v559 = vpack.c.b16 %v425, %v424
  %v560 = vpack.c.b16 %v427, %v426
  %v561 = vpack.c.b16 %v429, %v428
  %v562 = vpack.c.b16 %v431, %v430
  %v563 = vpack.c.b16 %v433, %v432
  %v564 = vpack.c.b16 %v435, %v434
  %v565 = vpack.c.b16 %v437, %v436
  %v566 = vpack.c.b16 %v439, %v438
  %v567 = vpack.c.b16 %v441, %v440
  %v568 = vpack.c.b16 %v443, %v442
  %v569 = vpack.c.b16 %v445, %v444
  %v570 = vpack.c.b16 %v447, %v446
  %v571 = vpack.c.b16 %v449, %v448
  %v572 = vpack.c.b16 %v451, %v450
  %v573 = vpack.c.b16 %v453, %v452
  %v574 = vpack.c.b16 %v455, %v454
  %v575 = vpack.c.b16 %v457, %v456
  %v576 = vpack.c.b16 %v459, %v458
  %v577 = vpack.c.b16 %v461, %v460
  %v578 = vpack.c.b16 %v463, %v462
  %v579 = vpack.c.b16 %v465, %v464
  %v580 = vpack.c.b16 %v467, %v466
  %v581 = vpack.c.b16 %v469, %v468
  %v582 = vpack.c.b16 %v471, %v470
  %v583 = vpack.c.b16 %v473, %v472
  %v584 = vpack.c.b16 %v475, %v474
  %v585 = vpack.c.b16 %v477, %v476
  %v586 = vpack.c.b16 %v479, %v478
  %v587 = vpack.c.b16 %v481, %v480
  %v588 = vpack.c.b16 %v483, %v482
  %v589 = vpack.c.b16 %v485, %v484
  %v590 = vpack.c.b16 %v487, %v486
  %v591 = vpack.c.b16 %v489, %v488
  %v592 = vpack.c.b16 %v491, %v490
  %v593 = vpack.c.b16 %v493, %v492
  %v594 = vpack.c.b16 %v495, %v494
  %v595 = vpack.c.b16 %v497, %v496
  %v596 = vpack.c.b16 %v499, %v498
  %v597 = vpack.c.b16 %v501, %v500
  %v598 = vpack.c.b16 %v503, %v502
  %v599 = vpack.c.b16 %v505, %v504
  %v600 = vpack.c.b16 %v507, %v506
  %v601 = vpack.c.b16 %v509, %v508
  %v602 = vpack.c.b16 %v511, %v510
  %v603 = vpack.c.b16 %v513, %v512
  %v604 = vpack.c.b16 %v515, %v514
  %v605 = vpack.c.b16 %v517, %v516
  %v606 = vpack.c.b16 %v519, %v518
  %v607 = vpack.c.b16 %v521, %v520
  %v608 = vpack.c.b16 %v523, %v522
  %v609 = vpack.c.b16 %v525, %v524
  %v610 = vpack.c.b16 %v527, %v526
  %v611 = vpack.c.b16 %v529, %v528
  %v612 = vpack.c.b16 %v531, %v530
  %v613 = vpack.c.b16 %v533, %v532
  %v614 = vpack.c.b16 %v535, %v534
  %v615 = vpack.c.b16 %v537, %v536
  %v616 = vpack.c.b16 %v539, %v538
  %v617 = vpack.c.b16 %v541, %v540
  %v618 = vpack.c.b16 %v543, %v542
  %v619 = vpack.c.b16 %v545, %v544
  %v620 = vpack.c.b16 %v547, %v546
  %v621 = vpack.c.b16 %v549, %v548
  %694 = vmatpush.bf16.msra.mxu0 %v557
  %695 = vmatpush.bf16.msra.mxu0 %v556
  %696 = vmatpush.bf16.msra.mxu0 %v555
  %697 = vmatpush.bf16.msra.mxu0 %v554
  %698 = vmatpush.bf16.msra.mxu0 %v553
  %699 = vmatpush.bf16.msra.mxu0 %v552
  %700 = vmatpush.bf16.msra.mxu0 %v551
  %701 = vmatpush.bf16.msra.mxu0 %v550
  %702 = vmatmul.bf16.gmra.mxu0 %v226
  %v703 = vpop.f32.mrf.mxu0
  %v704 = vadd.f32 %v182, %v703
  %v705 = vpop.f32.mrf.mxu0
  %v706 = vadd.f32 %v182, %v705
  %707 = vmatmul.bf16.gmra.mxu0 %v235
  %v708 = vpop.f32.mrf.mxu0
  %v709 = vadd.f32 %v182, %v708
  %v710 = vpop.f32.mrf.mxu0
  %711 = vdwg.mxu0
  %712 = vmatpush.bf16.msra.mxu0 %v565
  %713 = vmatpush.bf16.msra.mxu0 %v564
  %714 = vmatpush.bf16.msra.mxu0 %v563
  %715 = vmatpush.bf16.msra.mxu0 %v562
  %716 = vmatpush.bf16.msra.mxu0 %v561
  %717 = vmatpush.bf16.msra.mxu0 %v560
  %718 = vmatpush.bf16.msra.mxu0 %v559
  %719 = vmatpush.bf16.msra.mxu0 %v558
  %720 = vmatmul.bf16.gmra.mxu0 %v227
  %v721 = vpop.f32.mrf.mxu0
  %v722 = vadd.f32 %v704, %v721
  %v723 = vpop.f32.mrf.mxu0
  %v724 = vadd.f32 %v706, %v723
  %725 = vmatmul.bf16.gmra.mxu0 %v236
  %v726 = vpop.f32.mrf.mxu0
  %v727 = vadd.f32 %v709, %v726
  %v728 = vpop.f32.mrf.mxu0
  %729 = vdwg.mxu0
  %730 = vmatpush.bf16.msra.mxu0 %v573
  %731 = vmatpush.bf16.msra.mxu0 %v572
  %732 = vmatpush.bf16.msra.mxu0 %v571
  %733 = vmatpush.bf16.msra.mxu0 %v570
  %734 = vmatpush.bf16.msra.mxu0 %v569
  %735 = vmatpush.bf16.msra.mxu0 %v568
  %736 = vmatpush.bf16.msra.mxu0 %v567
  %737 = vmatpush.bf16.msra.mxu0 %v566
  %738 = vmatmul.bf16.gmra.mxu0 %v228
  %v739 = vpop.f32.mrf.mxu0
  %v740 = vadd.f32 %v722, %v739
  %v741 = vpop.f32.mrf.mxu0
  %v742 = vadd.f32 %v724, %v741
  %743 = vmatmul.bf16.gmra.mxu0 %v237
  %v744 = vpop.f32.mrf.mxu0
  %v745 = vadd.f32 %v727, %v744
  %v746 = vpop.f32.mrf.mxu0
  %747 = vdwg.mxu0
  %748 = vmatpush.bf16.msra.mxu0 %v581
  %749 = vmatpush.bf16.msra.mxu0 %v580
  %750 = vmatpush.bf16.msra.mxu0 %v579
  %751 = vmatpush.bf16.msra.mxu0 %v578
  %752 = vmatpush.bf16.msra.mxu0 %v577
  %753 = vmatpush.bf16.msra.mxu0 %v576
  %754 = vmatpush.bf16.msra.mxu0 %v575
  %755 = vmatpush.bf16.msra.mxu0 %v574
  %756 = vmatmul.bf16.gmra.mxu0 %v229
  %v757 = vpop.f32.mrf.mxu0
  %v758 = vadd.f32 %v740, %v757
  %v759 = vpop.f32.mrf.mxu0
  %v760 = vadd.f32 %v742, %v759
  %761 = vmatmul.bf16.gmra.mxu0 %v238
  %v762 = vpop.f32.mrf.mxu0
  %v763 = vadd.f32 %v745, %v762
  %v764 = vpop.f32.mrf.mxu0
  %765 = vdwg.mxu0
  %766 = vmatpush.bf16.msra.mxu0 %v589
  %767 = vmatpush.bf16.msra.mxu0 %v588
  %768 = vmatpush.bf16.msra.mxu0 %v587
  %769 = vmatpush.bf16.msra.mxu0 %v586
  %770 = vmatpush.bf16.msra.mxu0 %v585
  %771 = vmatpush.bf16.msra.mxu0 %v584
  %772 = vmatpush.bf16.msra.mxu0 %v583
  %773 = vmatpush.bf16.msra.mxu0 %v582
  %774 = vmatmul.bf16.gmra.mxu0 %v230
  %v775 = vpop.f32.mrf.mxu0
  %v776 = vadd.f32 %v758, %v775
  %v777 = vpop.f32.mrf.mxu0
  %v778 = vadd.f32 %v760, %v777
  %779 = vmatmul.bf16.gmra.mxu0 %v239
  %v780 = vpop.f32.mrf.mxu0
  %v781 = vadd.f32 %v763, %v780
  %v782 = vpop.f32.mrf.mxu0
  %783 = vdwg.mxu0
  %784 = vmatpush.bf16.msra.mxu0 %v597
  %785 = vmatpush.bf16.msra.mxu0 %v596
  %786 = vmatpush.bf16.msra.mxu0 %v595
  %787 = vmatpush.bf16.msra.mxu0 %v594
  %788 = vmatpush.bf16.msra.mxu0 %v593
  %789 = vmatpush.bf16.msra.mxu0 %v592
  %790 = vmatpush.bf16.msra.mxu0 %v591
  %791 = vmatpush.bf16.msra.mxu0 %v590
  %792 = vmatmul.bf16.gmra.mxu0 %v231
  %v793 = vpop.f32.mrf.mxu0
  %v794 = vadd.f32 %v776, %v793
  %v795 = vpop.f32.mrf.mxu0
  %v796 = vadd.f32 %v778, %v795
  %797 = vmatmul.bf16.gmra.mxu0 %v240
  %v798 = vpop.f32.mrf.mxu0
  %v799 = vadd.f32 %v781, %v798
  %v800 = vpop.f32.mrf.mxu0
  %801 = vdwg.mxu0
  %802 = vmatpush.bf16.msra.mxu0 %v605
  %803 = vmatpush.bf16.msra.mxu0 %v604
  %804 = vmatpush.bf16.msra.mxu0 %v603
  %805 = vmatpush.bf16.msra.mxu0 %v602
  %806 = vmatpush.bf16.msra.mxu0 %v601
  %807 = vmatpush.bf16.msra.mxu0 %v600
  %808 = vmatpush.bf16.msra.mxu0 %v599
  %809 = vmatpush.bf16.msra.mxu0 %v598
  %810 = vmatmul.bf16.gmra.mxu0 %v232
  %v811 = vpop.f32.mrf.mxu0
  %v812 = vadd.f32 %v794, %v811
  %v813 = vpop.f32.mrf.mxu0
  %v814 = vadd.f32 %v796, %v813
  %815 = vmatmul.bf16.gmra.mxu0 %v241
  %v816 = vpop.f32.mrf.mxu0
  %v817 = vadd.f32 %v799, %v816
  %v818 = vpop.f32.mrf.mxu0
  %819 = vdwg.mxu0
  %820 = vmatpush.bf16.msra.mxu0 %v613
  %821 = vmatpush.bf16.msra.mxu0 %v612
  %822 = vmatpush.bf16.msra.mxu0 %v611
  %823 = vmatpush.bf16.msra.mxu0 %v610
  %824 = vmatpush.bf16.msra.mxu0 %v609
  %825 = vmatpush.bf16.msra.mxu0 %v608
  %826 = vmatpush.bf16.msra.mxu0 %v607
  %827 = vmatpush.bf16.msra.mxu0 %v606
  %828 = vmatmul.bf16.gmra.mxu0 %v233
  %v829 = vpop.f32.mrf.mxu0
  %v830 = vadd.f32 %v812, %v829
  %v831 = vpop.f32.mrf.mxu0
  %v832 = vadd.f32 %v814, %v831
  %833 = vmatmul.bf16.gmra.mxu0 %v242
  %v834 = vpop.f32.mrf.mxu0
  %v835 = vadd.f32 %v817, %v834
  %v836 = vpop.f32.mrf.mxu0
  %837 = vdwg.mxu0
  %838 = vmatpush.bf16.msra.mxu0 %v621
  %839 = vmatpush.bf16.msra.mxu0 %v620
  %840 = vmatpush.bf16.msra.mxu0 %v619
  %841 = vmatpush.bf16.msra.mxu0 %v618
  %842 = vmatpush.bf16.msra.mxu0 %v617
  %843 = vmatpush.bf16.msra.mxu0 %v616
  %844 = vmatpush.bf16.msra.mxu0 %v615
  %845 = vmatpush.bf16.msra.mxu0 %v614
  %846 = vmatmul.bf16.gmra.mxu0 %v234
  %v847 = vpop.f32.mrf.mxu0
  %v848 = vadd.f32 %v830, %v847
  %v849 = vpop.f32.mrf.mxu0
  %v850 = vadd.f32 %v832, %v849
  %851 = vmatmul.bf16.gmra.mxu0 %v243
  %v852 = vpop.f32.mrf.mxu0
  %v853 = vadd.f32 %v835, %v852
  %v854 = vpop.f32.mrf.mxu0
  %855 = vdwg.mxu0
  %v856 = vpack.c.bf16 %v850, %v848
  %v857 = vpack.c.bf16 %v853, %v853
  %v858 = vld [vmem:[%s3] sm:$0xf]
  %v859 = vld [vmem:[%s3 + $0x4] sm:$0xf]
  %v860 = vld [vmem:[%s3 + $0x8] sm:$0xf]
  %v861 = vld [vmem:[%s3 + $0xc] sm:$0xf]
  %v862 = vld [vmem:[%s4] sm:$0x1]
  %v864 = vperm.slane %v862, 0
  %v870 = vunpack.c.l.b16 %v858
  %v871 = vunpack.c.l.b16 %v859
  %v872 = vunpack.c.l.b16 %v860
  %v873 = vunpack.c.l.b16 %v861
  %v874 = vpack.c.b16 %v871, %v870
  %v875 = vpack.c.b16 %v873, %v872
  %vm878 = vcmask 261120
  %v880 = vsel %vm878, %v856, 0
  %v883 = vsel %vm878, %v857, 0
  %885 = vmatpush.bf16.msra.mxu0 0
  %886 = vmatpush.bf16.msra.mxu0 0
  %887 = vmatpush.bf16.msra.mxu0 0
  %888 = vmatpush.bf16.msra.mxu0 0
  %889 = vmatpush.bf16.msra.mxu0 0
  %890 = vmatpush.bf16.msra.mxu0 0
  %891 = vmatpush.bf16.msra.mxu0 %v875
  %892 = vmatpush.bf16.msra.mxu0 %v874
  %893 = vmatmul.bf16.gmra.mxu0 %v880
  %v894 = vpop.f32.mrf.mxu0
  %v895 = vadd.f32 %v864, %v894
  %v896 = vpop.f32.mrf.mxu0
  %v897 = vadd.f32 %v864, %v896
  %898 = vmatmul.bf16.gmra.mxu0 %v883
  %v899 = vpop.f32.mrf.mxu0
  %v900 = vadd.f32 %v864, %v899
  %v901 = vpop.f32.mrf.mxu0
  %902 = vdwg.mxu0
  %v903 = vlaneseq
  %v904 = vand.u32 %v903, 127
  %vm905 = vcmp.eq.s32.totalorder %v904, 0
  %vm906 = vcmp.eq.s32.totalorder %v904, 4
  %vm907 = vmor %vm905, %vm906
  %v908 = vxor.u32 %v895, 2147483648
  %v909 = vxor.u32 %v897, 2147483648
  %v910 = vxor.u32 %v900, 2147483648
  %v911 = vmul.f32 %v908, 1.442695
  %v912 = vpow.pop %v911
  %v913 = vmul.f32 %v909, 1.442695
  %v914 = vpow.pop %v913
  %v915 = vmul.f32 %v910, 1.442695
  %v916 = vpow.pop %v915
  %v917 = vadd.f32 %v912, 1.0
  %v918 = vadd.f32 %v914, 1.0
  %v919 = vadd.f32 %v916, 1.0
  %v920 = vrcp.pop %v917
  %v921 = vmul.f32 %v917, %v920
  %v922 = vsub.f32 1.0, %v921
  %v923 = vmul.f32 %v920, %v922
  %v924 = vadd.f32 %v920, %v923
  %vm925 = vweird.f32 %v917
  %vm926 = vweird.f32 %v920
  %vm927 = vmor %vm925, %vm926
  %v928 = vsel %vm927, %v920, %v924
  %v929 = vand.u32 2147483647, %v917
  %vm930 = vcmp.eq.f32.partialorder %v929, 8.507059e+37
  %v931 = vand.u32 %v917, 2147483648
  %v932 = vor.u32 1.1754944e-38, %v931
  %v933 = vsel %vm930, %v932, %v928
  %v934 = vmul.f32 1.0, %v933
  %v935 = vrcp.pop %v918
  %v936 = vmul.f32 %v918, %v935
  %v937 = vsub.f32 1.0, %v936
  %v938 = vmul.f32 %v935, %v937
  %v939 = vadd.f32 %v935, %v938
  %vm940 = vweird.f32 %v918
  %vm941 = vweird.f32 %v935
  %vm942 = vmor %vm940, %vm941
  %v943 = vsel %vm942, %v935, %v939
  %v944 = vand.u32 2147483647, %v918
  %vm945 = vcmp.eq.f32.partialorder %v944, 8.507059e+37
  %v946 = vand.u32 %v918, 2147483648
  %v947 = vor.u32 1.1754944e-38, %v946
  %v948 = vsel %vm945, %v947, %v943
  %v949 = vmul.f32 1.0, %v948
  %v950 = vrcp.pop %v919
  %v951 = vmul.f32 %v919, %v950
  %v952 = vsub.f32 1.0, %v951
  %v953 = vmul.f32 %v950, %v952
  %v954 = vadd.f32 %v950, %v953
  %vm955 = vweird.f32 %v919
  %vm956 = vweird.f32 %v950
  %vm957 = vmor %vm955, %vm956
  %v958 = vsel %vm957, %v950, %v954
  %v959 = vand.u32 2147483647, %v919
  %vm960 = vcmp.eq.f32.partialorder %v959, 8.507059e+37
  %v961 = vand.u32 %v919, 2147483648
  %v962 = vor.u32 1.1754944e-38, %v961
  %v963 = vsel %vm960, %v962, %v958
  %v964 = vmul.f32 1.0, %v963
  %v965 = vsel %vm907, %v934, %v895
  %v966 = vsel %vm907, %v949, %v897
  %v967 = vsel %vm907, %v964, %v900
  %vm968 = vcmask 39936
  %969 = vst.msk [vmem:[%s5] sm:$0xff] %vm968, %v965
  %970 = vst.msk [vmem:[%s5 + $0x8] sm:$0xff] %vm968, %v966
  %vm971 = vcmask 33792
  %972 = vst.msk [vmem:[%s5 + $0x10] sm:$0x3] %vm971, %v967
  // Predicated region
  $region22: #{_lambda_.13} parent=0 // pred_check
    _
  $region23: #{_lambda_.13} parent=0 // pred_check_branch
    %974 = sbr.rel (0) target = $region25
  $region24: #{_lambda_.13} parent=0 // pred_region
    _
  $region25: #{_lambda_.13} parent=0 // pred_fallthru
    _
  // Predicated region
  $region26: #{_lambda_.13} parent=0 // pred_check
    _
  $region27: #{_lambda_.13} parent=0 // pred_check_branch
    %976 = sbr.rel (0) target = $region29
  $region28: #{_lambda_.13} parent=0 // pred_region
    _
  $region29: #{_lambda_.13} parent=0 // pred_fallthru
    _

</llo_original>
